<compile_context>
chip_gen: v7x
topology: tpu7x:2x2x1
jax: 0.10.0
libtpu: 0.0.40
codegen_flags: <defaults>
</compile_context>

<pallas_src>
import functools
import math
from typing import NamedTuple

import jax
import jax.numpy as jnp
from jax.experimental import pallas as pl
from jax.experimental.pallas import tpu as pltpu


class ViTConfig(NamedTuple):
    img: int = 16
    patch: int = 4
    in_chans: int = 3
    dim: int = 32
    depth: int = 2
    heads: int = 4
    mlp_dim: int = 64
    num_classes: int = 10
    eps: float = 1e-6          # timm ViT LayerNorm eps


# ----------------------------------------------------------------------------
# Fused Pallas kernel: whole ViT + extra linear layer in one call
# ----------------------------------------------------------------------------

def _vit_forward_kernel(
    # ---- inputs (whole arrays, VMEM resident) ----
    patches_ref, patch_w_ref, embed_ref, attn_bias_ref,
    ln1_g_ref, ln1_b_ref, wqkv_ref, bqkv_ref, wproj_ref, proj_b_ref,
    ln2_g_ref, ln2_b_ref, fc1_w_ref, fc1_b_ref, fc2_w_ref, fc2_b_ref,
    lnf_g_ref, lnf_b_ref, head_w_ref, head_b_ref,
    # ---- output ----
    out_ref,
    *, B, Np, D, S_pad, heads, depth, eps,
):
    f32 = jnp.float32
    bf16 = jnp.bfloat16
    R = B * S_pad
    dh = D // heads

    def ln(v, gamma, beta):
        mean = jnp.mean(v, axis=-1, keepdims=True)
        c = v - mean
        var = jnp.mean(c * c, axis=-1, keepdims=True)
        return c * jax.lax.rsqrt(var + eps) * gamma + beta

    # 0 on (same-image, real-key) pairs, -1e30 elsewhere (block-diag + pad mask).
    attn_bias = attn_bias_ref[...]

    # ---- patch embedding + cls/pos embedding: one matmul + one add ----------
    # patches rows at cls/pad positions are zero pixels; embed_ref carries
    # (pos_patch + patch_b) on patch rows, (cls_token + pos[0]) on cls rows,
    # and zeros on pad rows, so x is exactly the padded token sequence.
    x = jnp.dot(patches_ref[...], patch_w_ref[...],
                preferred_element_type=f32) + embed_ref[...]

    # ---- transformer blocks (unrolled; all images batched along sublanes) ---
    for d in range(depth):
        # --- multi-head self-attention (pre-norm), residual fused ---
        h_in = ln(x, ln1_g_ref[d], ln1_b_ref[d]).astype(bf16)
        qkv = jnp.dot(h_in, wqkv_ref[d], preferred_element_type=f32) + bqkv_ref[d]
        acc = jnp.zeros((R, D), f32)
        for h in range(heads):
            # cheap sub-vreg lane slices of the fused QKV value
            q = qkv[:, h * dh:(h + 1) * dh].astype(bf16)
            k = qkv[:, D + h * dh:D + (h + 1) * dh].astype(bf16)
            v = qkv[:, 2 * D + h * dh:2 * D + (h + 1) * dh].astype(bf16)
            s = jax.lax.dot_general(q, k, (((1,), (1,)), ((), ())),
                                    preferred_element_type=f32)
            s = s + attn_bias                      # mask other images + pad keys
            s = s - jnp.max(s, axis=-1, keepdims=True)
            p = jnp.exp(s)
            inv = pl.reciprocal(jnp.sum(p, axis=-1, keepdims=True), approx=True)
            o_h = jnp.dot(p.astype(bf16), v, preferred_element_type=f32) * inv
            # head-concat + output projection folded into an accumulation
            acc = acc + jnp.dot(o_h, wproj_ref[d * heads + h],
                                preferred_element_type=f32)
        x = x + acc + proj_b_ref[d]

        # --- MLP (pre-norm), residual fused ---
        h_mlp = ln(x, ln2_g_ref[d], ln2_b_ref[d]).astype(bf16)
        u = jnp.dot(h_mlp, fc1_w_ref[d], preferred_element_type=f32) + fc1_b_ref[d]
        # TODO(synk): PyTorch nn.GELU defaults to the exact erf form; the tanh
        # approximation is used here for a robust Mosaic lowering (~1e-3 error).
        u = jax.nn.gelu(u, approximate=True).astype(bf16)
        x = x + jnp.dot(u, fc2_w_ref[d], preferred_element_type=f32) + fc2_b_ref[d]

    # ---- final LayerNorm on the cls tokens + extra linear head --------------
    # Matmul-based gather of the B cls rows -> one LN, one matmul, ONE store.
    img = jax.lax.broadcasted_iota(jnp.int32, (B, R), 0)
    colr = jax.lax.broadcasted_iota(jnp.int32, (B, R), 1)
    sel = jnp.where(colr == img * S_pad + Np, 1.0, 0.0).astype(f32)   # one-hot
    cls = jnp.dot(sel, x, preferred_element_type=f32)                 # (B, D)
    feat = ln(cls, lnf_g_ref[...], lnf_b_ref[...])
    out_ref[...] = (jnp.dot(feat, head_w_ref[...], preferred_element_type=f32)
                    + head_b_ref[...]).astype(out_ref.dtype)


# ----------------------------------------------------------------------------
# Wrapper: layout glue + single pallas_call
# ----------------------------------------------------------------------------

def vit_with_extra_layer_forward(cfg, packed, x):
    """ViTWIthExtraLayer.forward: new_linear_layer(vit(x)) as one fused kernel."""
    B = x.shape[0]
    p = cfg.patch
    g = cfg.img // p
    Np = g * g
    S = Np + 1
    S_pad = ((S + 7) // 8) * 8
    D = cfg.dim
    P2C = cfg.in_chans * p * p
    R = B * S_pad

    # Pure layout glue (XLA): im2col the non-overlapping patches, pad each image
    # to S_pad rows (cls + pad rows are zero pixel rows), flatten over images.
    patches = (x.reshape(B, cfg.in_chans, g, p, g, p)
                 .transpose(0, 2, 4, 1, 3, 5)
                 .reshape(B, Np, P2C))
    patches_pad = jnp.concatenate(
        [patches, jnp.zeros((B, S_pad - Np, P2C), patches.dtype)], axis=1
    ).reshape(R, P2C).astype(jnp.bfloat16)

    # Per-image embedding slab added right after the patch-embed matmul.
    per_img = jnp.concatenate([
        packed["pos_patch"] + packed["patch_b"],               # patch rows
        packed["cls_pos"],                                     # cls row
        jnp.zeros((S_pad - Np - 1, D), jnp.float32)], axis=0)  # pad rows
    embed_full = jnp.tile(per_img, (B, 1))                     # (R, D)

    # Block-diagonal additive attention bias (other images + padded keys).
    row = jax.lax.broadcasted_iota(jnp.int32, (R, R), 0)
    col = jax.lax.broadcasted_iota(jnp.int32, (R, R), 1)
    attn_bias = jnp.where((row // S_pad == col // S_pad) & (col % S_pad < S),
                          0.0, -1e30).astype(jnp.float32)

    kernel = functools.partial(
        _vit_forward_kernel,
        B=B, Np=Np, D=D, S_pad=S_pad, heads=cfg.heads, depth=cfg.depth,
        eps=cfg.eps)

    # Whole working set (~60 KB) is VMEM resident; a single grid-less
    # invocation keeps launch overhead at one step (best on v5e/v6e, 1 TC).
    # TODO(synk): on v7x (2 TCs) a grid=(B,) with dimension_semantics=
    # ("parallel",) would shard images across the two cores.
    return pl.pallas_call(
        kernel,
        out_shape=jax.ShapeDtypeStruct((B, cfg.num_classes), jnp.float32),
        compiler_params=pltpu.CompilerParams(vmem_limit_bytes=32 * 1024 * 1024),
    )(
        patches_pad, packed["patch_w"], embed_full, attn_bias,
        packed["ln1_g"], packed["ln1_b"], packed["wqkv"], packed["bqkv"],
        packed["wproj"], packed["proj_b"], packed["ln2_g"], packed["ln2_b"],
        packed["fc1_w"], packed["fc1_b"], packed["fc2_w"], packed["fc2_b"],
        packed["lnf_g"], packed["lnf_b"], packed["head_w"], packed["head_b"],
    )


# ----------------------------------------------------------------------------
# Parameter construction + kernel-friendly repacking (one-time, plain JAX)
# ----------------------------------------------------------------------------

def init_params(key, cfg):
    D = cfg.dim
    S = (cfg.img // cfg.patch) ** 2 + 1

    def nrm(k, shape, std=0.02):
        return jax.random.normal(k, shape, dtype=jnp.float32) * std

    keys = jax.random.split(key, 4 + cfg.depth)
    params = {
        "patch_w": nrm(keys[0], (cfg.in_chans * cfg.patch * cfg.patch, D)),
        "patch_b": jnp.zeros((D,), jnp.float32),
        "cls_token": nrm(keys[1], (1, 1, D)),
        "pos_embed": nrm(keys[2], (1, S, D)),
        "ln_f_g": jnp.ones((D,), jnp.float32),
        "ln_f_b": jnp.zeros((D,), jnp.float32),
        "head_w": nrm(keys[3], (D, cfg.num_classes)),   # new_linear_layer
        "head_b": jnp.zeros((cfg.num_classes,), jnp.float32),
        "blocks": [],
    }
    for d in range(cfg.depth):
        bk = jax.random.split(keys[4 + d], 4)
        params["blocks"].append({
            "ln1_g": jnp.ones((D,), jnp.float32),
            "ln1_b": jnp.zeros((D,), jnp.float32),
            "qkv_w": nrm(bk[0], (D, 3 * D)),
            "qkv_b": jnp.zeros((3 * D,), jnp.float32),
            "proj_w": nrm(bk[1], (D, D)),
            "proj_b": jnp.zeros((D,), jnp.float32),
            "ln2_g": jnp.ones((D,), jnp.float32),
            "ln2_b": jnp.zeros((D,), jnp.float32),
            "fc1_w": nrm(bk[2], (D, cfg.mlp_dim)),
            "fc1_b": jnp.zeros((cfg.mlp_dim,), jnp.float32),
            "fc2_w": nrm(bk[3], (cfg.mlp_dim, D)),
            "fc2_b": jnp.zeros((D,), jnp.float32),
        })
    return params


def pack_params(cfg, params):
    """Repack canonical ViT params into the kernel's fused / bf16 layout."""
    D, nh = cfg.dim, cfg.heads
    dh = D // nh
    scale = 1.0 / math.sqrt(dh)
    blocks = params["blocks"]
    bf16 = jnp.bfloat16

    def stack_vec(name):                      # -> (depth, 1, N) f32
        return jnp.stack([blk[name].reshape(1, -1) for blk in blocks])

    wqkv, bqkv, wproj = [], [], []
    for blk in blocks:
        qw, qb = blk["qkv_w"], blk["qkv_b"]
        # Softmax 1/sqrt(dh) scale folded into the Q columns; whole QKV fused.
        wqkv.append(jnp.concatenate([qw[:, :D] * scale, qw[:, D:]],
                                    axis=1).astype(bf16))
        bqkv.append(jnp.concatenate([qb[:D] * scale, qb[D:]]).reshape(1, 3 * D))
        # Per-head row block of proj_w: head-concat becomes a sum of matmuls.
        for h in range(nh):
            wproj.append(blk["proj_w"][h * dh:(h + 1) * dh, :])   # f32 (tiny)

    return {
        "patch_w": params["patch_w"].astype(bf16),
        "patch_b": params["patch_b"].reshape(1, D),
        "cls_pos": params["cls_token"].reshape(1, D) + params["pos_embed"][0, 0:1, :],
        "pos_patch": params["pos_embed"][0, 1:, :],
        "ln1_g": stack_vec("ln1_g"), "ln1_b": stack_vec("ln1_b"),
        "wqkv": jnp.stack(wqkv), "bqkv": jnp.stack(bqkv),
        "wproj": jnp.stack(wproj), "proj_b": stack_vec("proj_b"),
        "ln2_g": stack_vec("ln2_g"), "ln2_b": stack_vec("ln2_b"),
        "fc1_w": jnp.stack([b["fc1_w"] for b in blocks]).astype(bf16),
        "fc1_b": stack_vec("fc1_b"),
        "fc2_w": jnp.stack([b["fc2_w"] for b in blocks]).astype(bf16),
        "fc2_b": stack_vec("fc2_b"),
        "lnf_g": params["ln_f_g"].reshape(1, D),
        "lnf_b": params["ln_f_b"].reshape(1, D),
        "head_w": params["head_w"],                # f32 (tiny final matmul)
        "head_b": params["head_b"].reshape(1, -1),
    }


# ----------------------------------------------------------------------------
# Plain-JAX reference (for a sanity check of the fused kernel)
# ----------------------------------------------------------------------------

def _reference_forward(cfg, params, x):
    B = x.shape[0]
    p, D, nh = cfg.patch, cfg.dim, cfg.heads
    g = cfg.img // p
    Np = g * g
    S = Np + 1
    dh = D // nh

    patches = (x.reshape(B, cfg.in_chans, g, p, g, p)
                 .transpose(0, 2, 4, 1, 3, 5)
                 .reshape(B, Np, cfg.in_chans * p * p))
    tok = patches @ params["patch_w"] + params["patch_b"]
    cls = jnp.broadcast_to(params["cls_token"], (B, 1, D))
    xseq = jnp.concatenate([cls, tok], axis=1) + params["pos_embed"]

    def ln(v, gamma, beta):
        m = jnp.mean(v, axis=-1, keepdims=True)
        c = v - m
        var = jnp.mean(c * c, axis=-1, keepdims=True)
        return c * jax.lax.rsqrt(var + cfg.eps) * gamma + beta

    scale = 1.0 / math.sqrt(dh)
    for blk in params["blocks"]:
        h = ln(xseq, blk["ln1_g"], blk["ln1_b"])
        qkv = h @ blk["qkv_w"] + blk["qkv_b"]
        qkv = qkv.reshape(B, S, 3, nh, dh).transpose(2, 0, 3, 1, 4)
        q, k, v = qkv[0], qkv[1], qkv[2]
        s = jnp.einsum("bhqd,bhkd->bhqk", q, k) * scale
        w = jax.nn.softmax(s, axis=-1)
        o = jnp.einsum("bhqk,bhkd->bhqd", w, v)
        o = o.transpose(0, 2, 1, 3).reshape(B, S, D)
        xseq = xseq + o @ blk["proj_w"] + blk["proj_b"]
        h = ln(xseq, blk["ln2_g"], blk["ln2_b"])
        h = jax.nn.gelu(h @ blk["fc1_w"] + blk["fc1_b"], approximate=True)
        xseq = xseq + h @ blk["fc2_w"] + blk["fc2_b"]

    feat = ln(xseq, params["ln_f_g"], params["ln_f_b"])[:, 0]
    return feat @ params["head_w"] + params["head_b"]


# ----------------------------------------------------------------------------

if __name__ == "__main__":
    cfg = ViTConfig()
    key = jax.random.PRNGKey(0)
    pkey, xkey = jax.random.split(key)

    params = init_params(pkey, cfg)
    packed = pack_params(cfg, params)

    # layout: NCHW, matching the PyTorch module's conv-input convention.
    x = jax.random.normal(xkey, (2, cfg.in_chans, cfg.img, cfg.img),
                          dtype=jnp.float32)

    fwd = jax.jit(functools.partial(vit_with_extra_layer_forward, cfg))
    out = jax.block_until_ready(fwd(packed, x))

    assert out.shape == (2, cfg.num_classes) and out.dtype == jnp.float32
    assert bool(jnp.all(jnp.isfinite(out)))

    ref = jax.block_until_ready(
        jax.jit(functools.partial(_reference_forward, cfg))(params, x))
    # bf16 matmul operands in the kernel vs f32 reference -> slightly looser tol.
    assert bool(jnp.allclose(out, ref, rtol=5e-2, atol=5e-3)), (
        f"max abs diff {float(jnp.max(jnp.abs(out - ref)))}")

    print("KERNEL_OK")
</pallas_src>

<mosaic_0001>
module attributes {stable_mosaic.version = 11 : i64} {
  func.func @_vit_forward_kernel(%arg0: memref<48x48xbf16, #tpu.memory_space<vmem>>, %arg1: memref<48x32xbf16, #tpu.memory_space<vmem>>, %arg2: memref<48x32xf32, #tpu.memory_space<vmem>>, %arg3: memref<48x48xf32, #tpu.memory_space<vmem>>, %arg4: memref<2x1x32xf32, #tpu.memory_space<vmem>>, %arg5: memref<2x1x32xf32, #tpu.memory_space<vmem>>, %arg6: memref<2x32x96xbf16, #tpu.memory_space<vmem>>, %arg7: memref<2x1x96xf32, #tpu.memory_space<vmem>>, %arg8: memref<8x8x32xf32, #tpu.memory_space<vmem>>, %arg9: memref<2x1x32xf32, #tpu.memory_space<vmem>>, %arg10: memref<2x1x32xf32, #tpu.memory_space<vmem>>, %arg11: memref<2x1x32xf32, #tpu.memory_space<vmem>>, %arg12: memref<2x32x64xbf16, #tpu.memory_space<vmem>>, %arg13: memref<2x1x64xf32, #tpu.memory_space<vmem>>, %arg14: memref<2x64x32xbf16, #tpu.memory_space<vmem>>, %arg15: memref<2x1x32xf32, #tpu.memory_space<vmem>>, %arg16: memref<1x32xf32, #tpu.memory_space<vmem>>, %arg17: memref<1x32xf32, #tpu.memory_space<vmem>>, %arg18: memref<32x10xf32, #tpu.memory_space<vmem>>, %arg19: memref<1x10xf32, #tpu.memory_space<vmem>>, %arg20: memref<2x10xf32, #tpu.memory_space<vmem>>) attributes {dimension_semantics = [], scalar_prefetch = 0 : i64, scratch_operands = 0 : i64, tpu.core_type = #tpu.core_type<tc>} {
    %c0 = arith.constant 0 : index
    %c0_0 = arith.constant 0 : index
    %0 = vector.load %arg3[%c0, %c0_0] : memref<48x48xf32, #tpu.memory_space<vmem>>, vector<48x48xf32>
    %c0_1 = arith.constant 0 : index
    %c0_2 = arith.constant 0 : index
    %1 = vector.load %arg0[%c0_1, %c0_2] : memref<48x48xbf16, #tpu.memory_space<vmem>>, vector<48x48xbf16>
    %c0_3 = arith.constant 0 : index
    %c0_4 = arith.constant 0 : index
    %2 = vector.load %arg1[%c0_3, %c0_4] : memref<48x32xbf16, #tpu.memory_space<vmem>>, vector<48x32xbf16>
    %cst = arith.constant dense<0.000000e+00> : vector<48x32xf32>
    %3 = tpu.matmul %1, %2, %cst {dimension_numbers = #tpu.dot_dimension_numbers<[1], [0], [0], [1], [0, 0, 1, 1], [], []>} : vector<48x48xbf16>, vector<48x32xbf16>, vector<48x32xf32> -> vector<48x32xf32>
    %c0_5 = arith.constant 0 : index
    %c0_6 = arith.constant 0 : index
    %4 = vector.load %arg2[%c0_5, %c0_6] : memref<48x32xf32, #tpu.memory_space<vmem>>, vector<48x32xf32>
    %5 = arith.addf %3, %4 : vector<48x32xf32>
    %c0_7 = arith.constant 0 : index
    %c0_8 = arith.constant 0 : index
    %c0_9 = arith.constant 0 : index
    %6 = vector.load %arg4[%c0_7, %c0_8, %c0_9] : memref<2x1x32xf32, #tpu.memory_space<vmem>>, vector<1x1x32xf32>
    %7 = vector.shape_cast %6 : vector<1x1x32xf32> to vector<1x32xf32>
    %c0_10 = arith.constant 0 : index
    %c0_11 = arith.constant 0 : index
    %c0_12 = arith.constant 0 : index
    %8 = vector.load %arg5[%c0_10, %c0_11, %c0_12] : memref<2x1x32xf32, #tpu.memory_space<vmem>>, vector<1x1x32xf32>
    %9 = vector.shape_cast %8 : vector<1x1x32xf32> to vector<1x32xf32>
    %cst_13 = arith.constant dense<0.000000e+00> : vector<48xf32>
    %10 = vector.multi_reduction <add>, %5, %cst_13 [1] : vector<48x32xf32> to vector<48xf32>
    %11 = vector.shape_cast %10 : vector<48xf32> to vector<48x1xf32>
    %cst_14 = arith.constant 3.200000e+01 : f32
    %12 = vector.broadcast %cst_14 : f32 to vector<48x1xf32>
    %13 = arith.divf %11, %12 : vector<48x1xf32>
    %14 = vector.broadcast %13 : vector<48x1xf32> to vector<48x32xf32>
    %15 = arith.subf %5, %14 : vector<48x32xf32>
    %16 = arith.mulf %15, %15 : vector<48x32xf32>
    %cst_15 = arith.constant dense<0.000000e+00> : vector<48xf32>
    %17 = vector.multi_reduction <add>, %16, %cst_15 [1] : vector<48x32xf32> to vector<48xf32>
    %18 = vector.shape_cast %17 : vector<48xf32> to vector<48x1xf32>
    %cst_16 = arith.constant 3.200000e+01 : f32
    %19 = vector.broadcast %cst_16 : f32 to vector<48x1xf32>
    %20 = arith.divf %18, %19 : vector<48x1xf32>
    %cst_17 = arith.constant 9.99999997E-7 : f32
    %21 = vector.broadcast %cst_17 : f32 to vector<48x1xf32>
    %22 = arith.addf %20, %21 : vector<48x1xf32>
    %23 = math.rsqrt %22 : vector<48x1xf32>
    %24 = vector.broadcast %23 : vector<48x1xf32> to vector<48x32xf32>
    %25 = arith.mulf %15, %24 : vector<48x32xf32>
    %26 = vector.broadcast %7 : vector<1x32xf32> to vector<48x32xf32>
    %27 = arith.mulf %25, %26 : vector<48x32xf32>
    %28 = vector.broadcast %9 : vector<1x32xf32> to vector<48x32xf32>
    %29 = arith.addf %27, %28 : vector<48x32xf32>
    %30 = arith.truncf %29 : vector<48x32xf32> to vector<48x32xbf16>
    %c0_18 = arith.constant 0 : index
    %c0_19 = arith.constant 0 : index
    %c0_20 = arith.constant 0 : index
    %31 = vector.load %arg6[%c0_18, %c0_19, %c0_20] : memref<2x32x96xbf16, #tpu.memory_space<vmem>>, vector<1x32x96xbf16>
    %32 = vector.shape_cast %31 : vector<1x32x96xbf16> to vector<32x96xbf16>
    %cst_21 = arith.constant dense<0.000000e+00> : vector<48x96xf32>
    %33 = tpu.matmul %30, %32, %cst_21 {dimension_numbers = #tpu.dot_dimension_numbers<[1], [0], [0], [1], [0, 0, 1, 1], [], []>} : vector<48x32xbf16>, vector<32x96xbf16>, vector<48x96xf32> -> vector<48x96xf32>
    %c0_22 = arith.constant 0 : index
    %c0_23 = arith.constant 0 : index
    %c0_24 = arith.constant 0 : index
    %34 = vector.load %arg7[%c0_22, %c0_23, %c0_24] : memref<2x1x96xf32, #tpu.memory_space<vmem>>, vector<1x1x96xf32>
    %35 = vector.shape_cast %34 : vector<1x1x96xf32> to vector<1x96xf32>
    %36 = vector.broadcast %35 : vector<1x96xf32> to vector<48x96xf32>
    %37 = arith.addf %33, %36 : vector<48x96xf32>
    %cst_25 = arith.constant 0.000000e+00 : f32
    %38 = vector.broadcast %cst_25 : f32 to vector<48x32xf32>
    %39 = vector.extract_strided_slice %37 {offsets = [0, 0], sizes = [48, 8], strides = [1, 1]} : vector<48x96xf32> to vector<48x8xf32>
    %40 = arith.truncf %39 : vector<48x8xf32> to vector<48x8xbf16>
    %41 = vector.extract_strided_slice %37 {offsets = [0, 32], sizes = [48, 8], strides = [1, 1]} : vector<48x96xf32> to vector<48x8xf32>
    %42 = arith.truncf %41 : vector<48x8xf32> to vector<48x8xbf16>
    %43 = vector.extract_strided_slice %37 {offsets = [0, 64], sizes = [48, 8], strides = [1, 1]} : vector<48x96xf32> to vector<48x8xf32>
    %44 = arith.truncf %43 : vector<48x8xf32> to vector<48x8xbf16>
    %cst_26 = arith.constant dense<0.000000e+00> : vector<48x48xf32>
    %45 = tpu.matmul %40, %42, %cst_26 {dimension_numbers = #tpu.dot_dimension_numbers<[1], [1], [0], [0], [0, 0, 1, 0], [], []>} : vector<48x8xbf16>, vector<48x8xbf16>, vector<48x48xf32> -> vector<48x48xf32>
    %46 = arith.addf %45, %0 : vector<48x48xf32>
    %cst_27 = arith.constant dense<0xFF800000> : vector<48xf32>
    %47 = vector.multi_reduction <maximumf>, %46, %cst_27 [1] : vector<48x48xf32> to vector<48xf32>
    %48 = vector.shape_cast %47 : vector<48xf32> to vector<48x1xf32>
    %49 = vector.broadcast %48 : vector<48x1xf32> to vector<48x48xf32>
    %50 = arith.subf %46, %49 : vector<48x48xf32>
    %51 = math.exp %50 : vector<48x48xf32>
    %cst_28 = arith.constant dense<0.000000e+00> : vector<48xf32>
    %52 = vector.multi_reduction <add>, %51, %cst_28 [1] : vector<48x48xf32> to vector<48xf32>
    %53 = vector.shape_cast %52 : vector<48xf32> to vector<48x1xf32>
    %54 = tpu.reciprocal %53 {approx = true} : vector<48x1xf32> -> vector<48x1xf32>
    %55 = arith.truncf %51 : vector<48x48xf32> to vector<48x48xbf16>
    %cst_29 = arith.constant dense<0.000000e+00> : vector<48x8xf32>
    %56 = tpu.matmul %55, %44, %cst_29 {dimension_numbers = #tpu.dot_dimension_numbers<[1], [0], [0], [1], [0, 0, 1, 1], [], []>} : vector<48x48xbf16>, vector<48x8xbf16>, vector<48x8xf32> -> vector<48x8xf32>
    %57 = vector.broadcast %54 : vector<48x1xf32> to vector<48x8xf32>
    %58 = arith.mulf %56, %57 : vector<48x8xf32>
    %c0_30 = arith.constant 0 : index
    %c0_31 = arith.constant 0 : index
    %c0_32 = arith.constant 0 : index
    %59 = vector.load %arg8[%c0_30, %c0_31, %c0_32] : memref<8x8x32xf32, #tpu.memory_space<vmem>>, vector<1x8x32xf32>
    %60 = vector.shape_cast %59 : vector<1x8x32xf32> to vector<8x32xf32>
    %cst_33 = arith.constant dense<0.000000e+00> : vector<48x32xf32>
    %61 = tpu.matmul %58, %60, %cst_33 {dimension_numbers = #tpu.dot_dimension_numbers<[1], [0], [0], [1], [0, 0, 1, 1], [], []>} : vector<48x8xf32>, vector<8x32xf32>, vector<48x32xf32> -> vector<48x32xf32>
    %62 = arith.addf %38, %61 : vector<48x32xf32>
    %63 = vector.extract_strided_slice %37 {offsets = [0, 8], sizes = [48, 8], strides = [1, 1]} : vector<48x96xf32> to vector<48x8xf32>
    %64 = arith.truncf %63 : vector<48x8xf32> to vector<48x8xbf16>
    %65 = vector.extract_strided_slice %37 {offsets = [0, 40], sizes = [48, 8], strides = [1, 1]} : vector<48x96xf32> to vector<48x8xf32>
    %66 = arith.truncf %65 : vector<48x8xf32> to vector<48x8xbf16>
    %67 = vector.extract_strided_slice %37 {offsets = [0, 72], sizes = [48, 8], strides = [1, 1]} : vector<48x96xf32> to vector<48x8xf32>
    %68 = arith.truncf %67 : vector<48x8xf32> to vector<48x8xbf16>
    %cst_34 = arith.constant dense<0.000000e+00> : vector<48x48xf32>
    %69 = tpu.matmul %64, %66, %cst_34 {dimension_numbers = #tpu.dot_dimension_numbers<[1], [1], [0], [0], [0, 0, 1, 0], [], []>} : vector<48x8xbf16>, vector<48x8xbf16>, vector<48x48xf32> -> vector<48x48xf32>
    %70 = arith.addf %69, %0 : vector<48x48xf32>
    %cst_35 = arith.constant dense<0xFF800000> : vector<48xf32>
    %71 = vector.multi_reduction <maximumf>, %70, %cst_35 [1] : vector<48x48xf32> to vector<48xf32>
    %72 = vector.shape_cast %71 : vector<48xf32> to vector<48x1xf32>
    %73 = vector.broadcast %72 : vector<48x1xf32> to vector<48x48xf32>
    %74 = arith.subf %70, %73 : vector<48x48xf32>
    %75 = math.exp %74 : vector<48x48xf32>
    %cst_36 = arith.constant dense<0.000000e+00> : vector<48xf32>
    %76 = vector.multi_reduction <add>, %75, %cst_36 [1] : vector<48x48xf32> to vector<48xf32>
    %77 = vector.shape_cast %76 : vector<48xf32> to vector<48x1xf32>
    %78 = tpu.reciprocal %77 {approx = true} : vector<48x1xf32> -> vector<48x1xf32>
    %79 = arith.truncf %75 : vector<48x48xf32> to vector<48x48xbf16>
    %cst_37 = arith.constant dense<0.000000e+00> : vector<48x8xf32>
    %80 = tpu.matmul %79, %68, %cst_37 {dimension_numbers = #tpu.dot_dimension_numbers<[1], [0], [0], [1], [0, 0, 1, 1], [], []>} : vector<48x48xbf16>, vector<48x8xbf16>, vector<48x8xf32> -> vector<48x8xf32>
    %81 = vector.broadcast %78 : vector<48x1xf32> to vector<48x8xf32>
    %82 = arith.mulf %80, %81 : vector<48x8xf32>
    %c1 = arith.constant 1 : index
    %c0_38 = arith.constant 0 : index
    %c0_39 = arith.constant 0 : index
    %83 = vector.load %arg8[%c1, %c0_38, %c0_39] : memref<8x8x32xf32, #tpu.memory_space<vmem>>, vector<1x8x32xf32>
    %84 = vector.shape_cast %83 : vector<1x8x32xf32> to vector<8x32xf32>
    %cst_40 = arith.constant dense<0.000000e+00> : vector<48x32xf32>
    %85 = tpu.matmul %82, %84, %cst_40 {dimension_numbers = #tpu.dot_dimension_numbers<[1], [0], [0], [1], [0, 0, 1, 1], [], []>} : vector<48x8xf32>, vector<8x32xf32>, vector<48x32xf32> -> vector<48x32xf32>
    %86 = arith.addf %62, %85 : vector<48x32xf32>
    %87 = vector.extract_strided_slice %37 {offsets = [0, 16], sizes = [48, 8], strides = [1, 1]} : vector<48x96xf32> to vector<48x8xf32>
    %88 = arith.truncf %87 : vector<48x8xf32> to vector<48x8xbf16>
    %89 = vector.extract_strided_slice %37 {offsets = [0, 48], sizes = [48, 8], strides = [1, 1]} : vector<48x96xf32> to vector<48x8xf32>
    %90 = arith.truncf %89 : vector<48x8xf32> to vector<48x8xbf16>
    %91 = vector.extract_strided_slice %37 {offsets = [0, 80], sizes = [48, 8], strides = [1, 1]} : vector<48x96xf32> to vector<48x8xf32>
    %92 = arith.truncf %91 : vector<48x8xf32> to vector<48x8xbf16>
    %cst_41 = arith.constant dense<0.000000e+00> : vector<48x48xf32>
    %93 = tpu.matmul %88, %90, %cst_41 {dimension_numbers = #tpu.dot_dimension_numbers<[1], [1], [0], [0], [0, 0, 1, 0], [], []>} : vector<48x8xbf16>, vector<48x8xbf16>, vector<48x48xf32> -> vector<48x48xf32>
    %94 = arith.addf %93, %0 : vector<48x48xf32>
    %cst_42 = arith.constant dense<0xFF800000> : vector<48xf32>
    %95 = vector.multi_reduction <maximumf>, %94, %cst_42 [1] : vector<48x48xf32> to vector<48xf32>
    %96 = vector.shape_cast %95 : vector<48xf32> to vector<48x1xf32>
    %97 = vector.broadcast %96 : vector<48x1xf32> to vector<48x48xf32>
    %98 = arith.subf %94, %97 : vector<48x48xf32>
    %99 = math.exp %98 : vector<48x48xf32>
    %cst_43 = arith.constant dense<0.000000e+00> : vector<48xf32>
    %100 = vector.multi_reduction <add>, %99, %cst_43 [1] : vector<48x48xf32> to vector<48xf32>
    %101 = vector.shape_cast %100 : vector<48xf32> to vector<48x1xf32>
    %102 = tpu.reciprocal %101 {approx = true} : vector<48x1xf32> -> vector<48x1xf32>
    %103 = arith.truncf %99 : vector<48x48xf32> to vector<48x48xbf16>
    %cst_44 = arith.constant dense<0.000000e+00> : vector<48x8xf32>
    %104 = tpu.matmul %103, %92, %cst_44 {dimension_numbers = #tpu.dot_dimension_numbers<[1], [0], [0], [1], [0, 0, 1, 1], [], []>} : vector<48x48xbf16>, vector<48x8xbf16>, vector<48x8xf32> -> vector<48x8xf32>
    %105 = vector.broadcast %102 : vector<48x1xf32> to vector<48x8xf32>
    %106 = arith.mulf %104, %105 : vector<48x8xf32>
    %c2 = arith.constant 2 : index
    %c0_45 = arith.constant 0 : index
    %c0_46 = arith.constant 0 : index
    %107 = vector.load %arg8[%c2, %c0_45, %c0_46] : memref<8x8x32xf32, #tpu.memory_space<vmem>>, vector<1x8x32xf32>
    %108 = vector.shape_cast %107 : vector<1x8x32xf32> to vector<8x32xf32>
    %cst_47 = arith.constant dense<0.000000e+00> : vector<48x32xf32>
    %109 = tpu.matmul %106, %108, %cst_47 {dimension_numbers = #tpu.dot_dimension_numbers<[1], [0], [0], [1], [0, 0, 1, 1], [], []>} : vector<48x8xf32>, vector<8x32xf32>, vector<48x32xf32> -> vector<48x32xf32>
    %110 = arith.addf %86, %109 : vector<48x32xf32>
    %111 = vector.extract_strided_slice %37 {offsets = [0, 24], sizes = [48, 8], strides = [1, 1]} : vector<48x96xf32> to vector<48x8xf32>
    %112 = arith.truncf %111 : vector<48x8xf32> to vector<48x8xbf16>
    %113 = vector.extract_strided_slice %37 {offsets = [0, 56], sizes = [48, 8], strides = [1, 1]} : vector<48x96xf32> to vector<48x8xf32>
    %114 = arith.truncf %113 : vector<48x8xf32> to vector<48x8xbf16>
    %115 = vector.extract_strided_slice %37 {offsets = [0, 88], sizes = [48, 8], strides = [1, 1]} : vector<48x96xf32> to vector<48x8xf32>
    %116 = arith.truncf %115 : vector<48x8xf32> to vector<48x8xbf16>
    %cst_48 = arith.constant dense<0.000000e+00> : vector<48x48xf32>
    %117 = tpu.matmul %112, %114, %cst_48 {dimension_numbers = #tpu.dot_dimension_numbers<[1], [1], [0], [0], [0, 0, 1, 0], [], []>} : vector<48x8xbf16>, vector<48x8xbf16>, vector<48x48xf32> -> vector<48x48xf32>
    %118 = arith.addf %117, %0 : vector<48x48xf32>
    %cst_49 = arith.constant dense<0xFF800000> : vector<48xf32>
    %119 = vector.multi_reduction <maximumf>, %118, %cst_49 [1] : vector<48x48xf32> to vector<48xf32>
    %120 = vector.shape_cast %119 : vector<48xf32> to vector<48x1xf32>
    %121 = vector.broadcast %120 : vector<48x1xf32> to vector<48x48xf32>
    %122 = arith.subf %118, %121 : vector<48x48xf32>
    %123 = math.exp %122 : vector<48x48xf32>
    %cst_50 = arith.constant dense<0.000000e+00> : vector<48xf32>
    %124 = vector.multi_reduction <add>, %123, %cst_50 [1] : vector<48x48xf32> to vector<48xf32>
    %125 = vector.shape_cast %124 : vector<48xf32> to vector<48x1xf32>
    %126 = tpu.reciprocal %125 {approx = true} : vector<48x1xf32> -> vector<48x1xf32>
    %127 = arith.truncf %123 : vector<48x48xf32> to vector<48x48xbf16>
    %cst_51 = arith.constant dense<0.000000e+00> : vector<48x8xf32>
    %128 = tpu.matmul %127, %116, %cst_51 {dimension_numbers = #tpu.dot_dimension_numbers<[1], [0], [0], [1], [0, 0, 1, 1], [], []>} : vector<48x48xbf16>, vector<48x8xbf16>, vector<48x8xf32> -> vector<48x8xf32>
    %129 = vector.broadcast %126 : vector<48x1xf32> to vector<48x8xf32>
    %130 = arith.mulf %128, %129 : vector<48x8xf32>
    %c3 = arith.constant 3 : index
    %c0_52 = arith.constant 0 : index
    %c0_53 = arith.constant 0 : index
    %131 = vector.load %arg8[%c3, %c0_52, %c0_53] : memref<8x8x32xf32, #tpu.memory_space<vmem>>, vector<1x8x32xf32>
    %132 = vector.shape_cast %131 : vector<1x8x32xf32> to vector<8x32xf32>
    %cst_54 = arith.constant dense<0.000000e+00> : vector<48x32xf32>
    %133 = tpu.matmul %130, %132, %cst_54 {dimension_numbers = #tpu.dot_dimension_numbers<[1], [0], [0], [1], [0, 0, 1, 1], [], []>} : vector<48x8xf32>, vector<8x32xf32>, vector<48x32xf32> -> vector<48x32xf32>
    %134 = arith.addf %110, %133 : vector<48x32xf32>
    %135 = arith.addf %5, %134 : vector<48x32xf32>
    %c0_55 = arith.constant 0 : index
    %c0_56 = arith.constant 0 : index
    %c0_57 = arith.constant 0 : index
    %136 = vector.load %arg9[%c0_55, %c0_56, %c0_57] : memref<2x1x32xf32, #tpu.memory_space<vmem>>, vector<1x1x32xf32>
    %137 = vector.shape_cast %136 : vector<1x1x32xf32> to vector<1x32xf32>
    %138 = vector.broadcast %137 : vector<1x32xf32> to vector<48x32xf32>
    %139 = arith.addf %135, %138 : vector<48x32xf32>
    %c0_58 = arith.constant 0 : index
    %c0_59 = arith.constant 0 : index
    %c0_60 = arith.constant 0 : index
    %140 = vector.load %arg10[%c0_58, %c0_59, %c0_60] : memref<2x1x32xf32, #tpu.memory_space<vmem>>, vector<1x1x32xf32>
    %141 = vector.shape_cast %140 : vector<1x1x32xf32> to vector<1x32xf32>
    %c0_61 = arith.constant 0 : index
    %c0_62 = arith.constant 0 : index
    %c0_63 = arith.constant 0 : index
    %142 = vector.load %arg11[%c0_61, %c0_62, %c0_63] : memref<2x1x32xf32, #tpu.memory_space<vmem>>, vector<1x1x32xf32>
    %143 = vector.shape_cast %142 : vector<1x1x32xf32> to vector<1x32xf32>
    %cst_64 = arith.constant dense<0.000000e+00> : vector<48xf32>
    %144 = vector.multi_reduction <add>, %139, %cst_64 [1] : vector<48x32xf32> to vector<48xf32>
    %145 = vector.shape_cast %144 : vector<48xf32> to vector<48x1xf32>
    %cst_65 = arith.constant 3.200000e+01 : f32
    %146 = vector.broadcast %cst_65 : f32 to vector<48x1xf32>
    %147 = arith.divf %145, %146 : vector<48x1xf32>
    %148 = vector.broadcast %147 : vector<48x1xf32> to vector<48x32xf32>
    %149 = arith.subf %139, %148 : vector<48x32xf32>
    %150 = arith.mulf %149, %149 : vector<48x32xf32>
    %cst_66 = arith.constant dense<0.000000e+00> : vector<48xf32>
    %151 = vector.multi_reduction <add>, %150, %cst_66 [1] : vector<48x32xf32> to vector<48xf32>
    %152 = vector.shape_cast %151 : vector<48xf32> to vector<48x1xf32>
    %cst_67 = arith.constant 3.200000e+01 : f32
    %153 = vector.broadcast %cst_67 : f32 to vector<48x1xf32>
    %154 = arith.divf %152, %153 : vector<48x1xf32>
    %cst_68 = arith.constant 9.99999997E-7 : f32
    %155 = vector.broadcast %cst_68 : f32 to vector<48x1xf32>
    %156 = arith.addf %154, %155 : vector<48x1xf32>
    %157 = math.rsqrt %156 : vector<48x1xf32>
    %158 = vector.broadcast %157 : vector<48x1xf32> to vector<48x32xf32>
    %159 = arith.mulf %149, %158 : vector<48x32xf32>
    %160 = vector.broadcast %141 : vector<1x32xf32> to vector<48x32xf32>
    %161 = arith.mulf %159, %160 : vector<48x32xf32>
    %162 = vector.broadcast %143 : vector<1x32xf32> to vector<48x32xf32>
    %163 = arith.addf %161, %162 : vector<48x32xf32>
    %164 = arith.truncf %163 : vector<48x32xf32> to vector<48x32xbf16>
    %c0_69 = arith.constant 0 : index
    %c0_70 = arith.constant 0 : index
    %c0_71 = arith.constant 0 : index
    %165 = vector.load %arg12[%c0_69, %c0_70, %c0_71] : memref<2x32x64xbf16, #tpu.memory_space<vmem>>, vector<1x32x64xbf16>
    %166 = vector.shape_cast %165 : vector<1x32x64xbf16> to vector<32x64xbf16>
    %cst_72 = arith.constant dense<0.000000e+00> : vector<48x64xf32>
    %167 = tpu.matmul %164, %166, %cst_72 {dimension_numbers = #tpu.dot_dimension_numbers<[1], [0], [0], [1], [0, 0, 1, 1], [], []>} : vector<48x32xbf16>, vector<32x64xbf16>, vector<48x64xf32> -> vector<48x64xf32>
    %c0_73 = arith.constant 0 : index
    %c0_74 = arith.constant 0 : index
    %c0_75 = arith.constant 0 : index
    %168 = vector.load %arg13[%c0_73, %c0_74, %c0_75] : memref<2x1x64xf32, #tpu.memory_space<vmem>>, vector<1x1x64xf32>
    %169 = vector.shape_cast %168 : vector<1x1x64xf32> to vector<1x64xf32>
    %170 = vector.broadcast %169 : vector<1x64xf32> to vector<48x64xf32>
    %171 = arith.addf %167, %170 : vector<48x64xf32>
    %172 = arith.mulf %171, %171 : vector<48x64xf32>
    %173 = arith.mulf %171, %172 : vector<48x64xf32>
    %cst_76 = arith.constant 4.471500e-02 : f32
    %174 = vector.broadcast %cst_76 : f32 to vector<48x64xf32>
    %175 = arith.mulf %174, %173 : vector<48x64xf32>
    %176 = arith.addf %171, %175 : vector<48x64xf32>
    %cst_77 = arith.constant 0.797884583 : f32
    %177 = vector.broadcast %cst_77 : f32 to vector<48x64xf32>
    %178 = arith.mulf %177, %176 : vector<48x64xf32>
    %179 = math.tanh %178 : vector<48x64xf32>
    %cst_78 = arith.constant 1.000000e+00 : f32
    %180 = vector.broadcast %cst_78 : f32 to vector<48x64xf32>
    %181 = arith.addf %180, %179 : vector<48x64xf32>
    %cst_79 = arith.constant 5.000000e-01 : f32
    %182 = vector.broadcast %cst_79 : f32 to vector<48x64xf32>
    %183 = arith.mulf %182, %181 : vector<48x64xf32>
    %184 = arith.mulf %171, %183 : vector<48x64xf32>
    %185 = arith.truncf %184 : vector<48x64xf32> to vector<48x64xbf16>
    %c0_80 = arith.constant 0 : index
    %c0_81 = arith.constant 0 : index
    %c0_82 = arith.constant 0 : index
    %186 = vector.load %arg14[%c0_80, %c0_81, %c0_82] : memref<2x64x32xbf16, #tpu.memory_space<vmem>>, vector<1x64x32xbf16>
    %187 = vector.shape_cast %186 : vector<1x64x32xbf16> to vector<64x32xbf16>
    %cst_83 = arith.constant dense<0.000000e+00> : vector<48x32xf32>
    %188 = tpu.matmul %185, %187, %cst_83 {dimension_numbers = #tpu.dot_dimension_numbers<[1], [0], [0], [1], [0, 0, 1, 1], [], []>} : vector<48x64xbf16>, vector<64x32xbf16>, vector<48x32xf32> -> vector<48x32xf32>
    %189 = arith.addf %139, %188 : vector<48x32xf32>
    %c0_84 = arith.constant 0 : index
    %c0_85 = arith.constant 0 : index
    %c0_86 = arith.constant 0 : index
    %190 = vector.load %arg15[%c0_84, %c0_85, %c0_86] : memref<2x1x32xf32, #tpu.memory_space<vmem>>, vector<1x1x32xf32>
    %191 = vector.shape_cast %190 : vector<1x1x32xf32> to vector<1x32xf32>
    %192 = vector.broadcast %191 : vector<1x32xf32> to vector<48x32xf32>
    %193 = arith.addf %189, %192 : vector<48x32xf32>
    %c1_87 = arith.constant 1 : index
    %c0_88 = arith.constant 0 : index
    %c0_89 = arith.constant 0 : index
    %194 = vector.load %arg4[%c1_87, %c0_88, %c0_89] : memref<2x1x32xf32, #tpu.memory_space<vmem>>, vector<1x1x32xf32>
    %195 = vector.shape_cast %194 : vector<1x1x32xf32> to vector<1x32xf32>
    %c1_90 = arith.constant 1 : index
    %c0_91 = arith.constant 0 : index
    %c0_92 = arith.constant 0 : index
    %196 = vector.load %arg5[%c1_90, %c0_91, %c0_92] : memref<2x1x32xf32, #tpu.memory_space<vmem>>, vector<1x1x32xf32>
    %197 = vector.shape_cast %196 : vector<1x1x32xf32> to vector<1x32xf32>
    %cst_93 = arith.constant dense<0.000000e+00> : vector<48xf32>
    %198 = vector.multi_reduction <add>, %193, %cst_93 [1] : vector<48x32xf32> to vector<48xf32>
    %199 = vector.shape_cast %198 : vector<48xf32> to vector<48x1xf32>
    %cst_94 = arith.constant 3.200000e+01 : f32
    %200 = vector.broadcast %cst_94 : f32 to vector<48x1xf32>
    %201 = arith.divf %199, %200 : vector<48x1xf32>
    %202 = vector.broadcast %201 : vector<48x1xf32> to vector<48x32xf32>
    %203 = arith.subf %193, %202 : vector<48x32xf32>
    %204 = arith.mulf %203, %203 : vector<48x32xf32>
    %cst_95 = arith.constant dense<0.000000e+00> : vector<48xf32>
    %205 = vector.multi_reduction <add>, %204, %cst_95 [1] : vector<48x32xf32> to vector<48xf32>
    %206 = vector.shape_cast %205 : vector<48xf32> to vector<48x1xf32>
    %cst_96 = arith.constant 3.200000e+01 : f32
    %207 = vector.broadcast %cst_96 : f32 to vector<48x1xf32>
    %208 = arith.divf %206, %207 : vector<48x1xf32>
    %cst_97 = arith.constant 9.99999997E-7 : f32
    %209 = vector.broadcast %cst_97 : f32 to vector<48x1xf32>
    %210 = arith.addf %208, %209 : vector<48x1xf32>
    %211 = math.rsqrt %210 : vector<48x1xf32>
    %212 = vector.broadcast %211 : vector<48x1xf32> to vector<48x32xf32>
    %213 = arith.mulf %203, %212 : vector<48x32xf32>
    %214 = vector.broadcast %195 : vector<1x32xf32> to vector<48x32xf32>
    %215 = arith.mulf %213, %214 : vector<48x32xf32>
    %216 = vector.broadcast %197 : vector<1x32xf32> to vector<48x32xf32>
    %217 = arith.addf %215, %216 : vector<48x32xf32>
    %218 = arith.truncf %217 : vector<48x32xf32> to vector<48x32xbf16>
    %c1_98 = arith.constant 1 : index
    %c0_99 = arith.constant 0 : index
    %c0_100 = arith.constant 0 : index
    %219 = vector.load %arg6[%c1_98, %c0_99, %c0_100] : memref<2x32x96xbf16, #tpu.memory_space<vmem>>, vector<1x32x96xbf16>
    %220 = vector.shape_cast %219 : vector<1x32x96xbf16> to vector<32x96xbf16>
    %cst_101 = arith.constant dense<0.000000e+00> : vector<48x96xf32>
    %221 = tpu.matmul %218, %220, %cst_101 {dimension_numbers = #tpu.dot_dimension_numbers<[1], [0], [0], [1], [0, 0, 1, 1], [], []>} : vector<48x32xbf16>, vector<32x96xbf16>, vector<48x96xf32> -> vector<48x96xf32>
    %c1_102 = arith.constant 1 : index
    %c0_103 = arith.constant 0 : index
    %c0_104 = arith.constant 0 : index
    %222 = vector.load %arg7[%c1_102, %c0_103, %c0_104] : memref<2x1x96xf32, #tpu.memory_space<vmem>>, vector<1x1x96xf32>
    %223 = vector.shape_cast %222 : vector<1x1x96xf32> to vector<1x96xf32>
    %224 = vector.broadcast %223 : vector<1x96xf32> to vector<48x96xf32>
    %225 = arith.addf %221, %224 : vector<48x96xf32>
    %cst_105 = arith.constant 0.000000e+00 : f32
    %226 = vector.broadcast %cst_105 : f32 to vector<48x32xf32>
    %227 = vector.extract_strided_slice %225 {offsets = [0, 0], sizes = [48, 8], strides = [1, 1]} : vector<48x96xf32> to vector<48x8xf32>
    %228 = arith.truncf %227 : vector<48x8xf32> to vector<48x8xbf16>
    %229 = vector.extract_strided_slice %225 {offsets = [0, 32], sizes = [48, 8], strides = [1, 1]} : vector<48x96xf32> to vector<48x8xf32>
    %230 = arith.truncf %229 : vector<48x8xf32> to vector<48x8xbf16>
    %231 = vector.extract_strided_slice %225 {offsets = [0, 64], sizes = [48, 8], strides = [1, 1]} : vector<48x96xf32> to vector<48x8xf32>
    %232 = arith.truncf %231 : vector<48x8xf32> to vector<48x8xbf16>
    %cst_106 = arith.constant dense<0.000000e+00> : vector<48x48xf32>
    %233 = tpu.matmul %228, %230, %cst_106 {dimension_numbers = #tpu.dot_dimension_numbers<[1], [1], [0], [0], [0, 0, 1, 0], [], []>} : vector<48x8xbf16>, vector<48x8xbf16>, vector<48x48xf32> -> vector<48x48xf32>
    %234 = arith.addf %233, %0 : vector<48x48xf32>
    %cst_107 = arith.constant dense<0xFF800000> : vector<48xf32>
    %235 = vector.multi_reduction <maximumf>, %234, %cst_107 [1] : vector<48x48xf32> to vector<48xf32>
    %236 = vector.shape_cast %235 : vector<48xf32> to vector<48x1xf32>
    %237 = vector.broadcast %236 : vector<48x1xf32> to vector<48x48xf32>
    %238 = arith.subf %234, %237 : vector<48x48xf32>
    %239 = math.exp %238 : vector<48x48xf32>
    %cst_108 = arith.constant dense<0.000000e+00> : vector<48xf32>
    %240 = vector.multi_reduction <add>, %239, %cst_108 [1] : vector<48x48xf32> to vector<48xf32>
    %241 = vector.shape_cast %240 : vector<48xf32> to vector<48x1xf32>
    %242 = tpu.reciprocal %241 {approx = true} : vector<48x1xf32> -> vector<48x1xf32>
    %243 = arith.truncf %239 : vector<48x48xf32> to vector<48x48xbf16>
    %cst_109 = arith.constant dense<0.000000e+00> : vector<48x8xf32>
    %244 = tpu.matmul %243, %232, %cst_109 {dimension_numbers = #tpu.dot_dimension_numbers<[1], [0], [0], [1], [0, 0, 1, 1], [], []>} : vector<48x48xbf16>, vector<48x8xbf16>, vector<48x8xf32> -> vector<48x8xf32>
    %245 = vector.broadcast %242 : vector<48x1xf32> to vector<48x8xf32>
    %246 = arith.mulf %244, %245 : vector<48x8xf32>
    %c4 = arith.constant 4 : index
    %c0_110 = arith.constant 0 : index
    %c0_111 = arith.constant 0 : index
    %247 = vector.load %arg8[%c4, %c0_110, %c0_111] : memref<8x8x32xf32, #tpu.memory_space<vmem>>, vector<1x8x32xf32>
    %248 = vector.shape_cast %247 : vector<1x8x32xf32> to vector<8x32xf32>
    %cst_112 = arith.constant dense<0.000000e+00> : vector<48x32xf32>
    %249 = tpu.matmul %246, %248, %cst_112 {dimension_numbers = #tpu.dot_dimension_numbers<[1], [0], [0], [1], [0, 0, 1, 1], [], []>} : vector<48x8xf32>, vector<8x32xf32>, vector<48x32xf32> -> vector<48x32xf32>
    %250 = arith.addf %226, %249 : vector<48x32xf32>
    %251 = vector.extract_strided_slice %225 {offsets = [0, 8], sizes = [48, 8], strides = [1, 1]} : vector<48x96xf32> to vector<48x8xf32>
    %252 = arith.truncf %251 : vector<48x8xf32> to vector<48x8xbf16>
    %253 = vector.extract_strided_slice %225 {offsets = [0, 40], sizes = [48, 8], strides = [1, 1]} : vector<48x96xf32> to vector<48x8xf32>
    %254 = arith.truncf %253 : vector<48x8xf32> to vector<48x8xbf16>
    %255 = vector.extract_strided_slice %225 {offsets = [0, 72], sizes = [48, 8], strides = [1, 1]} : vector<48x96xf32> to vector<48x8xf32>
    %256 = arith.truncf %255 : vector<48x8xf32> to vector<48x8xbf16>
    %cst_113 = arith.constant dense<0.000000e+00> : vector<48x48xf32>
    %257 = tpu.matmul %252, %254, %cst_113 {dimension_numbers = #tpu.dot_dimension_numbers<[1], [1], [0], [0], [0, 0, 1, 0], [], []>} : vector<48x8xbf16>, vector<48x8xbf16>, vector<48x48xf32> -> vector<48x48xf32>
    %258 = arith.addf %257, %0 : vector<48x48xf32>
    %cst_114 = arith.constant dense<0xFF800000> : vector<48xf32>
    %259 = vector.multi_reduction <maximumf>, %258, %cst_114 [1] : vector<48x48xf32> to vector<48xf32>
    %260 = vector.shape_cast %259 : vector<48xf32> to vector<48x1xf32>
    %261 = vector.broadcast %260 : vector<48x1xf32> to vector<48x48xf32>
    %262 = arith.subf %258, %261 : vector<48x48xf32>
    %263 = math.exp %262 : vector<48x48xf32>
    %cst_115 = arith.constant dense<0.000000e+00> : vector<48xf32>
    %264 = vector.multi_reduction <add>, %263, %cst_115 [1] : vector<48x48xf32> to vector<48xf32>
    %265 = vector.shape_cast %264 : vector<48xf32> to vector<48x1xf32>
    %266 = tpu.reciprocal %265 {approx = true} : vector<48x1xf32> -> vector<48x1xf32>
    %267 = arith.truncf %263 : vector<48x48xf32> to vector<48x48xbf16>
    %cst_116 = arith.constant dense<0.000000e+00> : vector<48x8xf32>
    %268 = tpu.matmul %267, %256, %cst_116 {dimension_numbers = #tpu.dot_dimension_numbers<[1], [0], [0], [1], [0, 0, 1, 1], [], []>} : vector<48x48xbf16>, vector<48x8xbf16>, vector<48x8xf32> -> vector<48x8xf32>
    %269 = vector.broadcast %266 : vector<48x1xf32> to vector<48x8xf32>
    %270 = arith.mulf %268, %269 : vector<48x8xf32>
    %c5 = arith.constant 5 : index
    %c0_117 = arith.constant 0 : index
    %c0_118 = arith.constant 0 : index
    %271 = vector.load %arg8[%c5, %c0_117, %c0_118] : memref<8x8x32xf32, #tpu.memory_space<vmem>>, vector<1x8x32xf32>
    %272 = vector.shape_cast %271 : vector<1x8x32xf32> to vector<8x32xf32>
    %cst_119 = arith.constant dense<0.000000e+00> : vector<48x32xf32>
    %273 = tpu.matmul %270, %272, %cst_119 {dimension_numbers = #tpu.dot_dimension_numbers<[1], [0], [0], [1], [0, 0, 1, 1], [], []>} : vector<48x8xf32>, vector<8x32xf32>, vector<48x32xf32> -> vector<48x32xf32>
    %274 = arith.addf %250, %273 : vector<48x32xf32>
    %275 = vector.extract_strided_slice %225 {offsets = [0, 16], sizes = [48, 8], strides = [1, 1]} : vector<48x96xf32> to vector<48x8xf32>
    %276 = arith.truncf %275 : vector<48x8xf32> to vector<48x8xbf16>
    %277 = vector.extract_strided_slice %225 {offsets = [0, 48], sizes = [48, 8], strides = [1, 1]} : vector<48x96xf32> to vector<48x8xf32>
    %278 = arith.truncf %277 : vector<48x8xf32> to vector<48x8xbf16>
    %279 = vector.extract_strided_slice %225 {offsets = [0, 80], sizes = [48, 8], strides = [1, 1]} : vector<48x96xf32> to vector<48x8xf32>
    %280 = arith.truncf %279 : vector<48x8xf32> to vector<48x8xbf16>
    %cst_120 = arith.constant dense<0.000000e+00> : vector<48x48xf32>
    %281 = tpu.matmul %276, %278, %cst_120 {dimension_numbers = #tpu.dot_dimension_numbers<[1], [1], [0], [0], [0, 0, 1, 0], [], []>} : vector<48x8xbf16>, vector<48x8xbf16>, vector<48x48xf32> -> vector<48x48xf32>
    %282 = arith.addf %281, %0 : vector<48x48xf32>
    %cst_121 = arith.constant dense<0xFF800000> : vector<48xf32>
    %283 = vector.multi_reduction <maximumf>, %282, %cst_121 [1] : vector<48x48xf32> to vector<48xf32>
    %284 = vector.shape_cast %283 : vector<48xf32> to vector<48x1xf32>
    %285 = vector.broadcast %284 : vector<48x1xf32> to vector<48x48xf32>
    %286 = arith.subf %282, %285 : vector<48x48xf32>
    %287 = math.exp %286 : vector<48x48xf32>
    %cst_122 = arith.constant dense<0.000000e+00> : vector<48xf32>
    %288 = vector.multi_reduction <add>, %287, %cst_122 [1] : vector<48x48xf32> to vector<48xf32>
    %289 = vector.shape_cast %288 : vector<48xf32> to vector<48x1xf32>
    %290 = tpu.reciprocal %289 {approx = true} : vector<48x1xf32> -> vector<48x1xf32>
    %291 = arith.truncf %287 : vector<48x48xf32> to vector<48x48xbf16>
    %cst_123 = arith.constant dense<0.000000e+00> : vector<48x8xf32>
    %292 = tpu.matmul %291, %280, %cst_123 {dimension_numbers = #tpu.dot_dimension_numbers<[1], [0], [0], [1], [0, 0, 1, 1], [], []>} : vector<48x48xbf16>, vector<48x8xbf16>, vector<48x8xf32> -> vector<48x8xf32>
    %293 = vector.broadcast %290 : vector<48x1xf32> to vector<48x8xf32>
    %294 = arith.mulf %292, %293 : vector<48x8xf32>
    %c6 = arith.constant 6 : index
    %c0_124 = arith.constant 0 : index
    %c0_125 = arith.constant 0 : index
    %295 = vector.load %arg8[%c6, %c0_124, %c0_125] : memref<8x8x32xf32, #tpu.memory_space<vmem>>, vector<1x8x32xf32>
    %296 = vector.shape_cast %295 : vector<1x8x32xf32> to vector<8x32xf32>
    %cst_126 = arith.constant dense<0.000000e+00> : vector<48x32xf32>
    %297 = tpu.matmul %294, %296, %cst_126 {dimension_numbers = #tpu.dot_dimension_numbers<[1], [0], [0], [1], [0, 0, 1, 1], [], []>} : vector<48x8xf32>, vector<8x32xf32>, vector<48x32xf32> -> vector<48x32xf32>
    %298 = arith.addf %274, %297 : vector<48x32xf32>
    %299 = vector.extract_strided_slice %225 {offsets = [0, 24], sizes = [48, 8], strides = [1, 1]} : vector<48x96xf32> to vector<48x8xf32>
    %300 = arith.truncf %299 : vector<48x8xf32> to vector<48x8xbf16>
    %301 = vector.extract_strided_slice %225 {offsets = [0, 56], sizes = [48, 8], strides = [1, 1]} : vector<48x96xf32> to vector<48x8xf32>
    %302 = arith.truncf %301 : vector<48x8xf32> to vector<48x8xbf16>
    %303 = vector.extract_strided_slice %225 {offsets = [0, 88], sizes = [48, 8], strides = [1, 1]} : vector<48x96xf32> to vector<48x8xf32>
    %304 = arith.truncf %303 : vector<48x8xf32> to vector<48x8xbf16>
    %cst_127 = arith.constant dense<0.000000e+00> : vector<48x48xf32>
    %305 = tpu.matmul %300, %302, %cst_127 {dimension_numbers = #tpu.dot_dimension_numbers<[1], [1], [0], [0], [0, 0, 1, 0], [], []>} : vector<48x8xbf16>, vector<48x8xbf16>, vector<48x48xf32> -> vector<48x48xf32>
    %306 = arith.addf %305, %0 : vector<48x48xf32>
    %cst_128 = arith.constant dense<0xFF800000> : vector<48xf32>
    %307 = vector.multi_reduction <maximumf>, %306, %cst_128 [1] : vector<48x48xf32> to vector<48xf32>
    %308 = vector.shape_cast %307 : vector<48xf32> to vector<48x1xf32>
    %309 = vector.broadcast %308 : vector<48x1xf32> to vector<48x48xf32>
    %310 = arith.subf %306, %309 : vector<48x48xf32>
    %311 = math.exp %310 : vector<48x48xf32>
    %cst_129 = arith.constant dense<0.000000e+00> : vector<48xf32>
    %312 = vector.multi_reduction <add>, %311, %cst_129 [1] : vector<48x48xf32> to vector<48xf32>
    %313 = vector.shape_cast %312 : vector<48xf32> to vector<48x1xf32>
    %314 = tpu.reciprocal %313 {approx = true} : vector<48x1xf32> -> vector<48x1xf32>
    %315 = arith.truncf %311 : vector<48x48xf32> to vector<48x48xbf16>
    %cst_130 = arith.constant dense<0.000000e+00> : vector<48x8xf32>
    %316 = tpu.matmul %315, %304, %cst_130 {dimension_numbers = #tpu.dot_dimension_numbers<[1], [0], [0], [1], [0, 0, 1, 1], [], []>} : vector<48x48xbf16>, vector<48x8xbf16>, vector<48x8xf32> -> vector<48x8xf32>
    %317 = vector.broadcast %314 : vector<48x1xf32> to vector<48x8xf32>
    %318 = arith.mulf %316, %317 : vector<48x8xf32>
    %c7 = arith.constant 7 : index
    %c0_131 = arith.constant 0 : index
    %c0_132 = arith.constant 0 : index
    %319 = vector.load %arg8[%c7, %c0_131, %c0_132] : memref<8x8x32xf32, #tpu.memory_space<vmem>>, vector<1x8x32xf32>
    %320 = vector.shape_cast %319 : vector<1x8x32xf32> to vector<8x32xf32>
    %cst_133 = arith.constant dense<0.000000e+00> : vector<48x32xf32>
    %321 = tpu.matmul %318, %320, %cst_133 {dimension_numbers = #tpu.dot_dimension_numbers<[1], [0], [0], [1], [0, 0, 1, 1], [], []>} : vector<48x8xf32>, vector<8x32xf32>, vector<48x32xf32> -> vector<48x32xf32>
    %322 = arith.addf %298, %321 : vector<48x32xf32>
    %323 = arith.addf %193, %322 : vector<48x32xf32>
    %c1_134 = arith.constant 1 : index
    %c0_135 = arith.constant 0 : index
    %c0_136 = arith.constant 0 : index
    %324 = vector.load %arg9[%c1_134, %c0_135, %c0_136] : memref<2x1x32xf32, #tpu.memory_space<vmem>>, vector<1x1x32xf32>
    %325 = vector.shape_cast %324 : vector<1x1x32xf32> to vector<1x32xf32>
    %326 = vector.broadcast %325 : vector<1x32xf32> to vector<48x32xf32>
    %327 = arith.addf %323, %326 : vector<48x32xf32>
    %c1_137 = arith.constant 1 : index
    %c0_138 = arith.constant 0 : index
    %c0_139 = arith.constant 0 : index
    %328 = vector.load %arg10[%c1_137, %c0_138, %c0_139] : memref<2x1x32xf32, #tpu.memory_space<vmem>>, vector<1x1x32xf32>
    %329 = vector.shape_cast %328 : vector<1x1x32xf32> to vector<1x32xf32>
    %c1_140 = arith.constant 1 : index
    %c0_141 = arith.constant 0 : index
    %c0_142 = arith.constant 0 : index
    %330 = vector.load %arg11[%c1_140, %c0_141, %c0_142] : memref<2x1x32xf32, #tpu.memory_space<vmem>>, vector<1x1x32xf32>
    %331 = vector.shape_cast %330 : vector<1x1x32xf32> to vector<1x32xf32>
    %cst_143 = arith.constant dense<0.000000e+00> : vector<48xf32>
    %332 = vector.multi_reduction <add>, %327, %cst_143 [1] : vector<48x32xf32> to vector<48xf32>
    %333 = vector.shape_cast %332 : vector<48xf32> to vector<48x1xf32>
    %cst_144 = arith.constant 3.200000e+01 : f32
    %334 = vector.broadcast %cst_144 : f32 to vector<48x1xf32>
    %335 = arith.divf %333, %334 : vector<48x1xf32>
    %336 = vector.broadcast %335 : vector<48x1xf32> to vector<48x32xf32>
    %337 = arith.subf %327, %336 : vector<48x32xf32>
    %338 = arith.mulf %337, %337 : vector<48x32xf32>
    %cst_145 = arith.constant dense<0.000000e+00> : vector<48xf32>
    %339 = vector.multi_reduction <add>, %338, %cst_145 [1] : vector<48x32xf32> to vector<48xf32>
    %340 = vector.shape_cast %339 : vector<48xf32> to vector<48x1xf32>
    %cst_146 = arith.constant 3.200000e+01 : f32
    %341 = vector.broadcast %cst_146 : f32 to vector<48x1xf32>
    %342 = arith.divf %340, %341 : vector<48x1xf32>
    %cst_147 = arith.constant 9.99999997E-7 : f32
    %343 = vector.broadcast %cst_147 : f32 to vector<48x1xf32>
    %344 = arith.addf %342, %343 : vector<48x1xf32>
    %345 = math.rsqrt %344 : vector<48x1xf32>
    %346 = vector.broadcast %345 : vector<48x1xf32> to vector<48x32xf32>
    %347 = arith.mulf %337, %346 : vector<48x32xf32>
    %348 = vector.broadcast %329 : vector<1x32xf32> to vector<48x32xf32>
    %349 = arith.mulf %347, %348 : vector<48x32xf32>
    %350 = vector.broadcast %331 : vector<1x32xf32> to vector<48x32xf32>
    %351 = arith.addf %349, %350 : vector<48x32xf32>
    %352 = arith.truncf %351 : vector<48x32xf32> to vector<48x32xbf16>
    %c1_148 = arith.constant 1 : index
    %c0_149 = arith.constant 0 : index
    %c0_150 = arith.constant 0 : index
    %353 = vector.load %arg12[%c1_148, %c0_149, %c0_150] : memref<2x32x64xbf16, #tpu.memory_space<vmem>>, vector<1x32x64xbf16>
    %354 = vector.shape_cast %353 : vector<1x32x64xbf16> to vector<32x64xbf16>
    %cst_151 = arith.constant dense<0.000000e+00> : vector<48x64xf32>
    %355 = tpu.matmul %352, %354, %cst_151 {dimension_numbers = #tpu.dot_dimension_numbers<[1], [0], [0], [1], [0, 0, 1, 1], [], []>} : vector<48x32xbf16>, vector<32x64xbf16>, vector<48x64xf32> -> vector<48x64xf32>
    %c1_152 = arith.constant 1 : index
    %c0_153 = arith.constant 0 : index
    %c0_154 = arith.constant 0 : index
    %356 = vector.load %arg13[%c1_152, %c0_153, %c0_154] : memref<2x1x64xf32, #tpu.memory_space<vmem>>, vector<1x1x64xf32>
    %357 = vector.shape_cast %356 : vector<1x1x64xf32> to vector<1x64xf32>
    %358 = vector.broadcast %357 : vector<1x64xf32> to vector<48x64xf32>
    %359 = arith.addf %355, %358 : vector<48x64xf32>
    %360 = arith.mulf %359, %359 : vector<48x64xf32>
    %361 = arith.mulf %359, %360 : vector<48x64xf32>
    %cst_155 = arith.constant 4.471500e-02 : f32
    %362 = vector.broadcast %cst_155 : f32 to vector<48x64xf32>
    %363 = arith.mulf %362, %361 : vector<48x64xf32>
    %364 = arith.addf %359, %363 : vector<48x64xf32>
    %cst_156 = arith.constant 0.797884583 : f32
    %365 = vector.broadcast %cst_156 : f32 to vector<48x64xf32>
    %366 = arith.mulf %365, %364 : vector<48x64xf32>
    %367 = math.tanh %366 : vector<48x64xf32>
    %cst_157 = arith.constant 1.000000e+00 : f32
    %368 = vector.broadcast %cst_157 : f32 to vector<48x64xf32>
    %369 = arith.addf %368, %367 : vector<48x64xf32>
    %cst_158 = arith.constant 5.000000e-01 : f32
    %370 = vector.broadcast %cst_158 : f32 to vector<48x64xf32>
    %371 = arith.mulf %370, %369 : vector<48x64xf32>
    %372 = arith.mulf %359, %371 : vector<48x64xf32>
    %373 = arith.truncf %372 : vector<48x64xf32> to vector<48x64xbf16>
    %c1_159 = arith.constant 1 : index
    %c0_160 = arith.constant 0 : index
    %c0_161 = arith.constant 0 : index
    %374 = vector.load %arg14[%c1_159, %c0_160, %c0_161] : memref<2x64x32xbf16, #tpu.memory_space<vmem>>, vector<1x64x32xbf16>
    %375 = vector.shape_cast %374 : vector<1x64x32xbf16> to vector<64x32xbf16>
    %cst_162 = arith.constant dense<0.000000e+00> : vector<48x32xf32>
    %376 = tpu.matmul %373, %375, %cst_162 {dimension_numbers = #tpu.dot_dimension_numbers<[1], [0], [0], [1], [0, 0, 1, 1], [], []>} : vector<48x64xbf16>, vector<64x32xbf16>, vector<48x32xf32> -> vector<48x32xf32>
    %377 = arith.addf %327, %376 : vector<48x32xf32>
    %c1_163 = arith.constant 1 : index
    %c0_164 = arith.constant 0 : index
    %c0_165 = arith.constant 0 : index
    %378 = vector.load %arg15[%c1_163, %c0_164, %c0_165] : memref<2x1x32xf32, #tpu.memory_space<vmem>>, vector<1x1x32xf32>
    %379 = vector.shape_cast %378 : vector<1x1x32xf32> to vector<1x32xf32>
    %380 = vector.broadcast %379 : vector<1x32xf32> to vector<48x32xf32>
    %381 = arith.addf %377, %380 : vector<48x32xf32>
    %382 = tpu.iota {dimensions = array<i32: 0>} : vector<2x48xi32>
    %383 = tpu.iota {dimensions = array<i32: 1>} : vector<2x48xi32>
    %c24_i32 = arith.constant 24 : i32
    %384 = vector.broadcast %c24_i32 : i32 to vector<2x48xi32>
    %385 = arith.muli %382, %384 : vector<2x48xi32>
    %c16_i32 = arith.constant 16 : i32
    %386 = vector.broadcast %c16_i32 : i32 to vector<2x48xi32>
    %387 = arith.addi %385, %386 : vector<2x48xi32>
    %388 = arith.cmpi eq, %383, %387 : vector<2x48xi32>
    %cst_166 = arith.constant 1.000000e+00 : f32
    %cst_167 = arith.constant 0.000000e+00 : f32
    %389 = vector.broadcast %cst_166 : f32 to vector<2x48xf32>
    %390 = vector.broadcast %cst_167 : f32 to vector<2x48xf32>
    %391 = arith.select %388, %389, %390 : vector<2x48xi1>, vector<2x48xf32>
    %cst_168 = arith.constant dense<0.000000e+00> : vector<2x32xf32>
    %392 = tpu.matmul %391, %381, %cst_168 {dimension_numbers = #tpu.dot_dimension_numbers<[1], [0], [0], [1], [0, 0, 1, 1], [], []>} : vector<2x48xf32>, vector<48x32xf32>, vector<2x32xf32> -> vector<2x32xf32>
    %c0_169 = arith.constant 0 : index
    %c0_170 = arith.constant 0 : index
    %393 = vector.load %arg16[%c0_169, %c0_170] : memref<1x32xf32, #tpu.memory_space<vmem>>, vector<1x32xf32>
    %c0_171 = arith.constant 0 : index
    %c0_172 = arith.constant 0 : index
    %394 = vector.load %arg17[%c0_171, %c0_172] : memref<1x32xf32, #tpu.memory_space<vmem>>, vector<1x32xf32>
    %cst_173 = arith.constant dense<0.000000e+00> : vector<2xf32>
    %395 = vector.multi_reduction <add>, %392, %cst_173 [1] : vector<2x32xf32> to vector<2xf32>
    %396 = vector.shape_cast %395 : vector<2xf32> to vector<2x1xf32>
    %cst_174 = arith.constant 3.200000e+01 : f32
    %397 = vector.broadcast %cst_174 : f32 to vector<2x1xf32>
    %398 = arith.divf %396, %397 : vector<2x1xf32>
    %399 = vector.broadcast %398 : vector<2x1xf32> to vector<2x32xf32>
    %400 = arith.subf %392, %399 : vector<2x32xf32>
    %401 = arith.mulf %400, %400 : vector<2x32xf32>
    %cst_175 = arith.constant dense<0.000000e+00> : vector<2xf32>
    %402 = vector.multi_reduction <add>, %401, %cst_175 [1] : vector<2x32xf32> to vector<2xf32>
    %403 = vector.shape_cast %402 : vector<2xf32> to vector<2x1xf32>
    %cst_176 = arith.constant 3.200000e+01 : f32
    %404 = vector.broadcast %cst_176 : f32 to vector<2x1xf32>
    %405 = arith.divf %403, %404 : vector<2x1xf32>
    %cst_177 = arith.constant 9.99999997E-7 : f32
    %406 = vector.broadcast %cst_177 : f32 to vector<2x1xf32>
    %407 = arith.addf %405, %406 : vector<2x1xf32>
    %408 = math.rsqrt %407 : vector<2x1xf32>
    %409 = vector.broadcast %408 : vector<2x1xf32> to vector<2x32xf32>
    %410 = arith.mulf %400, %409 : vector<2x32xf32>
    %411 = vector.broadcast %393 : vector<1x32xf32> to vector<2x32xf32>
    %412 = arith.mulf %410, %411 : vector<2x32xf32>
    %413 = vector.broadcast %394 : vector<1x32xf32> to vector<2x32xf32>
    %414 = arith.addf %412, %413 : vector<2x32xf32>
    %c0_178 = arith.constant 0 : index
    %c0_179 = arith.constant 0 : index
    %415 = vector.load %arg18[%c0_178, %c0_179] : memref<32x10xf32, #tpu.memory_space<vmem>>, vector<32x10xf32>
    %cst_180 = arith.constant dense<0.000000e+00> : vector<2x10xf32>
    %416 = tpu.matmul %414, %415, %cst_180 {dimension_numbers = #tpu.dot_dimension_numbers<[1], [0], [0], [1], [0, 0, 1, 1], [], []>} : vector<2x32xf32>, vector<32x10xf32>, vector<2x10xf32> -> vector<2x10xf32>
    %c0_181 = arith.constant 0 : index
    %c0_182 = arith.constant 0 : index
    %417 = vector.load %arg19[%c0_181, %c0_182] : memref<1x10xf32, #tpu.memory_space<vmem>>, vector<1x10xf32>
    %418 = vector.broadcast %417 : vector<1x10xf32> to vector<2x10xf32>
    %419 = arith.addf %416, %418 : vector<2x10xf32>
    %c0_183 = arith.constant 0 : index
    %c0_184 = arith.constant 0 : index
    %420 = vector.load %arg20[%c0_183, %c0_184] : memref<2x10xf32, #tpu.memory_space<vmem>>, vector<2x10xf32>
    tpu.vector_store %arg20[%c0_183, %c0_184], %419 {strides = array<i32>} : memref<2x10xf32, #tpu.memory_space<vmem>>, vector<2x10xf32>,
    return
  }
}

</mosaic_0001>

<llo_original>
// kernel: vit_with_extra_layer_forward.1
$region0: #{vit_with_extra_layer_forward.1}
  #allocation0 [shape = 'u32[]', space=smem, size = 0x4, offset = 0x4, fixed_abs, tag = 'smem constant byte address 0x4 - core index']
  #allocation1 [shape = 'u32[144,128]{1,0:T(1,128)}', space=vmem, size = 0x12000, scoped, tag = 'internal scratch']
  %s0 = inlined_call_operand.vmem [shape: bf16[48,48], index: 0, kind: input, shape index: {}]
  %s1 = inlined_call_operand.vmem [shape: bf16[48,32], index: 1, kind: input, shape index: {}]
  %s2 = inlined_call_operand.vmem [shape: f32[48,32], index: 2, kind: input, shape index: {}]
  %s3 = inlined_call_operand.vmem [shape: f32[48,48], index: 3, kind: input, shape index: {}]
  %s4 = inlined_call_operand.vmem [shape: f32[2,1,32], index: 4, kind: input, shape index: {}]
  %s5 = inlined_call_operand.vmem [shape: f32[2,1,32], index: 5, kind: input, shape index: {}]
  %s6 = inlined_call_operand.vmem [shape: bf16[2,32,96], index: 6, kind: input, shape index: {}]
  %s7 = inlined_call_operand.vmem [shape: f32[2,1,96], index: 7, kind: input, shape index: {}]
  %s8 = inlined_call_operand.vmem [shape: f32[8,8,32], index: 8, kind: input, shape index: {}]
  %s9 = inlined_call_operand.vmem [shape: f32[2,1,32], index: 9, kind: input, shape index: {}]
  %s10 = inlined_call_operand.vmem [shape: f32[2,1,32], index: 10, kind: input, shape index: {}]
  %s11 = inlined_call_operand.vmem [shape: f32[2,1,32], index: 11, kind: input, shape index: {}]
  %s12 = inlined_call_operand.vmem [shape: bf16[2,32,64], index: 12, kind: input, shape index: {}]
  %s13 = inlined_call_operand.vmem [shape: f32[2,1,64], index: 13, kind: input, shape index: {}]
  %s14 = inlined_call_operand.vmem [shape: bf16[2,64,32], index: 14, kind: input, shape index: {}]
  %s15 = inlined_call_operand.vmem [shape: f32[2,1,32], index: 15, kind: input, shape index: {}]
  %s16 = inlined_call_operand.vmem [shape: f32[1,32], index: 16, kind: input, shape index: {}]
  %s17 = inlined_call_operand.vmem [shape: f32[1,32], index: 17, kind: input, shape index: {}]
  %s18 = inlined_call_operand.vmem [shape: f32[32,10], index: 18, kind: input, shape index: {}]
  %s19 = inlined_call_operand.vmem [shape: f32[1,10], index: 19, kind: input, shape index: {}]
  %s20 = inlined_call_operand.hbm [shape: f32[2,10], index: 20, kind: output, shape index: {}]
  %s21 = sld [smem:[#allocation0]]
  $region90: #{vit_with_extra_layer_forward.1} parent=0
    _
  %s23 = ssub.s32 1, %s21
  %s24 = scalar_select 0, %s23, %s21
  $region1: #{vit_with_extra_layer_forward.1} parent=0
    #allocation2 [shape = 'u8[1024]{0}', space=vmem, size = 0x400, scoped, tag = 'output window, operand 0, single buffered']
    #allocation3 [shape = 's32[1]{0}', space=sflag, size = 0x4, scoped, tag = 'scoped memory for vit_with_extra_layer_forward.1']
    %25 = vsyncpa [#allocation3], 0
    // Predicated region
    $region2: #{vit_with_extra_layer_forward.1} parent=1 // pred_check
      _
    $region3: #{vit_with_extra_layer_forward.1} parent=1 // pred_check_branch
      %27 = sbr.rel (0) target = $region5
    $region4: #{vit_with_extra_layer_forward.1} parent=1 // pred_region
      _
    $region5: #{vit_with_extra_layer_forward.1} parent=1 // pred_fallthru
      _
    // Predicated region
    $region6: #{vit_with_extra_layer_forward.1} parent=1 // pred_check
      _
    $region7: #{vit_with_extra_layer_forward.1} parent=1 // pred_check_branch
      %29 = sbr.rel (0) target = $region9
    $region8: #{vit_with_extra_layer_forward.1} parent=1 // pred_region
      _
    $region9: #{vit_with_extra_layer_forward.1} parent=1 // pred_fallthru
      _
    // Predicated region
    $region10: #{vit_with_extra_layer_forward.1} parent=1 // pred_check
      _
    $region11: #{vit_with_extra_layer_forward.1} parent=1 // pred_check_branch
      %31 = sbr.rel (0) target = $region13
    $region12: #{vit_with_extra_layer_forward.1} parent=1 // pred_region
      _
    $region13: #{vit_with_extra_layer_forward.1} parent=1 // pred_fallthru
      _
    // Predicated region
    $region14: #{vit_with_extra_layer_forward.1} parent=1 // pred_check
      _
    $region15: #{vit_with_extra_layer_forward.1} parent=1 // pred_check_branch
      %33 = sbr.rel (0) target = $region17
    $region16: #{vit_with_extra_layer_forward.1} parent=1 // pred_region
      _
    $region17: #{vit_with_extra_layer_forward.1} parent=1 // pred_fallthru
      _
    // Predicated region
    $region18: #{vit_with_extra_layer_forward.1} parent=1 // pred_check
      _
    $region19: #{vit_with_extra_layer_forward.1} parent=1 // pred_check_branch
      %35 = sbr.rel (0) target = $region21
    $region20: #{vit_with_extra_layer_forward.1} parent=1 // pred_region
      _
    $region21: #{vit_with_extra_layer_forward.1} parent=1 // pred_fallthru
      _
    // Predicated region
    $region22: #{vit_with_extra_layer_forward.1} parent=1 // pred_check
      _
    $region23: #{vit_with_extra_layer_forward.1} parent=1 // pred_check_branch
      %37 = sbr.rel (0) target = $region25
    $region24: #{vit_with_extra_layer_forward.1} parent=1 // pred_region
      _
    $region25: #{vit_with_extra_layer_forward.1} parent=1 // pred_fallthru
      _
    // Predicated region
    $region26: #{vit_with_extra_layer_forward.1} parent=1 // pred_check
      _
    $region27: #{vit_with_extra_layer_forward.1} parent=1 // pred_check_branch
      %39 = sbr.rel (0) target = $region29
    $region28: #{vit_with_extra_layer_forward.1} parent=1 // pred_region
      _
    $region29: #{vit_with_extra_layer_forward.1} parent=1 // pred_fallthru
      _
    // Predicated region
    $region30: #{vit_with_extra_layer_forward.1} parent=1 // pred_check
      _
    $region31: #{vit_with_extra_layer_forward.1} parent=1 // pred_check_branch
      %41 = sbr.rel (0) target = $region33
    $region32: #{vit_with_extra_layer_forward.1} parent=1 // pred_region
      _
    $region33: #{vit_with_extra_layer_forward.1} parent=1 // pred_fallthru
      _
    // Predicated region
    $region34: #{vit_with_extra_layer_forward.1} parent=1 // pred_check
      _
    $region35: #{vit_with_extra_layer_forward.1} parent=1 // pred_check_branch
      %43 = sbr.rel (0) target = $region37
    $region36: #{vit_with_extra_layer_forward.1} parent=1 // pred_region
      _
    $region37: #{vit_with_extra_layer_forward.1} parent=1 // pred_fallthru
      _
    // Predicated region
    $region38: #{vit_with_extra_layer_forward.1} parent=1 // pred_check
      _
    $region39: #{vit_with_extra_layer_forward.1} parent=1 // pred_check_branch
      %45 = sbr.rel (0) target = $region41
    $region40: #{vit_with_extra_layer_forward.1} parent=1 // pred_region
      _
    $region41: #{vit_with_extra_layer_forward.1} parent=1 // pred_fallthru
      _
    // Predicated region
    $region42: #{vit_with_extra_layer_forward.1} parent=1 // pred_check
      _
    $region43: #{vit_with_extra_layer_forward.1} parent=1 // pred_check_branch
      %47 = sbr.rel (0) target = $region45
    $region44: #{vit_with_extra_layer_forward.1} parent=1 // pred_region
      _
    $region45: #{vit_with_extra_layer_forward.1} parent=1 // pred_fallthru
      _
    // Predicated region
    $region46: #{vit_with_extra_layer_forward.1} parent=1 // pred_check
      _
    $region47: #{vit_with_extra_layer_forward.1} parent=1 // pred_check_branch
      %49 = sbr.rel (0) target = $region49
    $region48: #{vit_with_extra_layer_forward.1} parent=1 // pred_region
      _
    $region49: #{vit_with_extra_layer_forward.1} parent=1 // pred_fallthru
      _
    // Predicated region
    $region50: #{vit_with_extra_layer_forward.1} parent=1 // pred_check
      _
    $region51: #{vit_with_extra_layer_forward.1} parent=1 // pred_check_branch
      %51 = sbr.rel (0) target = $region53
    $region52: #{vit_with_extra_layer_forward.1} parent=1 // pred_region
      _
    $region53: #{vit_with_extra_layer_forward.1} parent=1 // pred_fallthru
      _
    // Predicated region
    $region54: #{vit_with_extra_layer_forward.1} parent=1 // pred_check
      _
    $region55: #{vit_with_extra_layer_forward.1} parent=1 // pred_check_branch
      %53 = sbr.rel (0) target = $region57
    $region56: #{vit_with_extra_layer_forward.1} parent=1 // pred_region
      _
    $region57: #{vit_with_extra_layer_forward.1} parent=1 // pred_fallthru
      _
    // Predicated region
    $region58: #{vit_with_extra_layer_forward.1} parent=1 // pred_check
      _
    $region59: #{vit_with_extra_layer_forward.1} parent=1 // pred_check_branch
      %55 = sbr.rel (0) target = $region61
    $region60: #{vit_with_extra_layer_forward.1} parent=1 // pred_region
      _
    $region61: #{vit_with_extra_layer_forward.1} parent=1 // pred_fallthru
      _
    // Predicated region
    $region62: #{vit_with_extra_layer_forward.1} parent=1 // pred_check
      _
    $region63: #{vit_with_extra_layer_forward.1} parent=1 // pred_check_branch
      %57 = sbr.rel (0) target = $region65
    $region64: #{vit_with_extra_layer_forward.1} parent=1 // pred_region
      _
    $region65: #{vit_with_extra_layer_forward.1} parent=1 // pred_fallthru
      _
    // Predicated region
    $region66: #{vit_with_extra_layer_forward.1} parent=1 // pred_check
      _
    $region67: #{vit_with_extra_layer_forward.1} parent=1 // pred_check_branch
      %59 = sbr.rel (0) target = $region69
    $region68: #{vit_with_extra_layer_forward.1} parent=1 // pred_region
      _
    $region69: #{vit_with_extra_layer_forward.1} parent=1 // pred_fallthru
      _
    // Predicated region
    $region70: #{vit_with_extra_layer_forward.1} parent=1 // pred_check
      _
    $region71: #{vit_with_extra_layer_forward.1} parent=1 // pred_check_branch
      %61 = sbr.rel (0) target = $region73
    $region72: #{vit_with_extra_layer_forward.1} parent=1 // pred_region
      _
    $region73: #{vit_with_extra_layer_forward.1} parent=1 // pred_fallthru
      _
    // Predicated region
    $region74: #{vit_with_extra_layer_forward.1} parent=1 // pred_check
      _
    $region75: #{vit_with_extra_layer_forward.1} parent=1 // pred_check_branch
      %63 = sbr.rel (0) target = $region77
    $region76: #{vit_with_extra_layer_forward.1} parent=1 // pred_region
      _
    $region77: #{vit_with_extra_layer_forward.1} parent=1 // pred_fallthru
      _
    // Predicated region
    $region78: #{vit_with_extra_layer_forward.1} parent=1 // pred_check
      _
    $region79: #{vit_with_extra_layer_forward.1} parent=1 // pred_check_branch
      %65 = sbr.rel (0) target = $region81
    $region80: #{vit_with_extra_layer_forward.1} parent=1 // pred_region
      _
    $region81: #{vit_with_extra_layer_forward.1} parent=1 // pred_fallthru
      _
    %v67 = vld [vmem:[%s3] sm:$0xff]
    %v68 = vld [vmem:[%s3 + $0x8] sm:$0xff]
    %v69 = vld [vmem:[%s3 + $0x10] sm:$0xff]
    %v70 = vld [vmem:[%s3 + $0x18] sm:$0xff]
    %v71 = vld [vmem:[%s3 + $0x20] sm:$0xff]
    %v72 = vld [vmem:[%s3 + $0x28] sm:$0xff]
    %v73 = vld [vmem:[%s0] sm:$0xf]
    %v74 = vld [vmem:[%s0 + $0x4] sm:$0xf]
    %v75 = vld [vmem:[%s0 + $0x8] sm:$0xf]
    %v76 = vld [vmem:[%s0 + $0xc] sm:$0xf]
    %v77 = vld [vmem:[%s0 + $0x10] sm:$0xf]
    %v78 = vld [vmem:[%s0 + $0x14] sm:$0xf]
    %v79 = vld [vmem:[%s1] sm:$0xf]
    %v80 = vld [vmem:[%s1 + $0x4] sm:$0xf]
    %v81 = vld [vmem:[%s1 + $0x8] sm:$0xf]
    %v82 = vld [vmem:[%s1 + $0xc] sm:$0xf]
    %v83 = vld [vmem:[%s1 + $0x10] sm:$0xf]
    %v84 = vld [vmem:[%s1 + $0x14] sm:$0xf]
    %v85 = vld [vmem:[%s2] sm:$0xff]
    %v86 = vld [vmem:[%s2 + $0x8] sm:$0xff]
    %v87 = vld [vmem:[%s2 + $0x10] sm:$0xff]
    %v88 = vld [vmem:[%s2 + $0x18] sm:$0xff]
    %v89 = vld [vmem:[%s2 + $0x20] sm:$0xff]
    %v90 = vld [vmem:[%s2 + $0x28] sm:$0xff]
    %v97 = vunpack.c.l.b16 %v73
    %v98 = vunpack.c.l.b16 %v74
    %v99 = vunpack.c.l.b16 %v75
    %v100 = vunpack.c.l.b16 %v76
    %v101 = vunpack.c.l.b16 %v77
    %v102 = vunpack.c.l.b16 %v78
    %v103 = vpack.c.b16 %v98, %v97
    %v104 = vpack.c.b16 %v100, %v99
    %v105 = vpack.c.b16 %v102, %v101
    %v112 = vunpack.c.l.b16 %v79
    %v113 = vunpack.c.l.b16 %v80
    %v114 = vunpack.c.l.b16 %v81
    %v115 = vunpack.c.l.b16 %v82
    %v116 = vunpack.c.l.b16 %v83
    %v117 = vunpack.c.l.b16 %v84
    %v118 = vpack.c.b16 %v113, %v112
    %v119 = vpack.c.b16 %v115, %v114
    %v120 = vpack.c.b16 %v117, %v116
    %vm124 = vcmask 392192
    %v126 = vsel %vm124, %v103, 0
    %v129 = vsel %vm124, %v104, 0
    %v132 = vsel %vm124, %v105, 0
    %134 = vmatprep.subr.bf16.mxu0 0
    %135 = vmatpush1.bf16.msra.mxu0 %v118
    %136 = vmatprep.subr.bf16.mxu0 0
    %137 = vmatpush1.bf16.msra.mxu0 %v119
    %138 = vmatprep.subr.bf16.mxu0 0
    %139 = vmatpush1.bf16.msra.mxu0 %v120
    %140 = vmatprep.subr.bf16.mxu0 0
    %141 = vmatpush1.bf16.msra.mxu0 0
    %142 = vmatprep.subr.bf16.mxu0 0
    %143 = vmatpush1.bf16.msra.mxu0 0
    %144 = vmatprep.subr.bf16.mxu0 0
    %145 = vmatpush1.bf16.msra.mxu0 0
    %146 = vmatprep.subr.bf16.mxu0 0
    %147 = vmatpush1.bf16.msra.mxu0 0
    %148 = vmatprep.subr.bf16.mxu0 0
    %149 = vmatpush1.bf16.msra.mxu0 0
    %150 = vmatprep.subr.bf16.mxu0 0
    %151 = vmatpush1.bf16.msra.mxu0 0
    %152 = vmatprep.subr.bf16.mxu0 0
    %153 = vmatpush1.bf16.msra.mxu0 0
    %154 = vmatprep.subr.bf16.mxu0 0
    %155 = vmatpush1.bf16.msra.mxu0 0
    %156 = vmatprep.subr.bf16.mxu0 0
    %157 = vmatpush1.bf16.msra.mxu0 0
    %158 = vmatprep.subr.bf16.mxu0 0
    %159 = vmatpush1.bf16.msra.mxu0 0
    %160 = vmatprep.subr.bf16.mxu0 0
    %161 = vmatpush1.bf16.msra.mxu0 0
    %162 = vmatprep.subr.bf16.mxu0 0
    %163 = vmatpush1.bf16.msra.mxu0 0
    %164 = vmatprep.subr.bf16.mxu0 0
    %165 = vmatpush1.bf16.msra.mxu0 0
    %166 = vmatprep.mubr.bf16.mxu0 0
    %167 = vmatmul.mubr.bf16.gmra.mrb[0].mxu0 %v126
    %v168 = vpop.f32.mrb[0].mxu0
    %v169 = vadd.f32 %v85, %v168
    %v170 = vpop.f32.mrb[0].mxu0
    %v171 = vpop.f32.mrb[0].mxu0
    %v172 = vadd.f32 %v86, %v171
    %v173 = vpop.f32.mrb[0].mxu0
    %174 = vmatprep.mubr.bf16.mxu0 0
    %175 = vmatmul.mubr.bf16.gmra.mrb[0].mxu0 %v129
    %v176 = vpop.f32.mrb[0].mxu0
    %v177 = vadd.f32 %v87, %v176
    %v178 = vpop.f32.mrb[0].mxu0
    %v179 = vpop.f32.mrb[0].mxu0
    %v180 = vadd.f32 %v88, %v179
    %v181 = vpop.f32.mrb[0].mxu0
    %182 = vmatprep.mubr.bf16.mxu0 0
    %183 = vmatmul.mubr.bf16.gmra.mrb[0].mxu0 %v132
    %v184 = vpop.f32.mrb[0].mxu0
    %v185 = vadd.f32 %v89, %v184
    %v186 = vpop.f32.mrb[0].mxu0
    %v187 = vpop.f32.mrb[0].mxu0
    %v188 = vadd.f32 %v90, %v187
    %v189 = vpop.f32.mrb[0].mxu0
    %190 = vdwg.mxu0
    %v191 = vld [vmem:[%s4] sm:$0x1]
    %v192 = vld [vmem:[%s5] sm:$0x1]
    %vm193 = vcmask 261120
    %v194 = vsel %vm193, %v169, 0.0
    %195 = vadd.xlane.f32.xlu0 %v194
    %v196 = vpop.xlane.xlu0 %195
    %v197 = vsel %vm193, %v172, 0.0
    %198 = vadd.xlane.f32.xlu0 %v197
    %v199 = vpop.xlane.xlu0 %198
    %v200 = vsel %vm193, %v177, 0.0
    %201 = vadd.xlane.f32.xlu0 %v200
    %v202 = vpop.xlane.xlu0 %201
    %v203 = vsel %vm193, %v180, 0.0
    %204 = vadd.xlane.f32.xlu0 %v203
    %v205 = vpop.xlane.xlu0 %204
    %v206 = vsel %vm193, %v185, 0.0
    %207 = vadd.xlane.f32.xlu0 %v206
    %v208 = vpop.xlane.xlu0 %207
    %v209 = vsel %vm193, %v188, 0.0
    %210 = vadd.xlane.f32.xlu0 %v209
    %v211 = vpop.xlane.xlu0 %210
    %v212 = vrcp.pop 32.0
    %v213 = vmul.f32 %v196, %v212
    %v214 = vmul.f32 %v199, %v212
    %v215 = vmul.f32 %v202, %v212
    %v216 = vmul.f32 %v205, %v212
    %v217 = vmul.f32 %v208, %v212
    %v218 = vmul.f32 %v211, %v212
    %v219 = vsub.f32 %v169, %v213
    %v220 = vsub.f32 %v172, %v214
    %v221 = vsub.f32 %v177, %v215
    %v222 = vsub.f32 %v180, %v216
    %v223 = vsub.f32 %v185, %v217
    %v224 = vsub.f32 %v188, %v218
    %v225 = vmul.f32 %v219, %v219
    %v226 = vmul.f32 %v220, %v220
    %v227 = vmul.f32 %v221, %v221
    %v228 = vmul.f32 %v222, %v222
    %v229 = vmul.f32 %v223, %v223
    %v230 = vmul.f32 %v224, %v224
    %v231 = vsel %vm193, %v225, 0.0
    %232 = vadd.xlane.f32.xlu0 %v231
    %v233 = vpop.xlane.xlu0 %232
    %v234 = vsel %vm193, %v226, 0.0
    %235 = vadd.xlane.f32.xlu0 %v234
    %v236 = vpop.xlane.xlu0 %235
    %v237 = vsel %vm193, %v227, 0.0
    %238 = vadd.xlane.f32.xlu0 %v237
    %v239 = vpop.xlane.xlu0 %238
    %v240 = vsel %vm193, %v228, 0.0
    %241 = vadd.xlane.f32.xlu0 %v240
    %v242 = vpop.xlane.xlu0 %241
    %v243 = vsel %vm193, %v229, 0.0
    %244 = vadd.xlane.f32.xlu0 %v243
    %v245 = vpop.xlane.xlu0 %244
    %v246 = vsel %vm193, %v230, 0.0
    %247 = vadd.xlane.f32.xlu0 %v246
    %v248 = vpop.xlane.xlu0 %247
    %v249 = vmul.f32 %v233, %v212
    %v250 = vmul.f32 %v236, %v212
    %v251 = vmul.f32 %v239, %v212
    %v252 = vmul.f32 %v242, %v212
    %v253 = vmul.f32 %v245, %v212
    %v254 = vmul.f32 %v248, %v212
    %v255 = vadd.f32 %v249, 1e-06
    %v256 = vadd.f32 %v250, 1e-06
    %v257 = vadd.f32 %v251, 1e-06
    %v258 = vadd.f32 %v252, 1e-06
    %v259 = vadd.f32 %v253, 1e-06
    %v260 = vadd.f32 %v254, 1e-06
    %v261 = vrsqrt.pop %v255
    %v262 = vrsqrt.pop %v256
    %v263 = vrsqrt.pop %v257
    %v264 = vrsqrt.pop %v258
    %v265 = vrsqrt.pop %v259
    %v266 = vrsqrt.pop %v260
    %v267 = vmul.f32 %v219, %v261
    %v268 = vmul.f32 %v220, %v262
    %v269 = vmul.f32 %v221, %v263
    %v270 = vmul.f32 %v222, %v264
    %v271 = vmul.f32 %v223, %v265
    %v272 = vmul.f32 %v224, %v266
    %v274 = vlaneseq
    %v275 = vshrl.u32 %v274, 7
    %v276 = vsub.s32 0, %v275
    %v277 = vrot.slane %v191, %v276
    %v279 = vmul.f32 %v267, %v277
    %v280 = vmul.f32 %v268, %v277
    %v281 = vmul.f32 %v269, %v277
    %v282 = vmul.f32 %v270, %v277
    %v283 = vmul.f32 %v271, %v277
    %v284 = vmul.f32 %v272, %v277
    %v286 = vlaneseq
    %v287 = vshrl.u32 %v286, 7
    %v288 = vsub.s32 0, %v287
    %v289 = vrot.slane %v192, %v288
    %v291 = vadd.f32 %v279, %v289
    %v292 = vadd.f32 %v280, %v289
    %v293 = vadd.f32 %v281, %v289
    %v294 = vadd.f32 %v282, %v289
    %v295 = vadd.f32 %v283, %v289
    %v296 = vadd.f32 %v284, %v289
    %v297 = vpack.c.bf16 %v292, %v291
    %v298 = vpack.c.bf16 %v294, %v293
    %v299 = vpack.c.bf16 %v296, %v295
    %v300 = vld [vmem:[%s6] sm:$0xf]
    %v301 = vld [vmem:[%s6 + $0x4] sm:$0xf]
    %v302 = vld [vmem:[%s6 + $0x8] sm:$0xf]
    %v303 = vld [vmem:[%s6 + $0xc] sm:$0xf]
    %v304 = vld [vmem:[%s7] sm:$0x1]
    %v306 = vlaneseq
    %v307 = vshrl.u32 %v306, 7
    %v308 = vsub.s32 0, %v307
    %v309 = vrot.slane %v304, %v308
    %v315 = vunpack.c.l.b16 %v300
    %v316 = vunpack.c.l.b16 %v301
    %v317 = vunpack.c.l.b16 %v302
    %v318 = vunpack.c.l.b16 %v303
    %v319 = vpack.c.b16 %v316, %v315
    %v320 = vpack.c.b16 %v318, %v317
    %v324 = vsel %vm193, %v297, 0
    %v327 = vsel %vm193, %v298, 0
    %v330 = vsel %vm193, %v299, 0
    %332 = vmatprep.subr.bf16.mxu0 0
    %333 = vmatpush1.bf16.msra.mxu0 %v319
    %334 = vmatprep.subr.bf16.mxu0 0
    %335 = vmatpush1.bf16.msra.mxu0 %v320
    %336 = vmatprep.subr.bf16.mxu0 0
    %337 = vmatpush1.bf16.msra.mxu0 0
    %338 = vmatprep.subr.bf16.mxu0 0
    %339 = vmatpush1.bf16.msra.mxu0 0
    %340 = vmatprep.subr.bf16.mxu0 0
    %341 = vmatpush1.bf16.msra.mxu0 0
    %342 = vmatprep.subr.bf16.mxu0 0
    %343 = vmatpush1.bf16.msra.mxu0 0
    %344 = vmatprep.subr.bf16.mxu0 0
    %345 = vmatpush1.bf16.msra.mxu0 0
    %346 = vmatprep.subr.bf16.mxu0 0
    %347 = vmatpush1.bf16.msra.mxu0 0
    %348 = vmatprep.subr.bf16.mxu0 0
    %349 = vmatpush1.bf16.msra.mxu0 0
    %350 = vmatprep.subr.bf16.mxu0 0
    %351 = vmatpush1.bf16.msra.mxu0 0
    %352 = vmatprep.subr.bf16.mxu0 0
    %353 = vmatpush1.bf16.msra.mxu0 0
    %354 = vmatprep.subr.bf16.mxu0 0
    %355 = vmatpush1.bf16.msra.mxu0 0
    %356 = vmatprep.subr.bf16.mxu0 0
    %357 = vmatpush1.bf16.msra.mxu0 0
    %358 = vmatprep.subr.bf16.mxu0 0
    %359 = vmatpush1.bf16.msra.mxu0 0
    %360 = vmatprep.subr.bf16.mxu0 0
    %361 = vmatpush1.bf16.msra.mxu0 0
    %362 = vmatprep.subr.bf16.mxu0 0
    %363 = vmatpush1.bf16.msra.mxu0 0
    %364 = vmatprep.mubr.bf16.mxu0 0
    %365 = vmatmul.mubr.bf16.gmra.mrb[0].mxu0 %v324
    %v366 = vpop.f32.mrb[0].mxu0
    %v367 = vadd.f32 %v309, %v366
    %v368 = vpop.f32.mrb[0].mxu0
    %v369 = vpop.f32.mrb[0].mxu0
    %v370 = vadd.f32 %v309, %v369
    %v371 = vpop.f32.mrb[0].mxu0
    %372 = vmatprep.mubr.bf16.mxu0 0
    %373 = vmatmul.mubr.bf16.gmra.mrb[0].mxu0 %v327
    %v374 = vpop.f32.mrb[0].mxu0
    %v375 = vadd.f32 %v309, %v374
    %v376 = vpop.f32.mrb[0].mxu0
    %v377 = vpop.f32.mrb[0].mxu0
    %v378 = vadd.f32 %v309, %v377
    %v379 = vpop.f32.mrb[0].mxu0
    %380 = vmatprep.mubr.bf16.mxu0 0
    %381 = vmatmul.mubr.bf16.gmra.mrb[0].mxu0 %v330
    %v382 = vpop.f32.mrb[0].mxu0
    %v383 = vadd.f32 %v309, %v382
    %v384 = vpop.f32.mrb[0].mxu0
    %v385 = vpop.f32.mrb[0].mxu0
    %v386 = vadd.f32 %v309, %v385
    %v387 = vpop.f32.mrb[0].mxu0
    %388 = vdwg.mxu0
    %v389 = vpack.c.bf16 %v370, %v367
    %v390 = vpack.c.bf16 %v378, %v375
    %v391 = vpack.c.bf16 %v386, %v383
    %395 = vrot.lane.b32.xlu0 %v389, 96
    %v396 = vpop.permute.xlu0 %395
    %397 = vrot.lane.b32.xlu0 %v390, 96
    %v398 = vpop.permute.xlu0 %397
    %399 = vrot.lane.b32.xlu0 %v391, 96
    %v400 = vpop.permute.xlu0 %399
    %vm401 = vcmask 64512
    %v403 = vsel %vm401, %v389, 0
    %v406 = vsel %vm401, %v390, 0
    %v409 = vsel %vm401, %v391, 0
    %v412 = vsel %vm401, %v396, 0
    %v415 = vsel %vm401, %v398, 0
    %v418 = vsel %vm401, %v400, 0
    %420 = vmatprep.subr.bf16.mxu0 0
    %421 = vmatpush1.bf16.xpose.msra.mxu0 %v412
    %422 = vmatprep.subr.bf16.mxu0 0
    %423 = vmatpush1.bf16.xpose.msra.mxu0 %v415
    %424 = vmatprep.subr.bf16.mxu0 0
    %425 = vmatpush1.bf16.xpose.msra.mxu0 %v418
    %426 = vmatprep.subr.bf16.mxu0 0
    %427 = vmatpush1.bf16.xpose.msra.mxu0 0
    %428 = vmatprep.subr.bf16.mxu0 0
    %429 = vmatpush1.bf16.xpose.msra.mxu0 0
    %430 = vmatprep.subr.bf16.mxu0 0
    %431 = vmatpush1.bf16.xpose.msra.mxu0 0
    %432 = vmatprep.subr.bf16.mxu0 0
    %433 = vmatpush1.bf16.xpose.msra.mxu0 0
    %434 = vmatprep.subr.bf16.mxu0 0
    %435 = vmatpush1.bf16.xpose.msra.mxu0 0
    %436 = vmatprep.subr.bf16.mxu0 0
    %437 = vmatpush1.bf16.xpose.msra.mxu0 0
    %438 = vmatprep.subr.bf16.mxu0 0
    %439 = vmatpush1.bf16.xpose.msra.mxu0 0
    %440 = vmatprep.subr.bf16.mxu0 0
    %441 = vmatpush1.bf16.xpose.msra.mxu0 0
    %442 = vmatprep.subr.bf16.mxu0 0
    %443 = vmatpush1.bf16.xpose.msra.mxu0 0
    %444 = vmatprep.subr.bf16.mxu0 0
    %445 = vmatpush1.bf16.xpose.msra.mxu0 0
    %446 = vmatprep.subr.bf16.mxu0 0
    %447 = vmatpush1.bf16.xpose.msra.mxu0 0
    %448 = vmatprep.subr.bf16.mxu0 0
    %449 = vmatpush1.bf16.xpose.msra.mxu0 0
    %450 = vmatprep.subr.bf16.mxu0 0
    %451 = vmatpush1.bf16.xpose.msra.mxu0 0
    %452 = vmatprep.mubr.bf16.mxu0 0
    %453 = vmatmul.mubr.bf16.gmra.mrb[0].mxu0 %v403
    %v454 = vpop.f32.mrb[0].mxu0
    %v455 = vadd.f32 %v67, %v454
    %v456 = vpop.f32.mrb[0].mxu0
    %v457 = vpop.f32.mrb[0].mxu0
    %v458 = vadd.f32 %v68, %v457
    %v459 = vpop.f32.mrb[0].mxu0
    %460 = vmatprep.mubr.bf16.mxu0 0
    %461 = vmatmul.mubr.bf16.gmra.mrb[0].mxu0 %v406
    %v462 = vpop.f32.mrb[0].mxu0
    %v463 = vadd.f32 %v69, %v462
    %v464 = vpop.f32.mrb[0].mxu0
    %v465 = vpop.f32.mrb[0].mxu0
    %v466 = vadd.f32 %v70, %v465
    %v467 = vpop.f32.mrb[0].mxu0
    %468 = vmatprep.mubr.bf16.mxu0 0
    %469 = vmatmul.mubr.bf16.gmra.mrb[0].mxu0 %v409
    %v470 = vpop.f32.mrb[0].mxu0
    %v471 = vadd.f32 %v71, %v470
    %v472 = vpop.f32.mrb[0].mxu0
    %v473 = vpop.f32.mrb[0].mxu0
    %v474 = vadd.f32 %v72, %v473
    %v475 = vpop.f32.mrb[0].mxu0
    %476 = vdwg.mxu0
    %v477 = vsel %vm124, %v455, -inf
    %478 = vmax.xlane.f32.xlu0 %v477
    %v479 = vpop.xlane.xlu0 %478
    %v480 = vsel %vm124, %v458, -inf
    %481 = vmax.xlane.f32.xlu0 %v480
    %v482 = vpop.xlane.xlu0 %481
    %v483 = vsel %vm124, %v463, -inf
    %484 = vmax.xlane.f32.xlu0 %v483
    %v485 = vpop.xlane.xlu0 %484
    %v486 = vsel %vm124, %v466, -inf
    %487 = vmax.xlane.f32.xlu0 %v486
    %v488 = vpop.xlane.xlu0 %487
    %v489 = vsel %vm124, %v471, -inf
    %490 = vmax.xlane.f32.xlu0 %v489
    %v491 = vpop.xlane.xlu0 %490
    %v492 = vsel %vm124, %v474, -inf
    %493 = vmax.xlane.f32.xlu0 %v492
    %v494 = vpop.xlane.xlu0 %493
    %v495 = vsub.f32 %v455, %v479
    %v496 = vsub.f32 %v458, %v482
    %v497 = vsub.f32 %v463, %v485
    %v498 = vsub.f32 %v466, %v488
    %v499 = vsub.f32 %v471, %v491
    %v500 = vsub.f32 %v474, %v494
    %v501 = vmul.f32 %v495, 1.442695
    %v502 = vpow.pop %v501
    %v503 = vmul.f32 %v496, 1.442695
    %v504 = vpow.pop %v503
    %v505 = vmul.f32 %v497, 1.442695
    %v506 = vpow.pop %v505
    %v507 = vmul.f32 %v498, 1.442695
    %v508 = vpow.pop %v507
    %v509 = vmul.f32 %v499, 1.442695
    %v510 = vpow.pop %v509
    %v511 = vmul.f32 %v500, 1.442695
    %v512 = vpow.pop %v511
    %v513 = vsel %vm124, %v502, 0.0
    %514 = vadd.xlane.f32.xlu0 %v513
    %v515 = vpop.xlane.xlu0 %514
    %v516 = vsel %vm124, %v504, 0.0
    %517 = vadd.xlane.f32.xlu0 %v516
    %v518 = vpop.xlane.xlu0 %517
    %v519 = vsel %vm124, %v506, 0.0
    %520 = vadd.xlane.f32.xlu0 %v519
    %v521 = vpop.xlane.xlu0 %520
    %v522 = vsel %vm124, %v508, 0.0
    %523 = vadd.xlane.f32.xlu0 %v522
    %v524 = vpop.xlane.xlu0 %523
    %v525 = vsel %vm124, %v510, 0.0
    %526 = vadd.xlane.f32.xlu0 %v525
    %v527 = vpop.xlane.xlu0 %526
    %v528 = vsel %vm124, %v512, 0.0
    %529 = vadd.xlane.f32.xlu0 %v528
    %v530 = vpop.xlane.xlu0 %529
    %v531 = vrcp.pop %v515
    %v532 = vrcp.pop %v518
    %v533 = vrcp.pop %v521
    %v534 = vrcp.pop %v524
    %v535 = vrcp.pop %v527
    %v536 = vrcp.pop %v530
    %v537 = vpack.c.bf16 %v504, %v502
    %v538 = vpack.c.bf16 %v508, %v506
    %v539 = vpack.c.bf16 %v512, %v510
    %540 = vrot.lane.b32.xlu0 %v389, 64
    %v541 = vpop.permute.xlu0 %540
    %542 = vrot.lane.b32.xlu0 %v390, 64
    %v543 = vpop.permute.xlu0 %542
    %544 = vrot.lane.b32.xlu0 %v391, 64
    %v545 = vpop.permute.xlu0 %544
    %v550 = vsel %vm124, %v537, 0
    %v553 = vsel %vm124, %v538, 0
    %v556 = vsel %vm124, %v539, 0
    %558 = vmatprep.subr.bf16.mxu0 0
    %559 = vmatpush1.bf16.msra.mxu0 %v541
    %560 = vmatprep.subr.bf16.mxu0 0
    %561 = vmatpush1.bf16.msra.mxu0 %v543
    %562 = vmatprep.subr.bf16.mxu0 0
    %563 = vmatpush1.bf16.msra.mxu0 %v545
    %564 = vmatprep.subr.bf16.mxu0 0
    %565 = vmatpush1.bf16.msra.mxu0 0
    %566 = vmatprep.subr.bf16.mxu0 0
    %567 = vmatpush1.bf16.msra.mxu0 0
    %568 = vmatprep.subr.bf16.mxu0 0
    %569 = vmatpush1.bf16.msra.mxu0 0
    %570 = vmatprep.subr.bf16.mxu0 0
    %571 = vmatpush1.bf16.msra.mxu0 0
    %572 = vmatprep.subr.bf16.mxu0 0
    %573 = vmatpush1.bf16.msra.mxu0 0
    %574 = vmatprep.subr.bf16.mxu0 0
    %575 = vmatpush1.bf16.msra.mxu0 0
    %576 = vmatprep.subr.bf16.mxu0 0
    %577 = vmatpush1.bf16.msra.mxu0 0
    %578 = vmatprep.subr.bf16.mxu0 0
    %579 = vmatpush1.bf16.msra.mxu0 0
    %580 = vmatprep.subr.bf16.mxu0 0
    %581 = vmatpush1.bf16.msra.mxu0 0
    %582 = vmatprep.subr.bf16.mxu0 0
    %583 = vmatpush1.bf16.msra.mxu0 0
    %584 = vmatprep.subr.bf16.mxu0 0
    %585 = vmatpush1.bf16.msra.mxu0 0
    %586 = vmatprep.subr.bf16.mxu0 0
    %587 = vmatpush1.bf16.msra.mxu0 0
    %588 = vmatprep.subr.bf16.mxu0 0
    %589 = vmatpush1.bf16.msra.mxu0 0
    %590 = vmatprep.mubr.bf16.mxu0 0
    %591 = vmatmul.mubr.bf16.gmra.mrb[0].mxu0 %v550
    %v592 = vpop.f32.mrb[0].mxu0
    %v593 = vadd.f32 0.0, %v592
    %v594 = vpop.f32.mrb[0].mxu0
    %v595 = vpop.f32.mrb[0].mxu0
    %v596 = vadd.f32 0.0, %v595
    %v597 = vpop.f32.mrb[0].mxu0
    %598 = vmatprep.mubr.bf16.mxu0 0
    %599 = vmatmul.mubr.bf16.gmra.mrb[0].mxu0 %v553
    %v600 = vpop.f32.mrb[0].mxu0
    %v601 = vadd.f32 0.0, %v600
    %v602 = vpop.f32.mrb[0].mxu0
    %v603 = vpop.f32.mrb[0].mxu0
    %v604 = vadd.f32 0.0, %v603
    %v605 = vpop.f32.mrb[0].mxu0
    %606 = vmatprep.mubr.bf16.mxu0 0
    %607 = vmatmul.mubr.bf16.gmra.mrb[0].mxu0 %v556
    %v608 = vpop.f32.mrb[0].mxu0
    %v609 = vadd.f32 0.0, %v608
    %v610 = vpop.f32.mrb[0].mxu0
    %v611 = vpop.f32.mrb[0].mxu0
    %v612 = vadd.f32 0.0, %v611
    %v613 = vpop.f32.mrb[0].mxu0
    %614 = vdwg.mxu0
    %v615 = vmul.f32 %v593, %v531
    %v616 = vmul.f32 %v596, %v532
    %v617 = vmul.f32 %v601, %v533
    %v618 = vmul.f32 %v604, %v534
    %v619 = vmul.f32 %v609, %v535
    %v620 = vmul.f32 %v612, %v536
    %v621 = vld [vmem:[%s8] sm:$0xff]
    %622 = vrot.lane.b32.xlu0 %v389, 120
    %v623 = vpop.permute.xlu0 %622
    %624 = vrot.lane.b32.xlu0 %v390, 120
    %v625 = vpop.permute.xlu0 %624
    %626 = vrot.lane.b32.xlu0 %v391, 120
    %v627 = vpop.permute.xlu0 %626
    %628 = vrot.lane.b32.xlu0 %v389, 88
    %v629 = vpop.permute.xlu0 %628
    %630 = vrot.lane.b32.xlu0 %v390, 88
    %v631 = vpop.permute.xlu0 %630
    %632 = vrot.lane.b32.xlu0 %v391, 88
    %v633 = vpop.permute.xlu0 %632
    %v635 = vsel %vm401, %v623, 0
    %v638 = vsel %vm401, %v625, 0
    %v641 = vsel %vm401, %v627, 0
    %v644 = vsel %vm401, %v629, 0
    %v647 = vsel %vm401, %v631, 0
    %v650 = vsel %vm401, %v633, 0
    %652 = vmatprep.subr.bf16.mxu0 0
    %653 = vmatpush1.bf16.xpose.msra.mxu0 %v644
    %654 = vmatprep.subr.bf16.mxu0 0
    %655 = vmatpush1.bf16.xpose.msra.mxu0 %v647
    %656 = vmatprep.subr.bf16.mxu0 0
    %657 = vmatpush1.bf16.xpose.msra.mxu0 %v650
    %658 = vmatprep.subr.bf16.mxu0 0
    %659 = vmatpush1.bf16.xpose.msra.mxu0 0
    %660 = vmatprep.subr.bf16.mxu0 0
    %661 = vmatpush1.bf16.xpose.msra.mxu0 0
    %662 = vmatprep.subr.bf16.mxu0 0
    %663 = vmatpush1.bf16.xpose.msra.mxu0 0
    %664 = vmatprep.subr.bf16.mxu0 0
    %665 = vmatpush1.bf16.xpose.msra.mxu0 0
    %666 = vmatprep.subr.bf16.mxu0 0
    %667 = vmatpush1.bf16.xpose.msra.mxu0 0
    %668 = vmatprep.subr.bf16.mxu0 0
    %669 = vmatpush1.bf16.xpose.msra.mxu0 0
    %670 = vmatprep.subr.bf16.mxu0 0
    %671 = vmatpush1.bf16.xpose.msra.mxu0 0
    %672 = vmatprep.subr.bf16.mxu0 0
    %673 = vmatpush1.bf16.xpose.msra.mxu0 0
    %674 = vmatprep.subr.bf16.mxu0 0
    %675 = vmatpush1.bf16.xpose.msra.mxu0 0
    %676 = vmatprep.subr.bf16.mxu0 0
    %677 = vmatpush1.bf16.xpose.msra.mxu0 0
    %678 = vmatprep.subr.bf16.mxu0 0
    %679 = vmatpush1.bf16.xpose.msra.mxu0 0
    %680 = vmatprep.subr.bf16.mxu0 0
    %681 = vmatpush1.bf16.xpose.msra.mxu0 0
    %682 = vmatprep.subr.bf16.mxu0 0
    %683 = vmatpush1.bf16.xpose.msra.mxu0 0
    %684 = vmatprep.mubr.bf16.mxu0 0
    %685 = vmatmul.mubr.bf16.gmra.mrb[0].mxu0 %v635
    %v686 = vpop.f32.mrb[0].mxu0
    %v687 = vadd.f32 %v67, %v686
    %v688 = vpop.f32.mrb[0].mxu0
    %v689 = vpop.f32.mrb[0].mxu0
    %v690 = vadd.f32 %v68, %v689
    %v691 = vpop.f32.mrb[0].mxu0
    %692 = vmatprep.mubr.bf16.mxu0 0
    %693 = vmatmul.mubr.bf16.gmra.mrb[0].mxu0 %v638
    %v694 = vpop.f32.mrb[0].mxu0
    %v695 = vadd.f32 %v69, %v694
    %v696 = vpop.f32.mrb[0].mxu0
    %v697 = vpop.f32.mrb[0].mxu0
    %v698 = vadd.f32 %v70, %v697
    %v699 = vpop.f32.mrb[0].mxu0
    %700 = vmatprep.mubr.bf16.mxu0 0
    %701 = vmatmul.mubr.bf16.gmra.mrb[0].mxu0 %v641
    %v702 = vpop.f32.mrb[0].mxu0
    %v703 = vadd.f32 %v71, %v702
    %v704 = vpop.f32.mrb[0].mxu0
    %v705 = vpop.f32.mrb[0].mxu0
    %v706 = vadd.f32 %v72, %v705
    %v707 = vpop.f32.mrb[0].mxu0
    %708 = vdwg.mxu0
    %v709 = vsel %vm124, %v687, -inf
    %710 = vmax.xlane.f32.xlu0 %v709
    %v711 = vpop.xlane.xlu0 %710
    %v712 = vsel %vm124, %v690, -inf
    %713 = vmax.xlane.f32.xlu0 %v712
    %v714 = vpop.xlane.xlu0 %713
    %v715 = vsel %vm124, %v695, -inf
    %716 = vmax.xlane.f32.xlu0 %v715
    %v717 = vpop.xlane.xlu0 %716
    %v718 = vsel %vm124, %v698, -inf
    %719 = vmax.xlane.f32.xlu0 %v718
    %v720 = vpop.xlane.xlu0 %719
    %v721 = vsel %vm124, %v703, -inf
    %722 = vmax.xlane.f32.xlu0 %v721
    %v723 = vpop.xlane.xlu0 %722
    %v724 = vsel %vm124, %v706, -inf
    %725 = vmax.xlane.f32.xlu0 %v724
    %v726 = vpop.xlane.xlu0 %725
    %v727 = vsub.f32 %v687, %v711
    %v728 = vsub.f32 %v690, %v714
    %v729 = vsub.f32 %v695, %v717
    %v730 = vsub.f32 %v698, %v720
    %v731 = vsub.f32 %v703, %v723
    %v732 = vsub.f32 %v706, %v726
    %v733 = vmul.f32 %v727, 1.442695
    %v734 = vpow.pop %v733
    %v735 = vmul.f32 %v728, 1.442695
    %v736 = vpow.pop %v735
    %v737 = vmul.f32 %v729, 1.442695
    %v738 = vpow.pop %v737
    %v739 = vmul.f32 %v730, 1.442695
    %v740 = vpow.pop %v739
    %v741 = vmul.f32 %v731, 1.442695
    %v742 = vpow.pop %v741
    %v743 = vmul.f32 %v732, 1.442695
    %v744 = vpow.pop %v743
    %v745 = vsel %vm124, %v734, 0.0
    %746 = vadd.xlane.f32.xlu0 %v745
    %v747 = vpop.xlane.xlu0 %746
    %v748 = vsel %vm124, %v736, 0.0
    %749 = vadd.xlane.f32.xlu0 %v748
    %v750 = vpop.xlane.xlu0 %749
    %v751 = vsel %vm124, %v738, 0.0
    %752 = vadd.xlane.f32.xlu0 %v751
    %v753 = vpop.xlane.xlu0 %752
    %v754 = vsel %vm124, %v740, 0.0
    %755 = vadd.xlane.f32.xlu0 %v754
    %v756 = vpop.xlane.xlu0 %755
    %v757 = vsel %vm124, %v742, 0.0
    %758 = vadd.xlane.f32.xlu0 %v757
    %v759 = vpop.xlane.xlu0 %758
    %v760 = vsel %vm124, %v744, 0.0
    %761 = vadd.xlane.f32.xlu0 %v760
    %v762 = vpop.xlane.xlu0 %761
    %v763 = vrcp.pop %v747
    %v764 = vrcp.pop %v750
    %v765 = vrcp.pop %v753
    %v766 = vrcp.pop %v756
    %v767 = vrcp.pop %v759
    %v768 = vrcp.pop %v762
    %v769 = vpack.c.bf16 %v736, %v734
    %v770 = vpack.c.bf16 %v740, %v738
    %v771 = vpack.c.bf16 %v744, %v742
    %772 = vrot.lane.b32.xlu0 %v389, 56
    %v773 = vpop.permute.xlu0 %772
    %774 = vrot.lane.b32.xlu0 %v390, 56
    %v775 = vpop.permute.xlu0 %774
    %776 = vrot.lane.b32.xlu0 %v391, 56
    %v777 = vpop.permute.xlu0 %776
    %v782 = vsel %vm124, %v769, 0
    %v785 = vsel %vm124, %v770, 0
    %v788 = vsel %vm124, %v771, 0
    %790 = vmatprep.subr.bf16.mxu0 0
    %791 = vmatpush1.bf16.msra.mxu0 %v773
    %792 = vmatprep.subr.bf16.mxu0 0
    %793 = vmatpush1.bf16.msra.mxu0 %v775
    %794 = vmatprep.subr.bf16.mxu0 0
    %795 = vmatpush1.bf16.msra.mxu0 %v777
    %796 = vmatprep.subr.bf16.mxu0 0
    %797 = vmatpush1.bf16.msra.mxu0 0
    %798 = vmatprep.subr.bf16.mxu0 0
    %799 = vmatpush1.bf16.msra.mxu0 0
    %800 = vmatprep.subr.bf16.mxu0 0
    %801 = vmatpush1.bf16.msra.mxu0 0
    %802 = vmatprep.subr.bf16.mxu0 0
    %803 = vmatpush1.bf16.msra.mxu0 0
    %804 = vmatprep.subr.bf16.mxu0 0
    %805 = vmatpush1.bf16.msra.mxu0 0
    %806 = vmatprep.subr.bf16.mxu0 0
    %807 = vmatpush1.bf16.msra.mxu0 0
    %808 = vmatprep.subr.bf16.mxu0 0
    %809 = vmatpush1.bf16.msra.mxu0 0
    %810 = vmatprep.subr.bf16.mxu0 0
    %811 = vmatpush1.bf16.msra.mxu0 0
    %812 = vmatprep.subr.bf16.mxu0 0
    %813 = vmatpush1.bf16.msra.mxu0 0
    %814 = vmatprep.subr.bf16.mxu0 0
    %815 = vmatpush1.bf16.msra.mxu0 0
    %816 = vmatprep.subr.bf16.mxu0 0
    %817 = vmatpush1.bf16.msra.mxu0 0
    %818 = vmatprep.subr.bf16.mxu0 0
    %819 = vmatpush1.bf16.msra.mxu0 0
    %820 = vmatprep.subr.bf16.mxu0 0
    %821 = vmatpush1.bf16.msra.mxu0 0
    %822 = vmatprep.mubr.bf16.mxu0 0
    %823 = vmatmul.mubr.bf16.gmra.mrb[0].mxu0 %v782
    %v824 = vpop.f32.mrb[0].mxu0
    %v825 = vadd.f32 0.0, %v824
    %v826 = vpop.f32.mrb[0].mxu0
    %v827 = vpop.f32.mrb[0].mxu0
    %v828 = vadd.f32 0.0, %v827
    %v829 = vpop.f32.mrb[0].mxu0
    %830 = vmatprep.mubr.bf16.mxu0 0
    %831 = vmatmul.mubr.bf16.gmra.mrb[0].mxu0 %v785
    %v832 = vpop.f32.mrb[0].mxu0
    %v833 = vadd.f32 0.0, %v832
    %v834 = vpop.f32.mrb[0].mxu0
    %v835 = vpop.f32.mrb[0].mxu0
    %v836 = vadd.f32 0.0, %v835
    %v837 = vpop.f32.mrb[0].mxu0
    %838 = vmatprep.mubr.bf16.mxu0 0
    %839 = vmatmul.mubr.bf16.gmra.mrb[0].mxu0 %v788
    %v840 = vpop.f32.mrb[0].mxu0
    %v841 = vadd.f32 0.0, %v840
    %v842 = vpop.f32.mrb[0].mxu0
    %v843 = vpop.f32.mrb[0].mxu0
    %v844 = vadd.f32 0.0, %v843
    %v845 = vpop.f32.mrb[0].mxu0
    %846 = vdwg.mxu0
    %v847 = vmul.f32 %v825, %v763
    %v848 = vmul.f32 %v828, %v764
    %v849 = vmul.f32 %v833, %v765
    %v850 = vmul.f32 %v836, %v766
    %v851 = vmul.f32 %v841, %v767
    %v852 = vmul.f32 %v844, %v768
    %s853 = scalar_lea.vmem %s8, 8
    %v854 = vld [vmem:[%s853] sm:$0xff]
    %v856 = vsel %vm401, %v847, 0
    %v859 = vsel %vm401, %v848, 0
    %v862 = vsel %vm401, %v849, 0
    %v865 = vsel %vm401, %v850, 0
    %v868 = vsel %vm401, %v851, 0
    %v871 = vsel %vm401, %v852, 0
    %873 = vmatprep.subr.mxu0 0.0
    %874 = vmatpush1.msra.mxu0 %v854
    %875 = vmatprep.subr.mxu0 0.0
    %876 = vmatpush1.msra.mxu0 0.0
    %877 = vmatprep.subr.mxu0 0.0
    %878 = vmatpush1.msra.mxu0 0.0
    %879 = vmatprep.subr.mxu0 0.0
    %880 = vmatpush1.msra.mxu0 0.0
    %881 = vmatprep.subr.mxu0 0.0
    %882 = vmatpush1.msra.mxu0 0.0
    %883 = vmatprep.subr.mxu0 0.0
    %884 = vmatpush1.msra.mxu0 0.0
    %885 = vmatprep.subr.mxu0 0.0
    %886 = vmatpush1.msra.mxu0 0.0
    %887 = vmatprep.subr.mxu0 0.0
    %888 = vmatpush1.msra.mxu0 0.0
    %889 = vmatprep.subr.mxu0 0.0
    %890 = vmatpush1.msra.mxu0 0.0
    %891 = vmatprep.subr.mxu0 0.0
    %892 = vmatpush1.msra.mxu0 0.0
    %893 = vmatprep.subr.mxu0 0.0
    %894 = vmatpush1.msra.mxu0 0.0
    %895 = vmatprep.subr.mxu0 0.0
    %896 = vmatpush1.msra.mxu0 0.0
    %897 = vmatprep.subr.mxu0 0.0
    %898 = vmatpush1.msra.mxu0 0.0
    %899 = vmatprep.subr.mxu0 0.0
    %900 = vmatpush1.msra.mxu0 0.0
    %901 = vmatprep.subr.mxu0 0.0
    %902 = vmatpush1.msra.mxu0 0.0
    %903 = vmatprep.subr.mxu0 0.0
    %904 = vmatpush1.msra.mxu0 0.0
    %905 = vmatprep.subr.mxu0 0.0
    %906 = vmatpush1.msra.mxu0 0.0
    %907 = vmatprep.subr.mxu0 0.0
    %908 = vmatpush1.msra.mxu0 0.0
    %909 = vmatprep.subr.mxu0 0.0
    %910 = vmatpush1.msra.mxu0 0.0
    %911 = vmatprep.subr.mxu0 0.0
    %912 = vmatpush1.msra.mxu0 0.0
    %913 = vmatprep.subr.mxu0 0.0
    %914 = vmatpush1.msra.mxu0 0.0
    %915 = vmatprep.subr.mxu0 0.0
    %916 = vmatpush1.msra.mxu0 0.0
    %917 = vmatprep.subr.mxu0 0.0
    %918 = vmatpush1.msra.mxu0 0.0
    %919 = vmatprep.subr.mxu0 0.0
    %920 = vmatpush1.msra.mxu0 0.0
    %921 = vmatprep.subr.mxu0 0.0
    %922 = vmatpush1.msra.mxu0 0.0
    %923 = vmatprep.subr.mxu0 0.0
    %924 = vmatpush1.msra.mxu0 0.0
    %925 = vmatprep.subr.mxu0 0.0
    %926 = vmatpush1.msra.mxu0 0.0
    %927 = vmatprep.subr.mxu0 0.0
    %928 = vmatpush1.msra.mxu0 0.0
    %929 = vmatprep.subr.mxu0 0.0
    %930 = vmatpush1.msra.mxu0 0.0
    %931 = vmatprep.subr.mxu0 0.0
    %932 = vmatpush1.msra.mxu0 0.0
    %933 = vmatprep.subr.mxu0 0.0
    %934 = vmatpush1.msra.mxu0 0.0
    %935 = vmatprep.subr.mxu0 0.0
    %936 = vmatpush1.msra.mxu0 0.0
    %937 = vmatprep.mubr.f32.mxu0 0.0
    %938 = vmatmul.mubr.f32.gmra.mrb[0].mxu0 %v856
    %v939 = vpop.f32.mrb[0].mxu0
    %v940 = vadd.f32 0.0, %v939
    %v941 = vpop.f32.mrb[0].mxu0
    %942 = vmatprep.mubr.f32.mxu0 0.0
    %943 = vmatmul.mubr.f32.gmra.mrb[0].mxu0 %v859
    %v944 = vpop.f32.mrb[0].mxu0
    %v945 = vadd.f32 0.0, %v944
    %v946 = vpop.f32.mrb[0].mxu0
    %947 = vmatprep.mubr.f32.mxu0 0.0
    %948 = vmatmul.mubr.f32.gmra.mrb[0].mxu0 %v862
    %v949 = vpop.f32.mrb[0].mxu0
    %v950 = vadd.f32 0.0, %v949
    %v951 = vpop.f32.mrb[0].mxu0
    %952 = vmatprep.mubr.f32.mxu0 0.0
    %953 = vmatmul.mubr.f32.gmra.mrb[0].mxu0 %v865
    %v954 = vpop.f32.mrb[0].mxu0
    %v955 = vadd.f32 0.0, %v954
    %v956 = vpop.f32.mrb[0].mxu0
    %957 = vmatprep.mubr.f32.mxu0 0.0
    %958 = vmatmul.mubr.f32.gmra.mrb[0].mxu0 %v868
    %v959 = vpop.f32.mrb[0].mxu0
    %v960 = vadd.f32 0.0, %v959
    %v961 = vpop.f32.mrb[0].mxu0
    %962 = vmatprep.mubr.f32.mxu0 0.0
    %963 = vmatmul.mubr.f32.gmra.mrb[0].mxu0 %v871
    %v964 = vpop.f32.mrb[0].mxu0
    %v965 = vadd.f32 0.0, %v964
    %v966 = vpop.f32.mrb[0].mxu0
    %967 = vdwg.mxu0
    %v969 = vsel %vm401, %v615, 0
    %v972 = vsel %vm401, %v616, 0
    %v975 = vsel %vm401, %v617, 0
    %v978 = vsel %vm401, %v618, 0
    %v981 = vsel %vm401, %v619, 0
    %v984 = vsel %vm401, %v620, 0
    %986 = vmatprep.subr.mxu0 0.0
    %987 = vmatpush1.msra.mxu0 %v621
    %988 = vmatprep.subr.mxu0 0.0
    %989 = vmatpush1.msra.mxu0 0.0
    %990 = vmatprep.subr.mxu0 0.0
    %991 = vmatpush1.msra.mxu0 0.0
    %992 = vmatprep.subr.mxu0 0.0
    %993 = vmatpush1.msra.mxu0 0.0
    %994 = vmatprep.subr.mxu0 0.0
    %995 = vmatpush1.msra.mxu0 0.0
    %996 = vmatprep.subr.mxu0 0.0
    %997 = vmatpush1.msra.mxu0 0.0
    %998 = vmatprep.subr.mxu0 0.0
    %999 = vmatpush1.msra.mxu0 0.0
    %1000 = vmatprep.subr.mxu0 0.0
    %1001 = vmatpush1.msra.mxu0 0.0
    %1002 = vmatprep.subr.mxu0 0.0
    %1003 = vmatpush1.msra.mxu0 0.0
    %1004 = vmatprep.subr.mxu0 0.0
    %1005 = vmatpush1.msra.mxu0 0.0
    %1006 = vmatprep.subr.mxu0 0.0
    %1007 = vmatpush1.msra.mxu0 0.0
    %1008 = vmatprep.subr.mxu0 0.0
    %1009 = vmatpush1.msra.mxu0 0.0
    %1010 = vmatprep.subr.mxu0 0.0
    %1011 = vmatpush1.msra.mxu0 0.0
    %1012 = vmatprep.subr.mxu0 0.0
    %1013 = vmatpush1.msra.mxu0 0.0
    %1014 = vmatprep.subr.mxu0 0.0
    %1015 = vmatpush1.msra.mxu0 0.0
    %1016 = vmatprep.subr.mxu0 0.0
    %1017 = vmatpush1.msra.mxu0 0.0
    %1018 = vmatprep.subr.mxu0 0.0
    %1019 = vmatpush1.msra.mxu0 0.0
    %1020 = vmatprep.subr.mxu0 0.0
    %1021 = vmatpush1.msra.mxu0 0.0
    %1022 = vmatprep.subr.mxu0 0.0
    %1023 = vmatpush1.msra.mxu0 0.0
    %1024 = vmatprep.subr.mxu0 0.0
    %1025 = vmatpush1.msra.mxu0 0.0
    %1026 = vmatprep.subr.mxu0 0.0
    %1027 = vmatpush1.msra.mxu0 0.0
    %1028 = vmatprep.subr.mxu0 0.0
    %1029 = vmatpush1.msra.mxu0 0.0
    %1030 = vmatprep.subr.mxu0 0.0
    %1031 = vmatpush1.msra.mxu0 0.0
    %1032 = vmatprep.subr.mxu0 0.0
    %1033 = vmatpush1.msra.mxu0 0.0
    %1034 = vmatprep.subr.mxu0 0.0
    %1035 = vmatpush1.msra.mxu0 0.0
    %1036 = vmatprep.subr.mxu0 0.0
    %1037 = vmatpush1.msra.mxu0 0.0
    %1038 = vmatprep.subr.mxu0 0.0
    %1039 = vmatpush1.msra.mxu0 0.0
    %1040 = vmatprep.subr.mxu0 0.0
    %1041 = vmatpush1.msra.mxu0 0.0
    %1042 = vmatprep.subr.mxu0 0.0
    %1043 = vmatpush1.msra.mxu0 0.0
    %1044 = vmatprep.subr.mxu0 0.0
    %1045 = vmatpush1.msra.mxu0 0.0
    %1046 = vmatprep.subr.mxu0 0.0
    %1047 = vmatpush1.msra.mxu0 0.0
    %1048 = vmatprep.subr.mxu0 0.0
    %1049 = vmatpush1.msra.mxu0 0.0
    %1050 = vmatprep.mubr.f32.mxu0 0.0
    %1051 = vmatmul.mubr.f32.gmra.mrb[0].mxu0 %v969
    %v1052 = vpop.f32.mrb[0].mxu0
    %v1053 = vadd.f32 %v940, %v1052
    %v1054 = vpop.f32.mrb[0].mxu0
    %1055 = vmatprep.mubr.f32.mxu0 0.0
    %1056 = vmatmul.mubr.f32.gmra.mrb[0].mxu0 %v972
    %v1057 = vpop.f32.mrb[0].mxu0
    %v1058 = vadd.f32 %v945, %v1057
    %v1059 = vpop.f32.mrb[0].mxu0
    %1060 = vmatprep.mubr.f32.mxu0 0.0
    %1061 = vmatmul.mubr.f32.gmra.mrb[0].mxu0 %v975
    %v1062 = vpop.f32.mrb[0].mxu0
    %v1063 = vadd.f32 %v950, %v1062
    %v1064 = vpop.f32.mrb[0].mxu0
    %1065 = vmatprep.mubr.f32.mxu0 0.0
    %1066 = vmatmul.mubr.f32.gmra.mrb[0].mxu0 %v978
    %v1067 = vpop.f32.mrb[0].mxu0
    %v1068 = vadd.f32 %v955, %v1067
    %v1069 = vpop.f32.mrb[0].mxu0
    %1070 = vmatprep.mubr.f32.mxu0 0.0
    %1071 = vmatmul.mubr.f32.gmra.mrb[0].mxu0 %v981
    %v1072 = vpop.f32.mrb[0].mxu0
    %v1073 = vadd.f32 %v960, %v1072
    %v1074 = vpop.f32.mrb[0].mxu0
    %1075 = vmatprep.mubr.f32.mxu0 0.0
    %1076 = vmatmul.mubr.f32.gmra.mrb[0].mxu0 %v984
    %v1077 = vpop.f32.mrb[0].mxu0
    %v1078 = vadd.f32 %v965, %v1077
    %v1079 = vpop.f32.mrb[0].mxu0
    %1080 = vdwg.mxu0
    %1081 = vrot.lane.b32.xlu0 %v389, 112
    %v1082 = vpop.permute.xlu0 %1081
    %1083 = vrot.lane.b32.xlu0 %v390, 112
    %v1084 = vpop.permute.xlu0 %1083
    %1085 = vrot.lane.b32.xlu0 %v391, 112
    %v1086 = vpop.permute.xlu0 %1085
    %1087 = vrot.lane.b32.xlu0 %v389, 80
    %v1088 = vpop.permute.xlu0 %1087
    %1089 = vrot.lane.b32.xlu0 %v390, 80
    %v1090 = vpop.permute.xlu0 %1089
    %1091 = vrot.lane.b32.xlu0 %v391, 80
    %v1092 = vpop.permute.xlu0 %1091
    %v1094 = vsel %vm401, %v1082, 0
    %v1097 = vsel %vm401, %v1084, 0
    %v1100 = vsel %vm401, %v1086, 0
    %v1103 = vsel %vm401, %v1088, 0
    %v1106 = vsel %vm401, %v1090, 0
    %v1109 = vsel %vm401, %v1092, 0
    %1111 = vmatprep.subr.bf16.mxu0 0
    %1112 = vmatpush1.bf16.xpose.msra.mxu0 %v1103
    %1113 = vmatprep.subr.bf16.mxu0 0
    %1114 = vmatpush1.bf16.xpose.msra.mxu0 %v1106
    %1115 = vmatprep.subr.bf16.mxu0 0
    %1116 = vmatpush1.bf16.xpose.msra.mxu0 %v1109
    %1117 = vmatprep.subr.bf16.mxu0 0
    %1118 = vmatpush1.bf16.xpose.msra.mxu0 0
    %1119 = vmatprep.subr.bf16.mxu0 0
    %1120 = vmatpush1.bf16.xpose.msra.mxu0 0
    %1121 = vmatprep.subr.bf16.mxu0 0
    %1122 = vmatpush1.bf16.xpose.msra.mxu0 0
    %1123 = vmatprep.subr.bf16.mxu0 0
    %1124 = vmatpush1.bf16.xpose.msra.mxu0 0
    %1125 = vmatprep.subr.bf16.mxu0 0
    %1126 = vmatpush1.bf16.xpose.msra.mxu0 0
    %1127 = vmatprep.subr.bf16.mxu0 0
    %1128 = vmatpush1.bf16.xpose.msra.mxu0 0
    %1129 = vmatprep.subr.bf16.mxu0 0
    %1130 = vmatpush1.bf16.xpose.msra.mxu0 0
    %1131 = vmatprep.subr.bf16.mxu0 0
    %1132 = vmatpush1.bf16.xpose.msra.mxu0 0
    %1133 = vmatprep.subr.bf16.mxu0 0
    %1134 = vmatpush1.bf16.xpose.msra.mxu0 0
    %1135 = vmatprep.subr.bf16.mxu0 0
    %1136 = vmatpush1.bf16.xpose.msra.mxu0 0
    %1137 = vmatprep.subr.bf16.mxu0 0
    %1138 = vmatpush1.bf16.xpose.msra.mxu0 0
    %1139 = vmatprep.subr.bf16.mxu0 0
    %1140 = vmatpush1.bf16.xpose.msra.mxu0 0
    %1141 = vmatprep.subr.bf16.mxu0 0
    %1142 = vmatpush1.bf16.xpose.msra.mxu0 0
    %1143 = vmatprep.mubr.bf16.mxu0 0
    %1144 = vmatmul.mubr.bf16.gmra.mrb[0].mxu0 %v1094
    %v1145 = vpop.f32.mrb[0].mxu0
    %v1146 = vadd.f32 %v67, %v1145
    %v1147 = vpop.f32.mrb[0].mxu0
    %v1148 = vpop.f32.mrb[0].mxu0
    %v1149 = vadd.f32 %v68, %v1148
    %v1150 = vpop.f32.mrb[0].mxu0
    %1151 = vmatprep.mubr.bf16.mxu0 0
    %1152 = vmatmul.mubr.bf16.gmra.mrb[0].mxu0 %v1097
    %v1153 = vpop.f32.mrb[0].mxu0
    %v1154 = vadd.f32 %v69, %v1153
    %v1155 = vpop.f32.mrb[0].mxu0
    %v1156 = vpop.f32.mrb[0].mxu0
    %v1157 = vadd.f32 %v70, %v1156
    %v1158 = vpop.f32.mrb[0].mxu0
    %1159 = vmatprep.mubr.bf16.mxu0 0
    %1160 = vmatmul.mubr.bf16.gmra.mrb[0].mxu0 %v1100
    %v1161 = vpop.f32.mrb[0].mxu0
    %v1162 = vadd.f32 %v71, %v1161
    %v1163 = vpop.f32.mrb[0].mxu0
    %v1164 = vpop.f32.mrb[0].mxu0
    %v1165 = vadd.f32 %v72, %v1164
    %v1166 = vpop.f32.mrb[0].mxu0
    %1167 = vdwg.mxu0
    %v1168 = vsel %vm124, %v1146, -inf
    %1169 = vmax.xlane.f32.xlu0 %v1168
    %v1170 = vpop.xlane.xlu0 %1169
    %v1171 = vsel %vm124, %v1149, -inf
    %1172 = vmax.xlane.f32.xlu0 %v1171
    %v1173 = vpop.xlane.xlu0 %1172
    %v1174 = vsel %vm124, %v1154, -inf
    %1175 = vmax.xlane.f32.xlu0 %v1174
    %v1176 = vpop.xlane.xlu0 %1175
    %v1177 = vsel %vm124, %v1157, -inf
    %1178 = vmax.xlane.f32.xlu0 %v1177
    %v1179 = vpop.xlane.xlu0 %1178
    %v1180 = vsel %vm124, %v1162, -inf
    %1181 = vmax.xlane.f32.xlu0 %v1180
    %v1182 = vpop.xlane.xlu0 %1181
    %v1183 = vsel %vm124, %v1165, -inf
    %1184 = vmax.xlane.f32.xlu0 %v1183
    %v1185 = vpop.xlane.xlu0 %1184
    %v1186 = vsub.f32 %v1146, %v1170
    %v1187 = vsub.f32 %v1149, %v1173
    %v1188 = vsub.f32 %v1154, %v1176
    %v1189 = vsub.f32 %v1157, %v1179
    %v1190 = vsub.f32 %v1162, %v1182
    %v1191 = vsub.f32 %v1165, %v1185
    %v1192 = vmul.f32 %v1186, 1.442695
    %v1193 = vpow.pop %v1192
    %v1194 = vmul.f32 %v1187, 1.442695
    %v1195 = vpow.pop %v1194
    %v1196 = vmul.f32 %v1188, 1.442695
    %v1197 = vpow.pop %v1196
    %v1198 = vmul.f32 %v1189, 1.442695
    %v1199 = vpow.pop %v1198
    %v1200 = vmul.f32 %v1190, 1.442695
    %v1201 = vpow.pop %v1200
    %v1202 = vmul.f32 %v1191, 1.442695
    %v1203 = vpow.pop %v1202
    %v1204 = vsel %vm124, %v1193, 0.0
    %1205 = vadd.xlane.f32.xlu0 %v1204
    %v1206 = vpop.xlane.xlu0 %1205
    %v1207 = vsel %vm124, %v1195, 0.0
    %1208 = vadd.xlane.f32.xlu0 %v1207
    %v1209 = vpop.xlane.xlu0 %1208
    %v1210 = vsel %vm124, %v1197, 0.0
    %1211 = vadd.xlane.f32.xlu0 %v1210
    %v1212 = vpop.xlane.xlu0 %1211
    %v1213 = vsel %vm124, %v1199, 0.0
    %1214 = vadd.xlane.f32.xlu0 %v1213
    %v1215 = vpop.xlane.xlu0 %1214
    %v1216 = vsel %vm124, %v1201, 0.0
    %1217 = vadd.xlane.f32.xlu0 %v1216
    %v1218 = vpop.xlane.xlu0 %1217
    %v1219 = vsel %vm124, %v1203, 0.0
    %1220 = vadd.xlane.f32.xlu0 %v1219
    %v1221 = vpop.xlane.xlu0 %1220
    %v1222 = vrcp.pop %v1206
    %v1223 = vrcp.pop %v1209
    %v1224 = vrcp.pop %v1212
    %v1225 = vrcp.pop %v1215
    %v1226 = vrcp.pop %v1218
    %v1227 = vrcp.pop %v1221
    %v1228 = vpack.c.bf16 %v1195, %v1193
    %v1229 = vpack.c.bf16 %v1199, %v1197
    %v1230 = vpack.c.bf16 %v1203, %v1201
    %1231 = vrot.lane.b32.xlu0 %v389, 48
    %v1232 = vpop.permute.xlu0 %1231
    %1233 = vrot.lane.b32.xlu0 %v390, 48
    %v1234 = vpop.permute.xlu0 %1233
    %1235 = vrot.lane.b32.xlu0 %v391, 48
    %v1236 = vpop.permute.xlu0 %1235
    %v1241 = vsel %vm124, %v1228, 0
    %v1244 = vsel %vm124, %v1229, 0
    %v1247 = vsel %vm124, %v1230, 0
    %1249 = vmatprep.subr.bf16.mxu0 0
    %1250 = vmatpush1.bf16.msra.mxu0 %v1232
    %1251 = vmatprep.subr.bf16.mxu0 0
    %1252 = vmatpush1.bf16.msra.mxu0 %v1234
    %1253 = vmatprep.subr.bf16.mxu0 0
    %1254 = vmatpush1.bf16.msra.mxu0 %v1236
    %1255 = vmatprep.subr.bf16.mxu0 0
    %1256 = vmatpush1.bf16.msra.mxu0 0
    %1257 = vmatprep.subr.bf16.mxu0 0
    %1258 = vmatpush1.bf16.msra.mxu0 0
    %1259 = vmatprep.subr.bf16.mxu0 0
    %1260 = vmatpush1.bf16.msra.mxu0 0
    %1261 = vmatprep.subr.bf16.mxu0 0
    %1262 = vmatpush1.bf16.msra.mxu0 0
    %1263 = vmatprep.subr.bf16.mxu0 0
    %1264 = vmatpush1.bf16.msra.mxu0 0
    %1265 = vmatprep.subr.bf16.mxu0 0
    %1266 = vmatpush1.bf16.msra.mxu0 0
    %1267 = vmatprep.subr.bf16.mxu0 0
    %1268 = vmatpush1.bf16.msra.mxu0 0
    %1269 = vmatprep.subr.bf16.mxu0 0
    %1270 = vmatpush1.bf16.msra.mxu0 0
    %1271 = vmatprep.subr.bf16.mxu0 0
    %1272 = vmatpush1.bf16.msra.mxu0 0
    %1273 = vmatprep.subr.bf16.mxu0 0
    %1274 = vmatpush1.bf16.msra.mxu0 0
    %1275 = vmatprep.subr.bf16.mxu0 0
    %1276 = vmatpush1.bf16.msra.mxu0 0
    %1277 = vmatprep.subr.bf16.mxu0 0
    %1278 = vmatpush1.bf16.msra.mxu0 0
    %1279 = vmatprep.subr.bf16.mxu0 0
    %1280 = vmatpush1.bf16.msra.mxu0 0
    %1281 = vmatprep.mubr.bf16.mxu0 0
    %1282 = vmatmul.mubr.bf16.gmra.mrb[0].mxu0 %v1241
    %v1283 = vpop.f32.mrb[0].mxu0
    %v1284 = vadd.f32 0.0, %v1283
    %v1285 = vpop.f32.mrb[0].mxu0
    %v1286 = vpop.f32.mrb[0].mxu0
    %v1287 = vadd.f32 0.0, %v1286
    %v1288 = vpop.f32.mrb[0].mxu0
    %1289 = vmatprep.mubr.bf16.mxu0 0
    %1290 = vmatmul.mubr.bf16.gmra.mrb[0].mxu0 %v1244
    %v1291 = vpop.f32.mrb[0].mxu0
    %v1292 = vadd.f32 0.0, %v1291
    %v1293 = vpop.f32.mrb[0].mxu0
    %v1294 = vpop.f32.mrb[0].mxu0
    %v1295 = vadd.f32 0.0, %v1294
    %v1296 = vpop.f32.mrb[0].mxu0
    %1297 = vmatprep.mubr.bf16.mxu0 0
    %1298 = vmatmul.mubr.bf16.gmra.mrb[0].mxu0 %v1247
    %v1299 = vpop.f32.mrb[0].mxu0
    %v1300 = vadd.f32 0.0, %v1299
    %v1301 = vpop.f32.mrb[0].mxu0
    %v1302 = vpop.f32.mrb[0].mxu0
    %v1303 = vadd.f32 0.0, %v1302
    %v1304 = vpop.f32.mrb[0].mxu0
    %1305 = vdwg.mxu0
    %v1306 = vmul.f32 %v1284, %v1222
    %v1307 = vmul.f32 %v1287, %v1223
    %v1308 = vmul.f32 %v1292, %v1224
    %v1309 = vmul.f32 %v1295, %v1225
    %v1310 = vmul.f32 %v1300, %v1226
    %v1311 = vmul.f32 %v1303, %v1227
    %s1312 = scalar_lea.vmem %s8, 16
    %v1313 = vld [vmem:[%s1312] sm:$0xff]
    %v1315 = vsel %vm401, %v1306, 0
    %v1318 = vsel %vm401, %v1307, 0
    %v1321 = vsel %vm401, %v1308, 0
    %v1324 = vsel %vm401, %v1309, 0
    %v1327 = vsel %vm401, %v1310, 0
    %v1330 = vsel %vm401, %v1311, 0
    %1332 = vmatprep.subr.mxu0 0.0
    %1333 = vmatpush1.msra.mxu0 %v1313
    %1334 = vmatprep.subr.mxu0 0.0
    %1335 = vmatpush1.msra.mxu0 0.0
    %1336 = vmatprep.subr.mxu0 0.0
    %1337 = vmatpush1.msra.mxu0 0.0
    %1338 = vmatprep.subr.mxu0 0.0
    %1339 = vmatpush1.msra.mxu0 0.0
    %1340 = vmatprep.subr.mxu0 0.0
    %1341 = vmatpush1.msra.mxu0 0.0
    %1342 = vmatprep.subr.mxu0 0.0
    %1343 = vmatpush1.msra.mxu0 0.0
    %1344 = vmatprep.subr.mxu0 0.0
    %1345 = vmatpush1.msra.mxu0 0.0
    %1346 = vmatprep.subr.mxu0 0.0
    %1347 = vmatpush1.msra.mxu0 0.0
    %1348 = vmatprep.subr.mxu0 0.0
    %1349 = vmatpush1.msra.mxu0 0.0
    %1350 = vmatprep.subr.mxu0 0.0
    %1351 = vmatpush1.msra.mxu0 0.0
    %1352 = vmatprep.subr.mxu0 0.0
    %1353 = vmatpush1.msra.mxu0 0.0
    %1354 = vmatprep.subr.mxu0 0.0
    %1355 = vmatpush1.msra.mxu0 0.0
    %1356 = vmatprep.subr.mxu0 0.0
    %1357 = vmatpush1.msra.mxu0 0.0
    %1358 = vmatprep.subr.mxu0 0.0
    %1359 = vmatpush1.msra.mxu0 0.0
    %1360 = vmatprep.subr.mxu0 0.0
    %1361 = vmatpush1.msra.mxu0 0.0
    %1362 = vmatprep.subr.mxu0 0.0
    %1363 = vmatpush1.msra.mxu0 0.0
    %1364 = vmatprep.subr.mxu0 0.0
    %1365 = vmatpush1.msra.mxu0 0.0
    %1366 = vmatprep.subr.mxu0 0.0
    %1367 = vmatpush1.msra.mxu0 0.0
    %1368 = vmatprep.subr.mxu0 0.0
    %1369 = vmatpush1.msra.mxu0 0.0
    %1370 = vmatprep.subr.mxu0 0.0
    %1371 = vmatpush1.msra.mxu0 0.0
    %1372 = vmatprep.subr.mxu0 0.0
    %1373 = vmatpush1.msra.mxu0 0.0
    %1374 = vmatprep.subr.mxu0 0.0
    %1375 = vmatpush1.msra.mxu0 0.0
    %1376 = vmatprep.subr.mxu0 0.0
    %1377 = vmatpush1.msra.mxu0 0.0
    %1378 = vmatprep.subr.mxu0 0.0
    %1379 = vmatpush1.msra.mxu0 0.0
    %1380 = vmatprep.subr.mxu0 0.0
    %1381 = vmatpush1.msra.mxu0 0.0
    %1382 = vmatprep.subr.mxu0 0.0
    %1383 = vmatpush1.msra.mxu0 0.0
    %1384 = vmatprep.subr.mxu0 0.0
    %1385 = vmatpush1.msra.mxu0 0.0
    %1386 = vmatprep.subr.mxu0 0.0
    %1387 = vmatpush1.msra.mxu0 0.0
    %1388 = vmatprep.subr.mxu0 0.0
    %1389 = vmatpush1.msra.mxu0 0.0
    %1390 = vmatprep.subr.mxu0 0.0
    %1391 = vmatpush1.msra.mxu0 0.0
    %1392 = vmatprep.subr.mxu0 0.0
    %1393 = vmatpush1.msra.mxu0 0.0
    %1394 = vmatprep.subr.mxu0 0.0
    %1395 = vmatpush1.msra.mxu0 0.0
    %1396 = vmatprep.mubr.f32.mxu0 0.0
    %1397 = vmatmul.mubr.f32.gmra.mrb[0].mxu0 %v1315
    %v1398 = vpop.f32.mrb[0].mxu0
    %v1399 = vadd.f32 0.0, %v1398
    %v1400 = vpop.f32.mrb[0].mxu0
    %1401 = vmatprep.mubr.f32.mxu0 0.0
    %1402 = vmatmul.mubr.f32.gmra.mrb[0].mxu0 %v1318
    %v1403 = vpop.f32.mrb[0].mxu0
    %v1404 = vadd.f32 0.0, %v1403
    %v1405 = vpop.f32.mrb[0].mxu0
    %1406 = vmatprep.mubr.f32.mxu0 0.0
    %1407 = vmatmul.mubr.f32.gmra.mrb[0].mxu0 %v1321
    %v1408 = vpop.f32.mrb[0].mxu0
    %v1409 = vadd.f32 0.0, %v1408
    %v1410 = vpop.f32.mrb[0].mxu0
    %1411 = vmatprep.mubr.f32.mxu0 0.0
    %1412 = vmatmul.mubr.f32.gmra.mrb[0].mxu0 %v1324
    %v1413 = vpop.f32.mrb[0].mxu0
    %v1414 = vadd.f32 0.0, %v1413
    %v1415 = vpop.f32.mrb[0].mxu0
    %1416 = vmatprep.mubr.f32.mxu0 0.0
    %1417 = vmatmul.mubr.f32.gmra.mrb[0].mxu0 %v1327
    %v1418 = vpop.f32.mrb[0].mxu0
    %v1419 = vadd.f32 0.0, %v1418
    %v1420 = vpop.f32.mrb[0].mxu0
    %1421 = vmatprep.mubr.f32.mxu0 0.0
    %1422 = vmatmul.mubr.f32.gmra.mrb[0].mxu0 %v1330
    %v1423 = vpop.f32.mrb[0].mxu0
    %v1424 = vadd.f32 0.0, %v1423
    %v1425 = vpop.f32.mrb[0].mxu0
    %1426 = vdwg.mxu0
    %v1427 = vadd.f32 %v1053, %v1399
    %v1428 = vadd.f32 %v1058, %v1404
    %v1429 = vadd.f32 %v1063, %v1409
    %v1430 = vadd.f32 %v1068, %v1414
    %v1431 = vadd.f32 %v1073, %v1419
    %v1432 = vadd.f32 %v1078, %v1424
    %1433 = vrot.lane.b32.xlu0 %v389, 104
    %v1434 = vpop.permute.xlu0 %1433
    %1435 = vrot.lane.b32.xlu0 %v390, 104
    %v1436 = vpop.permute.xlu0 %1435
    %1437 = vrot.lane.b32.xlu0 %v391, 104
    %v1438 = vpop.permute.xlu0 %1437
    %1439 = vrot.lane.b32.xlu0 %v389, 72
    %v1440 = vpop.permute.xlu0 %1439
    %1441 = vrot.lane.b32.xlu0 %v390, 72
    %v1442 = vpop.permute.xlu0 %1441
    %1443 = vrot.lane.b32.xlu0 %v391, 72
    %v1444 = vpop.permute.xlu0 %1443
    %v1446 = vsel %vm401, %v1434, 0
    %v1449 = vsel %vm401, %v1436, 0
    %v1452 = vsel %vm401, %v1438, 0
    %v1455 = vsel %vm401, %v1440, 0
    %v1458 = vsel %vm401, %v1442, 0
    %v1461 = vsel %vm401, %v1444, 0
    %1463 = vmatprep.subr.bf16.mxu0 0
    %1464 = vmatpush1.bf16.xpose.msra.mxu0 %v1455
    %1465 = vmatprep.subr.bf16.mxu0 0
    %1466 = vmatpush1.bf16.xpose.msra.mxu0 %v1458
    %1467 = vmatprep.subr.bf16.mxu0 0
    %1468 = vmatpush1.bf16.xpose.msra.mxu0 %v1461
    %1469 = vmatprep.subr.bf16.mxu0 0
    %1470 = vmatpush1.bf16.xpose.msra.mxu0 0
    %1471 = vmatprep.subr.bf16.mxu0 0
    %1472 = vmatpush1.bf16.xpose.msra.mxu0 0
    %1473 = vmatprep.subr.bf16.mxu0 0
    %1474 = vmatpush1.bf16.xpose.msra.mxu0 0
    %1475 = vmatprep.subr.bf16.mxu0 0
    %1476 = vmatpush1.bf16.xpose.msra.mxu0 0
    %1477 = vmatprep.subr.bf16.mxu0 0
    %1478 = vmatpush1.bf16.xpose.msra.mxu0 0
    %1479 = vmatprep.subr.bf16.mxu0 0
    %1480 = vmatpush1.bf16.xpose.msra.mxu0 0
    %1481 = vmatprep.subr.bf16.mxu0 0
    %1482 = vmatpush1.bf16.xpose.msra.mxu0 0
    %1483 = vmatprep.subr.bf16.mxu0 0
    %1484 = vmatpush1.bf16.xpose.msra.mxu0 0
    %1485 = vmatprep.subr.bf16.mxu0 0
    %1486 = vmatpush1.bf16.xpose.msra.mxu0 0
    %1487 = vmatprep.subr.bf16.mxu0 0
    %1488 = vmatpush1.bf16.xpose.msra.mxu0 0
    %1489 = vmatprep.subr.bf16.mxu0 0
    %1490 = vmatpush1.bf16.xpose.msra.mxu0 0
    %1491 = vmatprep.subr.bf16.mxu0 0
    %1492 = vmatpush1.bf16.xpose.msra.mxu0 0
    %1493 = vmatprep.subr.bf16.mxu0 0
    %1494 = vmatpush1.bf16.xpose.msra.mxu0 0
    %1495 = vmatprep.mubr.bf16.mxu0 0
    %1496 = vmatmul.mubr.bf16.gmra.mrb[0].mxu0 %v1446
    %v1497 = vpop.f32.mrb[0].mxu0
    %v1498 = vadd.f32 %v67, %v1497
    %v1499 = vpop.f32.mrb[0].mxu0
    %v1500 = vpop.f32.mrb[0].mxu0
    %v1501 = vadd.f32 %v68, %v1500
    %v1502 = vpop.f32.mrb[0].mxu0
    %1503 = vmatprep.mubr.bf16.mxu0 0
    %1504 = vmatmul.mubr.bf16.gmra.mrb[0].mxu0 %v1449
    %v1505 = vpop.f32.mrb[0].mxu0
    %v1506 = vadd.f32 %v69, %v1505
    %v1507 = vpop.f32.mrb[0].mxu0
    %v1508 = vpop.f32.mrb[0].mxu0
    %v1509 = vadd.f32 %v70, %v1508
    %v1510 = vpop.f32.mrb[0].mxu0
    %1511 = vmatprep.mubr.bf16.mxu0 0
    %1512 = vmatmul.mubr.bf16.gmra.mrb[0].mxu0 %v1452
    %v1513 = vpop.f32.mrb[0].mxu0
    %v1514 = vadd.f32 %v71, %v1513
    %v1515 = vpop.f32.mrb[0].mxu0
    %v1516 = vpop.f32.mrb[0].mxu0
    %v1517 = vadd.f32 %v72, %v1516
    %v1518 = vpop.f32.mrb[0].mxu0
    %1519 = vdwg.mxu0
    %v1520 = vsel %vm124, %v1498, -inf
    %1521 = vmax.xlane.f32.xlu0 %v1520
    %v1522 = vpop.xlane.xlu0 %1521
    %v1523 = vsel %vm124, %v1501, -inf
    %1524 = vmax.xlane.f32.xlu0 %v1523
    %v1525 = vpop.xlane.xlu0 %1524
    %v1526 = vsel %vm124, %v1506, -inf
    %1527 = vmax.xlane.f32.xlu0 %v1526
    %v1528 = vpop.xlane.xlu0 %1527
    %v1529 = vsel %vm124, %v1509, -inf
    %1530 = vmax.xlane.f32.xlu0 %v1529
    %v1531 = vpop.xlane.xlu0 %1530
    %v1532 = vsel %vm124, %v1514, -inf
    %1533 = vmax.xlane.f32.xlu0 %v1532
    %v1534 = vpop.xlane.xlu0 %1533
    %v1535 = vsel %vm124, %v1517, -inf
    %1536 = vmax.xlane.f32.xlu0 %v1535
    %v1537 = vpop.xlane.xlu0 %1536
    %v1538 = vsub.f32 %v1498, %v1522
    %v1539 = vsub.f32 %v1501, %v1525
    %v1540 = vsub.f32 %v1506, %v1528
    %v1541 = vsub.f32 %v1509, %v1531
    %v1542 = vsub.f32 %v1514, %v1534
    %v1543 = vsub.f32 %v1517, %v1537
    %v1544 = vmul.f32 %v1538, 1.442695
    %v1545 = vpow.pop %v1544
    %v1546 = vmul.f32 %v1539, 1.442695
    %v1547 = vpow.pop %v1546
    %v1548 = vmul.f32 %v1540, 1.442695
    %v1549 = vpow.pop %v1548
    %v1550 = vmul.f32 %v1541, 1.442695
    %v1551 = vpow.pop %v1550
    %v1552 = vmul.f32 %v1542, 1.442695
    %v1553 = vpow.pop %v1552
    %v1554 = vmul.f32 %v1543, 1.442695
    %v1555 = vpow.pop %v1554
    %v1556 = vsel %vm124, %v1545, 0.0
    %1557 = vadd.xlane.f32.xlu0 %v1556
    %v1558 = vpop.xlane.xlu0 %1557
    %v1559 = vsel %vm124, %v1547, 0.0
    %1560 = vadd.xlane.f32.xlu0 %v1559
    %v1561 = vpop.xlane.xlu0 %1560
    %v1562 = vsel %vm124, %v1549, 0.0
    %1563 = vadd.xlane.f32.xlu0 %v1562
    %v1564 = vpop.xlane.xlu0 %1563
    %v1565 = vsel %vm124, %v1551, 0.0
    %1566 = vadd.xlane.f32.xlu0 %v1565
    %v1567 = vpop.xlane.xlu0 %1566
    %v1568 = vsel %vm124, %v1553, 0.0
    %1569 = vadd.xlane.f32.xlu0 %v1568
    %v1570 = vpop.xlane.xlu0 %1569
    %v1571 = vsel %vm124, %v1555, 0.0
    %1572 = vadd.xlane.f32.xlu0 %v1571
    %v1573 = vpop.xlane.xlu0 %1572
    %v1574 = vrcp.pop %v1558
    %v1575 = vrcp.pop %v1561
    %v1576 = vrcp.pop %v1564
    %v1577 = vrcp.pop %v1567
    %v1578 = vrcp.pop %v1570
    %v1579 = vrcp.pop %v1573
    %v1580 = vpack.c.bf16 %v1547, %v1545
    %v1581 = vpack.c.bf16 %v1551, %v1549
    %v1582 = vpack.c.bf16 %v1555, %v1553
    %1583 = vrot.lane.b32.xlu0 %v389, 40
    %v1584 = vpop.permute.xlu0 %1583
    %1585 = vrot.lane.b32.xlu0 %v390, 40
    %v1586 = vpop.permute.xlu0 %1585
    %1587 = vrot.lane.b32.xlu0 %v391, 40
    %v1588 = vpop.permute.xlu0 %1587
    %v1593 = vsel %vm124, %v1580, 0
    %v1596 = vsel %vm124, %v1581, 0
    %v1599 = vsel %vm124, %v1582, 0
    %1601 = vmatprep.subr.bf16.mxu0 0
    %1602 = vmatpush1.bf16.msra.mxu0 %v1584
    %1603 = vmatprep.subr.bf16.mxu0 0
    %1604 = vmatpush1.bf16.msra.mxu0 %v1586
    %1605 = vmatprep.subr.bf16.mxu0 0
    %1606 = vmatpush1.bf16.msra.mxu0 %v1588
    %1607 = vmatprep.subr.bf16.mxu0 0
    %1608 = vmatpush1.bf16.msra.mxu0 0
    %1609 = vmatprep.subr.bf16.mxu0 0
    %1610 = vmatpush1.bf16.msra.mxu0 0
    %1611 = vmatprep.subr.bf16.mxu0 0
    %1612 = vmatpush1.bf16.msra.mxu0 0
    %1613 = vmatprep.subr.bf16.mxu0 0
    %1614 = vmatpush1.bf16.msra.mxu0 0
    %1615 = vmatprep.subr.bf16.mxu0 0
    %1616 = vmatpush1.bf16.msra.mxu0 0
    %1617 = vmatprep.subr.bf16.mxu0 0
    %1618 = vmatpush1.bf16.msra.mxu0 0
    %1619 = vmatprep.subr.bf16.mxu0 0
    %1620 = vmatpush1.bf16.msra.mxu0 0
    %1621 = vmatprep.subr.bf16.mxu0 0
    %1622 = vmatpush1.bf16.msra.mxu0 0
    %1623 = vmatprep.subr.bf16.mxu0 0
    %1624 = vmatpush1.bf16.msra.mxu0 0
    %1625 = vmatprep.subr.bf16.mxu0 0
    %1626 = vmatpush1.bf16.msra.mxu0 0
    %1627 = vmatprep.subr.bf16.mxu0 0
    %1628 = vmatpush1.bf16.msra.mxu0 0
    %1629 = vmatprep.subr.bf16.mxu0 0
    %1630 = vmatpush1.bf16.msra.mxu0 0
    %1631 = vmatprep.subr.bf16.mxu0 0
    %1632 = vmatpush1.bf16.msra.mxu0 0
    %1633 = vmatprep.mubr.bf16.mxu0 0
    %1634 = vmatmul.mubr.bf16.gmra.mrb[0].mxu0 %v1593
    %v1635 = vpop.f32.mrb[0].mxu0
    %v1636 = vadd.f32 0.0, %v1635
    %v1637 = vpop.f32.mrb[0].mxu0
    %v1638 = vpop.f32.mrb[0].mxu0
    %v1639 = vadd.f32 0.0, %v1638
    %v1640 = vpop.f32.mrb[0].mxu0
    %1641 = vmatprep.mubr.bf16.mxu0 0
    %1642 = vmatmul.mubr.bf16.gmra.mrb[0].mxu0 %v1596
    %v1643 = vpop.f32.mrb[0].mxu0
    %v1644 = vadd.f32 0.0, %v1643
    %v1645 = vpop.f32.mrb[0].mxu0
    %v1646 = vpop.f32.mrb[0].mxu0
    %v1647 = vadd.f32 0.0, %v1646
    %v1648 = vpop.f32.mrb[0].mxu0
    %1649 = vmatprep.mubr.bf16.mxu0 0
    %1650 = vmatmul.mubr.bf16.gmra.mrb[0].mxu0 %v1599
    %v1651 = vpop.f32.mrb[0].mxu0
    %v1652 = vadd.f32 0.0, %v1651
    %v1653 = vpop.f32.mrb[0].mxu0
    %v1654 = vpop.f32.mrb[0].mxu0
    %v1655 = vadd.f32 0.0, %v1654
    %v1656 = vpop.f32.mrb[0].mxu0
    %1657 = vdwg.mxu0
    %v1658 = vmul.f32 %v1636, %v1574
    %v1659 = vmul.f32 %v1639, %v1575
    %v1660 = vmul.f32 %v1644, %v1576
    %v1661 = vmul.f32 %v1647, %v1577
    %v1662 = vmul.f32 %v1652, %v1578
    %v1663 = vmul.f32 %v1655, %v1579
    %s1664 = scalar_lea.vmem %s8, 24
    %v1665 = vld [vmem:[%s1664] sm:$0xff]
    %v1667 = vsel %vm401, %v1658, 0
    %v1670 = vsel %vm401, %v1659, 0
    %v1673 = vsel %vm401, %v1660, 0
    %v1676 = vsel %vm401, %v1661, 0
    %v1679 = vsel %vm401, %v1662, 0
    %v1682 = vsel %vm401, %v1663, 0
    %1684 = vmatprep.subr.mxu0 0.0
    %1685 = vmatpush1.msra.mxu0 %v1665
    %1686 = vmatprep.subr.mxu0 0.0
    %1687 = vmatpush1.msra.mxu0 0.0
    %1688 = vmatprep.subr.mxu0 0.0
    %1689 = vmatpush1.msra.mxu0 0.0
    %1690 = vmatprep.subr.mxu0 0.0
    %1691 = vmatpush1.msra.mxu0 0.0
    %1692 = vmatprep.subr.mxu0 0.0
    %1693 = vmatpush1.msra.mxu0 0.0
    %1694 = vmatprep.subr.mxu0 0.0
    %1695 = vmatpush1.msra.mxu0 0.0
    %1696 = vmatprep.subr.mxu0 0.0
    %1697 = vmatpush1.msra.mxu0 0.0
    %1698 = vmatprep.subr.mxu0 0.0
    %1699 = vmatpush1.msra.mxu0 0.0
    %1700 = vmatprep.subr.mxu0 0.0
    %1701 = vmatpush1.msra.mxu0 0.0
    %1702 = vmatprep.subr.mxu0 0.0
    %1703 = vmatpush1.msra.mxu0 0.0
    %1704 = vmatprep.subr.mxu0 0.0
    %1705 = vmatpush1.msra.mxu0 0.0
    %1706 = vmatprep.subr.mxu0 0.0
    %1707 = vmatpush1.msra.mxu0 0.0
    %1708 = vmatprep.subr.mxu0 0.0
    %1709 = vmatpush1.msra.mxu0 0.0
    %1710 = vmatprep.subr.mxu0 0.0
    %1711 = vmatpush1.msra.mxu0 0.0
    %1712 = vmatprep.subr.mxu0 0.0
    %1713 = vmatpush1.msra.mxu0 0.0
    %1714 = vmatprep.subr.mxu0 0.0
    %1715 = vmatpush1.msra.mxu0 0.0
    %1716 = vmatprep.subr.mxu0 0.0
    %1717 = vmatpush1.msra.mxu0 0.0
    %1718 = vmatprep.subr.mxu0 0.0
    %1719 = vmatpush1.msra.mxu0 0.0
    %1720 = vmatprep.subr.mxu0 0.0
    %1721 = vmatpush1.msra.mxu0 0.0
    %1722 = vmatprep.subr.mxu0 0.0
    %1723 = vmatpush1.msra.mxu0 0.0
    %1724 = vmatprep.subr.mxu0 0.0
    %1725 = vmatpush1.msra.mxu0 0.0
    %1726 = vmatprep.subr.mxu0 0.0
    %1727 = vmatpush1.msra.mxu0 0.0
    %1728 = vmatprep.subr.mxu0 0.0
    %1729 = vmatpush1.msra.mxu0 0.0
    %1730 = vmatprep.subr.mxu0 0.0
    %1731 = vmatpush1.msra.mxu0 0.0
    %1732 = vmatprep.subr.mxu0 0.0
    %1733 = vmatpush1.msra.mxu0 0.0
    %1734 = vmatprep.subr.mxu0 0.0
    %1735 = vmatpush1.msra.mxu0 0.0
    %1736 = vmatprep.subr.mxu0 0.0
    %1737 = vmatpush1.msra.mxu0 0.0
    %1738 = vmatprep.subr.mxu0 0.0
    %1739 = vmatpush1.msra.mxu0 0.0
    %1740 = vmatprep.subr.mxu0 0.0
    %1741 = vmatpush1.msra.mxu0 0.0
    %1742 = vmatprep.subr.mxu0 0.0
    %1743 = vmatpush1.msra.mxu0 0.0
    %1744 = vmatprep.subr.mxu0 0.0
    %1745 = vmatpush1.msra.mxu0 0.0
    %1746 = vmatprep.subr.mxu0 0.0
    %1747 = vmatpush1.msra.mxu0 0.0
    %1748 = vmatprep.mubr.f32.mxu0 0.0
    %1749 = vmatmul.mubr.f32.gmra.mrb[0].mxu0 %v1667
    %v1750 = vpop.f32.mrb[0].mxu0
    %v1751 = vadd.f32 0.0, %v1750
    %v1752 = vpop.f32.mrb[0].mxu0
    %1753 = vmatprep.mubr.f32.mxu0 0.0
    %1754 = vmatmul.mubr.f32.gmra.mrb[0].mxu0 %v1670
    %v1755 = vpop.f32.mrb[0].mxu0
    %v1756 = vadd.f32 0.0, %v1755
    %v1757 = vpop.f32.mrb[0].mxu0
    %1758 = vmatprep.mubr.f32.mxu0 0.0
    %1759 = vmatmul.mubr.f32.gmra.mrb[0].mxu0 %v1673
    %v1760 = vpop.f32.mrb[0].mxu0
    %v1761 = vadd.f32 0.0, %v1760
    %v1762 = vpop.f32.mrb[0].mxu0
    %1763 = vmatprep.mubr.f32.mxu0 0.0
    %1764 = vmatmul.mubr.f32.gmra.mrb[0].mxu0 %v1676
    %v1765 = vpop.f32.mrb[0].mxu0
    %v1766 = vadd.f32 0.0, %v1765
    %v1767 = vpop.f32.mrb[0].mxu0
    %1768 = vmatprep.mubr.f32.mxu0 0.0
    %1769 = vmatmul.mubr.f32.gmra.mrb[0].mxu0 %v1679
    %v1770 = vpop.f32.mrb[0].mxu0
    %v1771 = vadd.f32 0.0, %v1770
    %v1772 = vpop.f32.mrb[0].mxu0
    %1773 = vmatprep.mubr.f32.mxu0 0.0
    %1774 = vmatmul.mubr.f32.gmra.mrb[0].mxu0 %v1682
    %v1775 = vpop.f32.mrb[0].mxu0
    %v1776 = vadd.f32 0.0, %v1775
    %v1777 = vpop.f32.mrb[0].mxu0
    %1778 = vdwg.mxu0
    %v1779 = vadd.f32 %v1427, %v1751
    %v1780 = vadd.f32 %v1428, %v1756
    %v1781 = vadd.f32 %v1429, %v1761
    %v1782 = vadd.f32 %v1430, %v1766
    %v1783 = vadd.f32 %v1431, %v1771
    %v1784 = vadd.f32 %v1432, %v1776
    %v1785 = vadd.f32 %v169, %v1779
    %v1786 = vadd.f32 %v172, %v1780
    %v1787 = vadd.f32 %v177, %v1781
    %v1788 = vadd.f32 %v180, %v1782
    %v1789 = vadd.f32 %v185, %v1783
    %v1790 = vadd.f32 %v188, %v1784
    %v1791 = vld [vmem:[%s9] sm:$0x1]
    %v1793 = vlaneseq
    %v1794 = vshrl.u32 %v1793, 7
    %v1795 = vsub.s32 0, %v1794
    %v1796 = vrot.slane %v1791, %v1795
    %v1798 = vadd.f32 %v1785, %v1796
    %v1799 = vadd.f32 %v1786, %v1796
    %v1800 = vadd.f32 %v1787, %v1796
    %v1801 = vadd.f32 %v1788, %v1796
    %v1802 = vadd.f32 %v1789, %v1796
    %v1803 = vadd.f32 %v1790, %v1796
    %v1804 = vld [vmem:[%s10] sm:$0x1]
    %v1805 = vld [vmem:[%s11] sm:$0x1]
    %v1806 = vsel %vm193, %v1798, 0.0
    %1807 = vadd.xlane.f32.xlu0 %v1806
    %v1808 = vpop.xlane.xlu0 %1807
    %v1809 = vsel %vm193, %v1799, 0.0
    %1810 = vadd.xlane.f32.xlu0 %v1809
    %v1811 = vpop.xlane.xlu0 %1810
    %v1812 = vsel %vm193, %v1800, 0.0
    %1813 = vadd.xlane.f32.xlu0 %v1812
    %v1814 = vpop.xlane.xlu0 %1813
    %v1815 = vsel %vm193, %v1801, 0.0
    %1816 = vadd.xlane.f32.xlu0 %v1815
    %v1817 = vpop.xlane.xlu0 %1816
    %v1818 = vsel %vm193, %v1802, 0.0
    %1819 = vadd.xlane.f32.xlu0 %v1818
    %v1820 = vpop.xlane.xlu0 %1819
    %v1821 = vsel %vm193, %v1803, 0.0
    %1822 = vadd.xlane.f32.xlu0 %v1821
    %v1823 = vpop.xlane.xlu0 %1822
    %v1824 = vmul.f32 %v1808, %v212
    %v1825 = vmul.f32 %v1811, %v212
    %v1826 = vmul.f32 %v1814, %v212
    %v1827 = vmul.f32 %v1817, %v212
    %v1828 = vmul.f32 %v1820, %v212
    %v1829 = vmul.f32 %v1823, %v212
    %v1830 = vsub.f32 %v1798, %v1824
    %v1831 = vsub.f32 %v1799, %v1825
    %v1832 = vsub.f32 %v1800, %v1826
    %v1833 = vsub.f32 %v1801, %v1827
    %v1834 = vsub.f32 %v1802, %v1828
    %v1835 = vsub.f32 %v1803, %v1829
    %v1836 = vmul.f32 %v1830, %v1830
    %v1837 = vmul.f32 %v1831, %v1831
    %v1838 = vmul.f32 %v1832, %v1832
    %v1839 = vmul.f32 %v1833, %v1833
    %v1840 = vmul.f32 %v1834, %v1834
    %v1841 = vmul.f32 %v1835, %v1835
    %v1842 = vsel %vm193, %v1836, 0.0
    %1843 = vadd.xlane.f32.xlu0 %v1842
    %v1844 = vpop.xlane.xlu0 %1843
    %v1845 = vsel %vm193, %v1837, 0.0
    %1846 = vadd.xlane.f32.xlu0 %v1845
    %v1847 = vpop.xlane.xlu0 %1846
    %v1848 = vsel %vm193, %v1838, 0.0
    %1849 = vadd.xlane.f32.xlu0 %v1848
    %v1850 = vpop.xlane.xlu0 %1849
    %v1851 = vsel %vm193, %v1839, 0.0
    %1852 = vadd.xlane.f32.xlu0 %v1851
    %v1853 = vpop.xlane.xlu0 %1852
    %v1854 = vsel %vm193, %v1840, 0.0
    %1855 = vadd.xlane.f32.xlu0 %v1854
    %v1856 = vpop.xlane.xlu0 %1855
    %v1857 = vsel %vm193, %v1841, 0.0
    %1858 = vadd.xlane.f32.xlu0 %v1857
    %v1859 = vpop.xlane.xlu0 %1858
    %v1860 = vmul.f32 %v1844, %v212
    %v1861 = vmul.f32 %v1847, %v212
    %v1862 = vmul.f32 %v1850, %v212
    %v1863 = vmul.f32 %v1853, %v212
    %v1864 = vmul.f32 %v1856, %v212
    %v1865 = vmul.f32 %v1859, %v212
    %v1866 = vadd.f32 %v1860, 1e-06
    %v1867 = vadd.f32 %v1861, 1e-06
    %v1868 = vadd.f32 %v1862, 1e-06
    %v1869 = vadd.f32 %v1863, 1e-06
    %v1870 = vadd.f32 %v1864, 1e-06
    %v1871 = vadd.f32 %v1865, 1e-06
    %v1872 = vrsqrt.pop %v1866
    %v1873 = vrsqrt.pop %v1867
    %v1874 = vrsqrt.pop %v1868
    %v1875 = vrsqrt.pop %v1869
    %v1876 = vrsqrt.pop %v1870
    %v1877 = vrsqrt.pop %v1871
    %v1878 = vmul.f32 %v1830, %v1872
    %v1879 = vmul.f32 %v1831, %v1873
    %v1880 = vmul.f32 %v1832, %v1874
    %v1881 = vmul.f32 %v1833, %v1875
    %v1882 = vmul.f32 %v1834, %v1876
    %v1883 = vmul.f32 %v1835, %v1877
    %v1885 = vlaneseq
    %v1886 = vshrl.u32 %v1885, 7
    %v1887 = vsub.s32 0, %v1886
    %v1888 = vrot.slane %v1804, %v1887
    %v1890 = vmul.f32 %v1878, %v1888
    %v1891 = vmul.f32 %v1879, %v1888
    %v1892 = vmul.f32 %v1880, %v1888
    %v1893 = vmul.f32 %v1881, %v1888
    %v1894 = vmul.f32 %v1882, %v1888
    %v1895 = vmul.f32 %v1883, %v1888
    %v1897 = vlaneseq
    %v1898 = vshrl.u32 %v1897, 7
    %v1899 = vsub.s32 0, %v1898
    %v1900 = vrot.slane %v1805, %v1899
    %v1902 = vadd.f32 %v1890, %v1900
    %v1903 = vadd.f32 %v1891, %v1900
    %v1904 = vadd.f32 %v1892, %v1900
    %v1905 = vadd.f32 %v1893, %v1900
    %v1906 = vadd.f32 %v1894, %v1900
    %v1907 = vadd.f32 %v1895, %v1900
    %v1908 = vpack.c.bf16 %v1903, %v1902
    %v1909 = vpack.c.bf16 %v1905, %v1904
    %v1910 = vpack.c.bf16 %v1907, %v1906
    %v1911 = vld [vmem:[%s12] sm:$0xf]
    %v1912 = vld [vmem:[%s12 + $0x4] sm:$0xf]
    %v1913 = vld [vmem:[%s12 + $0x8] sm:$0xf]
    %v1914 = vld [vmem:[%s12 + $0xc] sm:$0xf]
    %v1915 = vld [vmem:[%s13] sm:$0x1]
    %v1917 = vlaneseq
    %v1918 = vshrl.u32 %v1917, 7
    %v1919 = vsub.s32 0, %v1918
    %v1920 = vrot.slane %v1915, %v1919
    %v1926 = vunpack.c.l.b16 %v1911
    %v1927 = vunpack.c.l.b16 %v1912
    %v1928 = vunpack.c.l.b16 %v1913
    %v1929 = vunpack.c.l.b16 %v1914
    %v1930 = vpack.c.b16 %v1927, %v1926
    %v1931 = vpack.c.b16 %v1929, %v1928
    %v1935 = vsel %vm193, %v1908, 0
    %v1938 = vsel %vm193, %v1909, 0
    %v1941 = vsel %vm193, %v1910, 0
    %1943 = vmatprep.subr.bf16.mxu0 0
    %1944 = vmatpush1.bf16.msra.mxu0 %v1930
    %1945 = vmatprep.subr.bf16.mxu0 0
    %1946 = vmatpush1.bf16.msra.mxu0 %v1931
    %1947 = vmatprep.subr.bf16.mxu0 0
    %1948 = vmatpush1.bf16.msra.mxu0 0
    %1949 = vmatprep.subr.bf16.mxu0 0
    %1950 = vmatpush1.bf16.msra.mxu0 0
    %1951 = vmatprep.subr.bf16.mxu0 0
    %1952 = vmatpush1.bf16.msra.mxu0 0
    %1953 = vmatprep.subr.bf16.mxu0 0
    %1954 = vmatpush1.bf16.msra.mxu0 0
    %1955 = vmatprep.subr.bf16.mxu0 0
    %1956 = vmatpush1.bf16.msra.mxu0 0
    %1957 = vmatprep.subr.bf16.mxu0 0
    %1958 = vmatpush1.bf16.msra.mxu0 0
    %1959 = vmatprep.subr.bf16.mxu0 0
    %1960 = vmatpush1.bf16.msra.mxu0 0
    %1961 = vmatprep.subr.bf16.mxu0 0
    %1962 = vmatpush1.bf16.msra.mxu0 0
    %1963 = vmatprep.subr.bf16.mxu0 0
    %1964 = vmatpush1.bf16.msra.mxu0 0
    %1965 = vmatprep.subr.bf16.mxu0 0
    %1966 = vmatpush1.bf16.msra.mxu0 0
    %1967 = vmatprep.subr.bf16.mxu0 0
    %1968 = vmatpush1.bf16.msra.mxu0 0
    %1969 = vmatprep.subr.bf16.mxu0 0
    %1970 = vmatpush1.bf16.msra.mxu0 0
    %1971 = vmatprep.subr.bf16.mxu0 0
    %1972 = vmatpush1.bf16.msra.mxu0 0
    %1973 = vmatprep.subr.bf16.mxu0 0
    %1974 = vmatpush1.bf16.msra.mxu0 0
    %1975 = vmatprep.mubr.bf16.mxu0 0
    %1976 = vmatmul.mubr.bf16.gmra.mrb[0].mxu0 %v1935
    %v1977 = vpop.f32.mrb[0].mxu0
    %v1978 = vadd.f32 %v1920, %v1977
    %v1979 = vpop.f32.mrb[0].mxu0
    %v1980 = vpop.f32.mrb[0].mxu0
    %v1981 = vadd.f32 %v1920, %v1980
    %v1982 = vpop.f32.mrb[0].mxu0
    %1983 = vmatprep.mubr.bf16.mxu0 0
    %1984 = vmatmul.mubr.bf16.gmra.mrb[0].mxu0 %v1938
    %v1985 = vpop.f32.mrb[0].mxu0
    %v1986 = vadd.f32 %v1920, %v1985
    %v1987 = vpop.f32.mrb[0].mxu0
    %v1988 = vpop.f32.mrb[0].mxu0
    %v1989 = vadd.f32 %v1920, %v1988
    %v1990 = vpop.f32.mrb[0].mxu0
    %1991 = vmatprep.mubr.bf16.mxu0 0
    %1992 = vmatmul.mubr.bf16.gmra.mrb[0].mxu0 %v1941
    %v1993 = vpop.f32.mrb[0].mxu0
    %v1994 = vadd.f32 %v1920, %v1993
    %v1995 = vpop.f32.mrb[0].mxu0
    %v1996 = vpop.f32.mrb[0].mxu0
    %v1997 = vadd.f32 %v1920, %v1996
    %v1998 = vpop.f32.mrb[0].mxu0
    %1999 = vdwg.mxu0
    %v2000 = vmul.f32 %v1978, %v1978
    %v2001 = vmul.f32 %v1981, %v1981
    %v2002 = vmul.f32 %v1986, %v1986
    %v2003 = vmul.f32 %v1989, %v1989
    %v2004 = vmul.f32 %v1994, %v1994
    %v2005 = vmul.f32 %v1997, %v1997
    %v2006 = vmul.f32 %v1978, %v2000
    %v2007 = vmul.f32 %v1981, %v2001
    %v2008 = vmul.f32 %v1986, %v2002
    %v2009 = vmul.f32 %v1989, %v2003
    %v2010 = vmul.f32 %v1994, %v2004
    %v2011 = vmul.f32 %v1997, %v2005
    %v2012 = vmul.f32 %v2006, 0.044715
    %v2013 = vmul.f32 %v2007, 0.044715
    %v2014 = vmul.f32 %v2008, 0.044715
    %v2015 = vmul.f32 %v2009, 0.044715
    %v2016 = vmul.f32 %v2010, 0.044715
    %v2017 = vmul.f32 %v2011, 0.044715
    %v2018 = vadd.f32 %v1978, %v2012
    %v2019 = vadd.f32 %v1981, %v2013
    %v2020 = vadd.f32 %v1986, %v2014
    %v2021 = vadd.f32 %v1989, %v2015
    %v2022 = vadd.f32 %v1994, %v2016
    %v2023 = vadd.f32 %v1997, %v2017
    %v2024 = vmul.f32 %v2018, 0.7978846
    %v2025 = vmul.f32 %v2019, 0.7978846
    %v2026 = vmul.f32 %v2020, 0.7978846
    %v2027 = vmul.f32 %v2021, 0.7978846
    %v2028 = vmul.f32 %v2022, 0.7978846
    %v2029 = vmul.f32 %v2023, 0.7978846
    %v2030 = vtanh.pop %v2024
    %v2031 = vtanh.pop %v2025
    %v2032 = vtanh.pop %v2026
    %v2033 = vtanh.pop %v2027
    %v2034 = vtanh.pop %v2028
    %v2035 = vtanh.pop %v2029
    %v2036 = vadd.f32 %v2030, 1.0
    %v2037 = vadd.f32 %v2031, 1.0
    %v2038 = vadd.f32 %v2032, 1.0
    %v2039 = vadd.f32 %v2033, 1.0
    %v2040 = vadd.f32 %v2034, 1.0
    %v2041 = vadd.f32 %v2035, 1.0
    %v2042 = vmul.f32 %v2036, 0.5
    %v2043 = vmul.f32 %v2037, 0.5
    %v2044 = vmul.f32 %v2038, 0.5
    %v2045 = vmul.f32 %v2039, 0.5
    %v2046 = vmul.f32 %v2040, 0.5
    %v2047 = vmul.f32 %v2041, 0.5
    %v2048 = vmul.f32 %v1978, %v2042
    %v2049 = vmul.f32 %v1981, %v2043
    %v2050 = vmul.f32 %v1986, %v2044
    %v2051 = vmul.f32 %v1989, %v2045
    %v2052 = vmul.f32 %v1994, %v2046
    %v2053 = vmul.f32 %v1997, %v2047
    %v2054 = vpack.c.bf16 %v2049, %v2048
    %v2055 = vpack.c.bf16 %v2051, %v2050
    %v2056 = vpack.c.bf16 %v2053, %v2052
    %v2057 = vld [vmem:[%s14] sm:$0xf]
    %v2058 = vld [vmem:[%s14 + $0x4] sm:$0xf]
    %v2059 = vld [vmem:[%s14 + $0x8] sm:$0xf]
    %v2060 = vld [vmem:[%s14 + $0xc] sm:$0xf]
    %v2061 = vld [vmem:[%s14 + $0x10] sm:$0xf]
    %v2062 = vld [vmem:[%s14 + $0x14] sm:$0xf]
    %v2063 = vld [vmem:[%s14 + $0x18] sm:$0xf]
    %v2064 = vld [vmem:[%s14 + $0x1c] sm:$0xf]
    %v2073 = vunpack.c.l.b16 %v2057
    %v2074 = vunpack.c.l.b16 %v2058
    %v2075 = vunpack.c.l.b16 %v2059
    %v2076 = vunpack.c.l.b16 %v2060
    %v2077 = vunpack.c.l.b16 %v2061
    %v2078 = vunpack.c.l.b16 %v2062
    %v2079 = vunpack.c.l.b16 %v2063
    %v2080 = vunpack.c.l.b16 %v2064
    %v2081 = vpack.c.b16 %v2074, %v2073
    %v2082 = vpack.c.b16 %v2076, %v2075
    %v2083 = vpack.c.b16 %v2078, %v2077
    %v2084 = vpack.c.b16 %v2080, %v2079
    %vm2089 = vcmask 523264
    %v2091 = vsel %vm2089, %v2054, 0
    %v2094 = vsel %vm2089, %v2055, 0
    %v2097 = vsel %vm2089, %v2056, 0
    %2099 = vmatprep.subr.bf16.mxu0 0
    %2100 = vmatpush1.bf16.msra.mxu0 %v2081
    %2101 = vmatprep.subr.bf16.mxu0 0
    %2102 = vmatpush1.bf16.msra.mxu0 %v2082
    %2103 = vmatprep.subr.bf16.mxu0 0
    %2104 = vmatpush1.bf16.msra.mxu0 %v2083
    %2105 = vmatprep.subr.bf16.mxu0 0
    %2106 = vmatpush1.bf16.msra.mxu0 %v2084
    %2107 = vmatprep.subr.bf16.mxu0 0
    %2108 = vmatpush1.bf16.msra.mxu0 0
    %2109 = vmatprep.subr.bf16.mxu0 0
    %2110 = vmatpush1.bf16.msra.mxu0 0
    %2111 = vmatprep.subr.bf16.mxu0 0
    %2112 = vmatpush1.bf16.msra.mxu0 0
    %2113 = vmatprep.subr.bf16.mxu0 0
    %2114 = vmatpush1.bf16.msra.mxu0 0
    %2115 = vmatprep.subr.bf16.mxu0 0
    %2116 = vmatpush1.bf16.msra.mxu0 0
    %2117 = vmatprep.subr.bf16.mxu0 0
    %2118 = vmatpush1.bf16.msra.mxu0 0
    %2119 = vmatprep.subr.bf16.mxu0 0
    %2120 = vmatpush1.bf16.msra.mxu0 0
    %2121 = vmatprep.subr.bf16.mxu0 0
    %2122 = vmatpush1.bf16.msra.mxu0 0
    %2123 = vmatprep.subr.bf16.mxu0 0
    %2124 = vmatpush1.bf16.msra.mxu0 0
    %2125 = vmatprep.subr.bf16.mxu0 0
    %2126 = vmatpush1.bf16.msra.mxu0 0
    %2127 = vmatprep.subr.bf16.mxu0 0
    %2128 = vmatpush1.bf16.msra.mxu0 0
    %2129 = vmatprep.subr.bf16.mxu0 0
    %2130 = vmatpush1.bf16.msra.mxu0 0
    %2131 = vmatprep.mubr.bf16.mxu0 0
    %2132 = vmatmul.mubr.bf16.gmra.mrb[0].mxu0 %v2091
    %v2133 = vpop.f32.mrb[0].mxu0
    %v2134 = vadd.f32 0.0, %v2133
    %v2135 = vpop.f32.mrb[0].mxu0
    %v2136 = vpop.f32.mrb[0].mxu0
    %v2137 = vadd.f32 0.0, %v2136
    %v2138 = vpop.f32.mrb[0].mxu0
    %2139 = vmatprep.mubr.bf16.mxu0 0
    %2140 = vmatmul.mubr.bf16.gmra.mrb[0].mxu0 %v2094
    %v2141 = vpop.f32.mrb[0].mxu0
    %v2142 = vadd.f32 0.0, %v2141
    %v2143 = vpop.f32.mrb[0].mxu0
    %v2144 = vpop.f32.mrb[0].mxu0
    %v2145 = vadd.f32 0.0, %v2144
    %v2146 = vpop.f32.mrb[0].mxu0
    %2147 = vmatprep.mubr.bf16.mxu0 0
    %2148 = vmatmul.mubr.bf16.gmra.mrb[0].mxu0 %v2097
    %v2149 = vpop.f32.mrb[0].mxu0
    %v2150 = vadd.f32 0.0, %v2149
    %v2151 = vpop.f32.mrb[0].mxu0
    %v2152 = vpop.f32.mrb[0].mxu0
    %v2153 = vadd.f32 0.0, %v2152
    %v2154 = vpop.f32.mrb[0].mxu0
    %2155 = vdwg.mxu0
    %v2156 = vadd.f32 %v1798, %v2134
    %v2157 = vadd.f32 %v1799, %v2137
    %v2158 = vadd.f32 %v1800, %v2142
    %v2159 = vadd.f32 %v1801, %v2145
    %v2160 = vadd.f32 %v1802, %v2150
    %v2161 = vadd.f32 %v1803, %v2153
    %v2162 = vld [vmem:[%s15] sm:$0x1]
    %v2164 = vlaneseq
    %v2165 = vshrl.u32 %v2164, 7
    %v2166 = vsub.s32 0, %v2165
    %v2167 = vrot.slane %v2162, %v2166
    %v2169 = vadd.f32 %v2156, %v2167
    %v2170 = vadd.f32 %v2157, %v2167
    %v2171 = vadd.f32 %v2158, %v2167
    %v2172 = vadd.f32 %v2159, %v2167
    %v2173 = vadd.f32 %v2160, %v2167
    %v2174 = vadd.f32 %v2161, %v2167
    %s2175 = scalar_lea.vmem %s4, 1
    %v2176 = vld [vmem:[%s2175] sm:$0x1]
    %s2177 = scalar_lea.vmem %s5, 1
    %v2178 = vld [vmem:[%s2177] sm:$0x1]
    %v2179 = vsel %vm193, %v2169, 0.0
    %2180 = vadd.xlane.f32.xlu0 %v2179
    %v2181 = vpop.xlane.xlu0 %2180
    %v2182 = vsel %vm193, %v2170, 0.0
    %2183 = vadd.xlane.f32.xlu0 %v2182
    %v2184 = vpop.xlane.xlu0 %2183
    %v2185 = vsel %vm193, %v2171, 0.0
    %2186 = vadd.xlane.f32.xlu0 %v2185
    %v2187 = vpop.xlane.xlu0 %2186
    %v2188 = vsel %vm193, %v2172, 0.0
    %2189 = vadd.xlane.f32.xlu0 %v2188
    %v2190 = vpop.xlane.xlu0 %2189
    %v2191 = vsel %vm193, %v2173, 0.0
    %2192 = vadd.xlane.f32.xlu0 %v2191
    %v2193 = vpop.xlane.xlu0 %2192
    %v2194 = vsel %vm193, %v2174, 0.0
    %2195 = vadd.xlane.f32.xlu0 %v2194
    %v2196 = vpop.xlane.xlu0 %2195
    %v2197 = vmul.f32 %v2181, %v212
    %v2198 = vmul.f32 %v2184, %v212
    %v2199 = vmul.f32 %v2187, %v212
    %v2200 = vmul.f32 %v2190, %v212
    %v2201 = vmul.f32 %v2193, %v212
    %v2202 = vmul.f32 %v2196, %v212
    %v2203 = vsub.f32 %v2169, %v2197
    %v2204 = vsub.f32 %v2170, %v2198
    %v2205 = vsub.f32 %v2171, %v2199
    %v2206 = vsub.f32 %v2172, %v2200
    %v2207 = vsub.f32 %v2173, %v2201
    %v2208 = vsub.f32 %v2174, %v2202
    %v2209 = vmul.f32 %v2203, %v2203
    %v2210 = vmul.f32 %v2204, %v2204
    %v2211 = vmul.f32 %v2205, %v2205
    %v2212 = vmul.f32 %v2206, %v2206
    %v2213 = vmul.f32 %v2207, %v2207
    %v2214 = vmul.f32 %v2208, %v2208
    %v2215 = vsel %vm193, %v2209, 0.0
    %2216 = vadd.xlane.f32.xlu0 %v2215
    %v2217 = vpop.xlane.xlu0 %2216
    %v2218 = vsel %vm193, %v2210, 0.0
    %2219 = vadd.xlane.f32.xlu0 %v2218
    %v2220 = vpop.xlane.xlu0 %2219
    %v2221 = vsel %vm193, %v2211, 0.0
    %2222 = vadd.xlane.f32.xlu0 %v2221
    %v2223 = vpop.xlane.xlu0 %2222
    %v2224 = vsel %vm193, %v2212, 0.0
    %2225 = vadd.xlane.f32.xlu0 %v2224
    %v2226 = vpop.xlane.xlu0 %2225
    %v2227 = vsel %vm193, %v2213, 0.0
    %2228 = vadd.xlane.f32.xlu0 %v2227
    %v2229 = vpop.xlane.xlu0 %2228
    %v2230 = vsel %vm193, %v2214, 0.0
    %2231 = vadd.xlane.f32.xlu0 %v2230
    %v2232 = vpop.xlane.xlu0 %2231
    %v2233 = vmul.f32 %v2217, %v212
    %v2234 = vmul.f32 %v2220, %v212
    %v2235 = vmul.f32 %v2223, %v212
    %v2236 = vmul.f32 %v2226, %v212
    %v2237 = vmul.f32 %v2229, %v212
    %v2238 = vmul.f32 %v2232, %v212
    %v2239 = vadd.f32 %v2233, 1e-06
    %v2240 = vadd.f32 %v2234, 1e-06
    %v2241 = vadd.f32 %v2235, 1e-06
    %v2242 = vadd.f32 %v2236, 1e-06
    %v2243 = vadd.f32 %v2237, 1e-06
    %v2244 = vadd.f32 %v2238, 1e-06
    %v2245 = vrsqrt.pop %v2239
    %v2246 = vrsqrt.pop %v2240
    %v2247 = vrsqrt.pop %v2241
    %v2248 = vrsqrt.pop %v2242
    %v2249 = vrsqrt.pop %v2243
    %v2250 = vrsqrt.pop %v2244
    %v2251 = vmul.f32 %v2203, %v2245
    %v2252 = vmul.f32 %v2204, %v2246
    %v2253 = vmul.f32 %v2205, %v2247
    %v2254 = vmul.f32 %v2206, %v2248
    %v2255 = vmul.f32 %v2207, %v2249
    %v2256 = vmul.f32 %v2208, %v2250
    %v2258 = vlaneseq
    %v2259 = vshrl.u32 %v2258, 7
    %v2260 = vsub.s32 0, %v2259
    %v2261 = vrot.slane %v2176, %v2260
    %v2263 = vmul.f32 %v2251, %v2261
    %v2264 = vmul.f32 %v2252, %v2261
    %v2265 = vmul.f32 %v2253, %v2261
    %v2266 = vmul.f32 %v2254, %v2261
    %v2267 = vmul.f32 %v2255, %v2261
    %v2268 = vmul.f32 %v2256, %v2261
    %v2270 = vlaneseq
    %v2271 = vshrl.u32 %v2270, 7
    %v2272 = vsub.s32 0, %v2271
    %v2273 = vrot.slane %v2178, %v2272
    %v2275 = vadd.f32 %v2263, %v2273
    %v2276 = vadd.f32 %v2264, %v2273
    %v2277 = vadd.f32 %v2265, %v2273
    %v2278 = vadd.f32 %v2266, %v2273
    %v2279 = vadd.f32 %v2267, %v2273
    %v2280 = vadd.f32 %v2268, %v2273
    %v2281 = vpack.c.bf16 %v2276, %v2275
    %v2282 = vpack.c.bf16 %v2278, %v2277
    %v2283 = vpack.c.bf16 %v2280, %v2279
    %s2284 = scalar_lea.vmem %s6, 16
    %v2285 = vld [vmem:[%s2284] sm:$0xf]
    %v2286 = vld [vmem:[%s2284 + $0x4] sm:$0xf]
    %v2287 = vld [vmem:[%s2284 + $0x8] sm:$0xf]
    %v2288 = vld [vmem:[%s2284 + $0xc] sm:$0xf]
    %s2289 = scalar_lea.vmem %s7, 1
    %v2290 = vld [vmem:[%s2289] sm:$0x1]
    %v2292 = vlaneseq
    %v2293 = vshrl.u32 %v2292, 7
    %v2294 = vsub.s32 0, %v2293
    %v2295 = vrot.slane %v2290, %v2294
    %v2301 = vunpack.c.l.b16 %v2285
    %v2302 = vunpack.c.l.b16 %v2286
    %v2303 = vunpack.c.l.b16 %v2287
    %v2304 = vunpack.c.l.b16 %v2288
    %v2305 = vpack.c.b16 %v2302, %v2301
    %v2306 = vpack.c.b16 %v2304, %v2303
    %v2310 = vsel %vm193, %v2281, 0
    %v2313 = vsel %vm193, %v2282, 0
    %v2316 = vsel %vm193, %v2283, 0
    %2318 = vmatprep.subr.bf16.mxu0 0
    %2319 = vmatpush1.bf16.msra.mxu0 %v2305
    %2320 = vmatprep.subr.bf16.mxu0 0
    %2321 = vmatpush1.bf16.msra.mxu0 %v2306
    %2322 = vmatprep.subr.bf16.mxu0 0
    %2323 = vmatpush1.bf16.msra.mxu0 0
    %2324 = vmatprep.subr.bf16.mxu0 0
    %2325 = vmatpush1.bf16.msra.mxu0 0
    %2326 = vmatprep.subr.bf16.mxu0 0
    %2327 = vmatpush1.bf16.msra.mxu0 0
    %2328 = vmatprep.subr.bf16.mxu0 0
    %2329 = vmatpush1.bf16.msra.mxu0 0
    %2330 = vmatprep.subr.bf16.mxu0 0
    %2331 = vmatpush1.bf16.msra.mxu0 0
    %2332 = vmatprep.subr.bf16.mxu0 0
    %2333 = vmatpush1.bf16.msra.mxu0 0
    %2334 = vmatprep.subr.bf16.mxu0 0
    %2335 = vmatpush1.bf16.msra.mxu0 0
    %2336 = vmatprep.subr.bf16.mxu0 0
    %2337 = vmatpush1.bf16.msra.mxu0 0
    %2338 = vmatprep.subr.bf16.mxu0 0
    %2339 = vmatpush1.bf16.msra.mxu0 0
    %2340 = vmatprep.subr.bf16.mxu0 0
    %2341 = vmatpush1.bf16.msra.mxu0 0
    %2342 = vmatprep.subr.bf16.mxu0 0
    %2343 = vmatpush1.bf16.msra.mxu0 0
    %2344 = vmatprep.subr.bf16.mxu0 0
    %2345 = vmatpush1.bf16.msra.mxu0 0
    %2346 = vmatprep.subr.bf16.mxu0 0
    %2347 = vmatpush1.bf16.msra.mxu0 0
    %2348 = vmatprep.subr.bf16.mxu0 0
    %2349 = vmatpush1.bf16.msra.mxu0 0
    %2350 = vmatprep.mubr.bf16.mxu0 0
    %2351 = vmatmul.mubr.bf16.gmra.mrb[0].mxu0 %v2310
    %v2352 = vpop.f32.mrb[0].mxu0
    %v2353 = vadd.f32 %v2295, %v2352
    %v2354 = vpop.f32.mrb[0].mxu0
    %v2355 = vpop.f32.mrb[0].mxu0
    %v2356 = vadd.f32 %v2295, %v2355
    %v2357 = vpop.f32.mrb[0].mxu0
    %2358 = vmatprep.mubr.bf16.mxu0 0
    %2359 = vmatmul.mubr.bf16.gmra.mrb[0].mxu0 %v2313
    %v2360 = vpop.f32.mrb[0].mxu0
    %v2361 = vadd.f32 %v2295, %v2360
    %v2362 = vpop.f32.mrb[0].mxu0
    %v2363 = vpop.f32.mrb[0].mxu0
    %v2364 = vadd.f32 %v2295, %v2363
    %v2365 = vpop.f32.mrb[0].mxu0
    %2366 = vmatprep.mubr.bf16.mxu0 0
    %2367 = vmatmul.mubr.bf16.gmra.mrb[0].mxu0 %v2316
    %v2368 = vpop.f32.mrb[0].mxu0
    %v2369 = vadd.f32 %v2295, %v2368
    %v2370 = vpop.f32.mrb[0].mxu0
    %v2371 = vpop.f32.mrb[0].mxu0
    %v2372 = vadd.f32 %v2295, %v2371
    %v2373 = vpop.f32.mrb[0].mxu0
    %2374 = vdwg.mxu0
    %v2375 = vpack.c.bf16 %v2356, %v2353
    %v2376 = vpack.c.bf16 %v2364, %v2361
    %v2377 = vpack.c.bf16 %v2372, %v2369
    %2381 = vrot.lane.b32.xlu0 %v2375, 96
    %v2382 = vpop.permute.xlu0 %2381
    %2383 = vrot.lane.b32.xlu0 %v2376, 96
    %v2384 = vpop.permute.xlu0 %2383
    %2385 = vrot.lane.b32.xlu0 %v2377, 96
    %v2386 = vpop.permute.xlu0 %2385
    %v2388 = vsel %vm401, %v2375, 0
    %v2391 = vsel %vm401, %v2376, 0
    %v2394 = vsel %vm401, %v2377, 0
    %v2397 = vsel %vm401, %v2382, 0
    %v2400 = vsel %vm401, %v2384, 0
    %v2403 = vsel %vm401, %v2386, 0
    %2405 = vmatprep.subr.bf16.mxu0 0
    %2406 = vmatpush1.bf16.xpose.msra.mxu0 %v2397
    %2407 = vmatprep.subr.bf16.mxu0 0
    %2408 = vmatpush1.bf16.xpose.msra.mxu0 %v2400
    %2409 = vmatprep.subr.bf16.mxu0 0
    %2410 = vmatpush1.bf16.xpose.msra.mxu0 %v2403
    %2411 = vmatprep.subr.bf16.mxu0 0
    %2412 = vmatpush1.bf16.xpose.msra.mxu0 0
    %2413 = vmatprep.subr.bf16.mxu0 0
    %2414 = vmatpush1.bf16.xpose.msra.mxu0 0
    %2415 = vmatprep.subr.bf16.mxu0 0
    %2416 = vmatpush1.bf16.xpose.msra.mxu0 0
    %2417 = vmatprep.subr.bf16.mxu0 0
    %2418 = vmatpush1.bf16.xpose.msra.mxu0 0
    %2419 = vmatprep.subr.bf16.mxu0 0
    %2420 = vmatpush1.bf16.xpose.msra.mxu0 0
    %2421 = vmatprep.subr.bf16.mxu0 0
    %2422 = vmatpush1.bf16.xpose.msra.mxu0 0
    %2423 = vmatprep.subr.bf16.mxu0 0
    %2424 = vmatpush1.bf16.xpose.msra.mxu0 0
    %2425 = vmatprep.subr.bf16.mxu0 0
    %2426 = vmatpush1.bf16.xpose.msra.mxu0 0
    %2427 = vmatprep.subr.bf16.mxu0 0
    %2428 = vmatpush1.bf16.xpose.msra.mxu0 0
    %2429 = vmatprep.subr.bf16.mxu0 0
    %2430 = vmatpush1.bf16.xpose.msra.mxu0 0
    %2431 = vmatprep.subr.bf16.mxu0 0
    %2432 = vmatpush1.bf16.xpose.msra.mxu0 0
    %2433 = vmatprep.subr.bf16.mxu0 0
    %2434 = vmatpush1.bf16.xpose.msra.mxu0 0
    %2435 = vmatprep.subr.bf16.mxu0 0
    %2436 = vmatpush1.bf16.xpose.msra.mxu0 0
    %2437 = vmatprep.mubr.bf16.mxu0 0
    %2438 = vmatmul.mubr.bf16.gmra.mrb[0].mxu0 %v2388
    %v2439 = vpop.f32.mrb[0].mxu0
    %v2440 = vadd.f32 %v67, %v2439
    %v2441 = vpop.f32.mrb[0].mxu0
    %v2442 = vpop.f32.mrb[0].mxu0
    %v2443 = vadd.f32 %v68, %v2442
    %v2444 = vpop.f32.mrb[0].mxu0
    %2445 = vmatprep.mubr.bf16.mxu0 0
    %2446 = vmatmul.mubr.bf16.gmra.mrb[0].mxu0 %v2391
    %v2447 = vpop.f32.mrb[0].mxu0
    %v2448 = vadd.f32 %v69, %v2447
    %v2449 = vpop.f32.mrb[0].mxu0
    %v2450 = vpop.f32.mrb[0].mxu0
    %v2451 = vadd.f32 %v70, %v2450
    %v2452 = vpop.f32.mrb[0].mxu0
    %2453 = vmatprep.mubr.bf16.mxu0 0
    %2454 = vmatmul.mubr.bf16.gmra.mrb[0].mxu0 %v2394
    %v2455 = vpop.f32.mrb[0].mxu0
    %v2456 = vadd.f32 %v71, %v2455
    %v2457 = vpop.f32.mrb[0].mxu0
    %v2458 = vpop.f32.mrb[0].mxu0
    %v2459 = vadd.f32 %v72, %v2458
    %v2460 = vpop.f32.mrb[0].mxu0
    %2461 = vdwg.mxu0
    %v2462 = vsel %vm124, %v2440, -inf
    %2463 = vmax.xlane.f32.xlu0 %v2462
    %v2464 = vpop.xlane.xlu0 %2463
    %v2465 = vsel %vm124, %v2443, -inf
    %2466 = vmax.xlane.f32.xlu0 %v2465
    %v2467 = vpop.xlane.xlu0 %2466
    %v2468 = vsel %vm124, %v2448, -inf
    %2469 = vmax.xlane.f32.xlu0 %v2468
    %v2470 = vpop.xlane.xlu0 %2469
    %v2471 = vsel %vm124, %v2451, -inf
    %2472 = vmax.xlane.f32.xlu0 %v2471
    %v2473 = vpop.xlane.xlu0 %2472
    %v2474 = vsel %vm124, %v2456, -inf
    %2475 = vmax.xlane.f32.xlu0 %v2474
    %v2476 = vpop.xlane.xlu0 %2475
    %v2477 = vsel %vm124, %v2459, -inf
    %2478 = vmax.xlane.f32.xlu0 %v2477
    %v2479 = vpop.xlane.xlu0 %2478
    %v2480 = vsub.f32 %v2440, %v2464
    %v2481 = vsub.f32 %v2443, %v2467
    %v2482 = vsub.f32 %v2448, %v2470
    %v2483 = vsub.f32 %v2451, %v2473
    %v2484 = vsub.f32 %v2456, %v2476
    %v2485 = vsub.f32 %v2459, %v2479
    %v2486 = vmul.f32 %v2480, 1.442695
    %v2487 = vpow.pop %v2486
    %v2488 = vmul.f32 %v2481, 1.442695
    %v2489 = vpow.pop %v2488
    %v2490 = vmul.f32 %v2482, 1.442695
    %v2491 = vpow.pop %v2490
    %v2492 = vmul.f32 %v2483, 1.442695
    %v2493 = vpow.pop %v2492
    %v2494 = vmul.f32 %v2484, 1.442695
    %v2495 = vpow.pop %v2494
    %v2496 = vmul.f32 %v2485, 1.442695
    %v2497 = vpow.pop %v2496
    %v2498 = vsel %vm124, %v2487, 0.0
    %2499 = vadd.xlane.f32.xlu0 %v2498
    %v2500 = vpop.xlane.xlu0 %2499
    %v2501 = vsel %vm124, %v2489, 0.0
    %2502 = vadd.xlane.f32.xlu0 %v2501
    %v2503 = vpop.xlane.xlu0 %2502
    %v2504 = vsel %vm124, %v2491, 0.0
    %2505 = vadd.xlane.f32.xlu0 %v2504
    %v2506 = vpop.xlane.xlu0 %2505
    %v2507 = vsel %vm124, %v2493, 0.0
    %2508 = vadd.xlane.f32.xlu0 %v2507
    %v2509 = vpop.xlane.xlu0 %2508
    %v2510 = vsel %vm124, %v2495, 0.0
    %2511 = vadd.xlane.f32.xlu0 %v2510
    %v2512 = vpop.xlane.xlu0 %2511
    %v2513 = vsel %vm124, %v2497, 0.0
    %2514 = vadd.xlane.f32.xlu0 %v2513
    %v2515 = vpop.xlane.xlu0 %2514
    %v2516 = vrcp.pop %v2500
    %v2517 = vrcp.pop %v2503
    %v2518 = vrcp.pop %v2506
    %v2519 = vrcp.pop %v2509
    %v2520 = vrcp.pop %v2512
    %v2521 = vrcp.pop %v2515
    %v2522 = vpack.c.bf16 %v2489, %v2487
    %v2523 = vpack.c.bf16 %v2493, %v2491
    %v2524 = vpack.c.bf16 %v2497, %v2495
    %2525 = vrot.lane.b32.xlu0 %v2375, 64
    %v2526 = vpop.permute.xlu0 %2525
    %2527 = vrot.lane.b32.xlu0 %v2376, 64
    %v2528 = vpop.permute.xlu0 %2527
    %2529 = vrot.lane.b32.xlu0 %v2377, 64
    %v2530 = vpop.permute.xlu0 %2529
    %v2535 = vsel %vm124, %v2522, 0
    %v2538 = vsel %vm124, %v2523, 0
    %v2541 = vsel %vm124, %v2524, 0
    %2543 = vmatprep.subr.bf16.mxu0 0
    %2544 = vmatpush1.bf16.msra.mxu0 %v2526
    %2545 = vmatprep.subr.bf16.mxu0 0
    %2546 = vmatpush1.bf16.msra.mxu0 %v2528
    %2547 = vmatprep.subr.bf16.mxu0 0
    %2548 = vmatpush1.bf16.msra.mxu0 %v2530
    %2549 = vmatprep.subr.bf16.mxu0 0
    %2550 = vmatpush1.bf16.msra.mxu0 0
    %2551 = vmatprep.subr.bf16.mxu0 0
    %2552 = vmatpush1.bf16.msra.mxu0 0
    %2553 = vmatprep.subr.bf16.mxu0 0
    %2554 = vmatpush1.bf16.msra.mxu0 0
    %2555 = vmatprep.subr.bf16.mxu0 0
    %2556 = vmatpush1.bf16.msra.mxu0 0
    %2557 = vmatprep.subr.bf16.mxu0 0
    %2558 = vmatpush1.bf16.msra.mxu0 0
    %2559 = vmatprep.subr.bf16.mxu0 0
    %2560 = vmatpush1.bf16.msra.mxu0 0
    %2561 = vmatprep.subr.bf16.mxu0 0
    %2562 = vmatpush1.bf16.msra.mxu0 0
    %2563 = vmatprep.subr.bf16.mxu0 0
    %2564 = vmatpush1.bf16.msra.mxu0 0
    %2565 = vmatprep.subr.bf16.mxu0 0
    %2566 = vmatpush1.bf16.msra.mxu0 0
    %2567 = vmatprep.subr.bf16.mxu0 0
    %2568 = vmatpush1.bf16.msra.mxu0 0
    %2569 = vmatprep.subr.bf16.mxu0 0
    %2570 = vmatpush1.bf16.msra.mxu0 0
    %2571 = vmatprep.subr.bf16.mxu0 0
    %2572 = vmatpush1.bf16.msra.mxu0 0
    %2573 = vmatprep.subr.bf16.mxu0 0
    %2574 = vmatpush1.bf16.msra.mxu0 0
    %2575 = vmatprep.mubr.bf16.mxu0 0
    %2576 = vmatmul.mubr.bf16.gmra.mrb[0].mxu0 %v2535
    %v2577 = vpop.f32.mrb[0].mxu0
    %v2578 = vadd.f32 0.0, %v2577
    %v2579 = vpop.f32.mrb[0].mxu0
    %v2580 = vpop.f32.mrb[0].mxu0
    %v2581 = vadd.f32 0.0, %v2580
    %v2582 = vpop.f32.mrb[0].mxu0
    %2583 = vmatprep.mubr.bf16.mxu0 0
    %2584 = vmatmul.mubr.bf16.gmra.mrb[0].mxu0 %v2538
    %v2585 = vpop.f32.mrb[0].mxu0
    %v2586 = vadd.f32 0.0, %v2585
    %v2587 = vpop.f32.mrb[0].mxu0
    %v2588 = vpop.f32.mrb[0].mxu0
    %v2589 = vadd.f32 0.0, %v2588
    %v2590 = vpop.f32.mrb[0].mxu0
    %2591 = vmatprep.mubr.bf16.mxu0 0
    %2592 = vmatmul.mubr.bf16.gmra.mrb[0].mxu0 %v2541
    %v2593 = vpop.f32.mrb[0].mxu0
    %v2594 = vadd.f32 0.0, %v2593
    %v2595 = vpop.f32.mrb[0].mxu0
    %v2596 = vpop.f32.mrb[0].mxu0
    %v2597 = vadd.f32 0.0, %v2596
    %v2598 = vpop.f32.mrb[0].mxu0
    %2599 = vdwg.mxu0
    %v2600 = vmul.f32 %v2578, %v2516
    %v2601 = vmul.f32 %v2581, %v2517
    %v2602 = vmul.f32 %v2586, %v2518
    %v2603 = vmul.f32 %v2589, %v2519
    %v2604 = vmul.f32 %v2594, %v2520
    %v2605 = vmul.f32 %v2597, %v2521
    %s2606 = scalar_lea.vmem %s8, 32
    %v2607 = vld [vmem:[%s2606] sm:$0xff]
    %2608 = vrot.lane.b32.xlu0 %v2375, 120
    %v2609 = vpop.permute.xlu0 %2608
    %2610 = vrot.lane.b32.xlu0 %v2376, 120
    %v2611 = vpop.permute.xlu0 %2610
    %2612 = vrot.lane.b32.xlu0 %v2377, 120
    %v2613 = vpop.permute.xlu0 %2612
    %2614 = vrot.lane.b32.xlu0 %v2375, 88
    %v2615 = vpop.permute.xlu0 %2614
    %2616 = vrot.lane.b32.xlu0 %v2376, 88
    %v2617 = vpop.permute.xlu0 %2616
    %2618 = vrot.lane.b32.xlu0 %v2377, 88
    %v2619 = vpop.permute.xlu0 %2618
    %v2621 = vsel %vm401, %v2609, 0
    %v2624 = vsel %vm401, %v2611, 0
    %v2627 = vsel %vm401, %v2613, 0
    %v2630 = vsel %vm401, %v2615, 0
    %v2633 = vsel %vm401, %v2617, 0
    %v2636 = vsel %vm401, %v2619, 0
    %2638 = vmatprep.subr.bf16.mxu0 0
    %2639 = vmatpush1.bf16.xpose.msra.mxu0 %v2630
    %2640 = vmatprep.subr.bf16.mxu0 0
    %2641 = vmatpush1.bf16.xpose.msra.mxu0 %v2633
    %2642 = vmatprep.subr.bf16.mxu0 0
    %2643 = vmatpush1.bf16.xpose.msra.mxu0 %v2636
    %2644 = vmatprep.subr.bf16.mxu0 0
    %2645 = vmatpush1.bf16.xpose.msra.mxu0 0
    %2646 = vmatprep.subr.bf16.mxu0 0
    %2647 = vmatpush1.bf16.xpose.msra.mxu0 0
    %2648 = vmatprep.subr.bf16.mxu0 0
    %2649 = vmatpush1.bf16.xpose.msra.mxu0 0
    %2650 = vmatprep.subr.bf16.mxu0 0
    %2651 = vmatpush1.bf16.xpose.msra.mxu0 0
    %2652 = vmatprep.subr.bf16.mxu0 0
    %2653 = vmatpush1.bf16.xpose.msra.mxu0 0
    %2654 = vmatprep.subr.bf16.mxu0 0
    %2655 = vmatpush1.bf16.xpose.msra.mxu0 0
    %2656 = vmatprep.subr.bf16.mxu0 0
    %2657 = vmatpush1.bf16.xpose.msra.mxu0 0
    %2658 = vmatprep.subr.bf16.mxu0 0
    %2659 = vmatpush1.bf16.xpose.msra.mxu0 0
    %2660 = vmatprep.subr.bf16.mxu0 0
    %2661 = vmatpush1.bf16.xpose.msra.mxu0 0
    %2662 = vmatprep.subr.bf16.mxu0 0
    %2663 = vmatpush1.bf16.xpose.msra.mxu0 0
    %2664 = vmatprep.subr.bf16.mxu0 0
    %2665 = vmatpush1.bf16.xpose.msra.mxu0 0
    %2666 = vmatprep.subr.bf16.mxu0 0
    %2667 = vmatpush1.bf16.xpose.msra.mxu0 0
    %2668 = vmatprep.subr.bf16.mxu0 0
    %2669 = vmatpush1.bf16.xpose.msra.mxu0 0
    %2670 = vmatprep.mubr.bf16.mxu0 0
    %2671 = vmatmul.mubr.bf16.gmra.mrb[0].mxu0 %v2621
    %v2672 = vpop.f32.mrb[0].mxu0
    %v2673 = vadd.f32 %v67, %v2672
    %v2674 = vpop.f32.mrb[0].mxu0
    %v2675 = vpop.f32.mrb[0].mxu0
    %v2676 = vadd.f32 %v68, %v2675
    %v2677 = vpop.f32.mrb[0].mxu0
    %2678 = vmatprep.mubr.bf16.mxu0 0
    %2679 = vmatmul.mubr.bf16.gmra.mrb[0].mxu0 %v2624
    %v2680 = vpop.f32.mrb[0].mxu0
    %v2681 = vadd.f32 %v69, %v2680
    %v2682 = vpop.f32.mrb[0].mxu0
    %v2683 = vpop.f32.mrb[0].mxu0
    %v2684 = vadd.f32 %v70, %v2683
    %v2685 = vpop.f32.mrb[0].mxu0
    %2686 = vmatprep.mubr.bf16.mxu0 0
    %2687 = vmatmul.mubr.bf16.gmra.mrb[0].mxu0 %v2627
    %v2688 = vpop.f32.mrb[0].mxu0
    %v2689 = vadd.f32 %v71, %v2688
    %v2690 = vpop.f32.mrb[0].mxu0
    %v2691 = vpop.f32.mrb[0].mxu0
    %v2692 = vadd.f32 %v72, %v2691
    %v2693 = vpop.f32.mrb[0].mxu0
    %2694 = vdwg.mxu0
    %v2695 = vsel %vm124, %v2673, -inf
    %2696 = vmax.xlane.f32.xlu0 %v2695
    %v2697 = vpop.xlane.xlu0 %2696
    %v2698 = vsel %vm124, %v2676, -inf
    %2699 = vmax.xlane.f32.xlu0 %v2698
    %v2700 = vpop.xlane.xlu0 %2699
    %v2701 = vsel %vm124, %v2681, -inf
    %2702 = vmax.xlane.f32.xlu0 %v2701
    %v2703 = vpop.xlane.xlu0 %2702
    %v2704 = vsel %vm124, %v2684, -inf
    %2705 = vmax.xlane.f32.xlu0 %v2704
    %v2706 = vpop.xlane.xlu0 %2705
    %v2707 = vsel %vm124, %v2689, -inf
    %2708 = vmax.xlane.f32.xlu0 %v2707
    %v2709 = vpop.xlane.xlu0 %2708
    %v2710 = vsel %vm124, %v2692, -inf
    %2711 = vmax.xlane.f32.xlu0 %v2710
    %v2712 = vpop.xlane.xlu0 %2711
    %v2713 = vsub.f32 %v2673, %v2697
    %v2714 = vsub.f32 %v2676, %v2700
    %v2715 = vsub.f32 %v2681, %v2703
    %v2716 = vsub.f32 %v2684, %v2706
    %v2717 = vsub.f32 %v2689, %v2709
    %v2718 = vsub.f32 %v2692, %v2712
    %v2719 = vmul.f32 %v2713, 1.442695
    %v2720 = vpow.pop %v2719
    %v2721 = vmul.f32 %v2714, 1.442695
    %v2722 = vpow.pop %v2721
    %v2723 = vmul.f32 %v2715, 1.442695
    %v2724 = vpow.pop %v2723
    %v2725 = vmul.f32 %v2716, 1.442695
    %v2726 = vpow.pop %v2725
    %v2727 = vmul.f32 %v2717, 1.442695
    %v2728 = vpow.pop %v2727
    %v2729 = vmul.f32 %v2718, 1.442695
    %v2730 = vpow.pop %v2729
    %v2731 = vsel %vm124, %v2720, 0.0
    %2732 = vadd.xlane.f32.xlu0 %v2731
    %v2733 = vpop.xlane.xlu0 %2732
    %v2734 = vsel %vm124, %v2722, 0.0
    %2735 = vadd.xlane.f32.xlu0 %v2734
    %v2736 = vpop.xlane.xlu0 %2735
    %v2737 = vsel %vm124, %v2724, 0.0
    %2738 = vadd.xlane.f32.xlu0 %v2737
    %v2739 = vpop.xlane.xlu0 %2738
    %v2740 = vsel %vm124, %v2726, 0.0
    %2741 = vadd.xlane.f32.xlu0 %v2740
    %v2742 = vpop.xlane.xlu0 %2741
    %v2743 = vsel %vm124, %v2728, 0.0
    %2744 = vadd.xlane.f32.xlu0 %v2743
    %v2745 = vpop.xlane.xlu0 %2744
    %v2746 = vsel %vm124, %v2730, 0.0
    %2747 = vadd.xlane.f32.xlu0 %v2746
    %v2748 = vpop.xlane.xlu0 %2747
    %v2749 = vrcp.pop %v2733
    %v2750 = vrcp.pop %v2736
    %v2751 = vrcp.pop %v2739
    %v2752 = vrcp.pop %v2742
    %v2753 = vrcp.pop %v2745
    %v2754 = vrcp.pop %v2748
    %v2755 = vpack.c.bf16 %v2722, %v2720
    %v2756 = vpack.c.bf16 %v2726, %v2724
    %v2757 = vpack.c.bf16 %v2730, %v2728
    %2758 = vrot.lane.b32.xlu0 %v2375, 56
    %v2759 = vpop.permute.xlu0 %2758
    %2760 = vrot.lane.b32.xlu0 %v2376, 56
    %v2761 = vpop.permute.xlu0 %2760
    %2762 = vrot.lane.b32.xlu0 %v2377, 56
    %v2763 = vpop.permute.xlu0 %2762
    %v2768 = vsel %vm124, %v2755, 0
    %v2771 = vsel %vm124, %v2756, 0
    %v2774 = vsel %vm124, %v2757, 0
    %2776 = vmatprep.subr.bf16.mxu0 0
    %2777 = vmatpush1.bf16.msra.mxu0 %v2759
    %2778 = vmatprep.subr.bf16.mxu0 0
    %2779 = vmatpush1.bf16.msra.mxu0 %v2761
    %2780 = vmatprep.subr.bf16.mxu0 0
    %2781 = vmatpush1.bf16.msra.mxu0 %v2763
    %2782 = vmatprep.subr.bf16.mxu0 0
    %2783 = vmatpush1.bf16.msra.mxu0 0
    %2784 = vmatprep.subr.bf16.mxu0 0
    %2785 = vmatpush1.bf16.msra.mxu0 0
    %2786 = vmatprep.subr.bf16.mxu0 0
    %2787 = vmatpush1.bf16.msra.mxu0 0
    %2788 = vmatprep.subr.bf16.mxu0 0
    %2789 = vmatpush1.bf16.msra.mxu0 0
    %2790 = vmatprep.subr.bf16.mxu0 0
    %2791 = vmatpush1.bf16.msra.mxu0 0
    %2792 = vmatprep.subr.bf16.mxu0 0
    %2793 = vmatpush1.bf16.msra.mxu0 0
    %2794 = vmatprep.subr.bf16.mxu0 0
    %2795 = vmatpush1.bf16.msra.mxu0 0
    %2796 = vmatprep.subr.bf16.mxu0 0
    %2797 = vmatpush1.bf16.msra.mxu0 0
    %2798 = vmatprep.subr.bf16.mxu0 0
    %2799 = vmatpush1.bf16.msra.mxu0 0
    %2800 = vmatprep.subr.bf16.mxu0 0
    %2801 = vmatpush1.bf16.msra.mxu0 0
    %2802 = vmatprep.subr.bf16.mxu0 0
    %2803 = vmatpush1.bf16.msra.mxu0 0
    %2804 = vmatprep.subr.bf16.mxu0 0
    %2805 = vmatpush1.bf16.msra.mxu0 0
    %2806 = vmatprep.subr.bf16.mxu0 0
    %2807 = vmatpush1.bf16.msra.mxu0 0
    %2808 = vmatprep.mubr.bf16.mxu0 0
    %2809 = vmatmul.mubr.bf16.gmra.mrb[0].mxu0 %v2768
    %v2810 = vpop.f32.mrb[0].mxu0
    %v2811 = vadd.f32 0.0, %v2810
    %v2812 = vpop.f32.mrb[0].mxu0
    %v2813 = vpop.f32.mrb[0].mxu0
    %v2814 = vadd.f32 0.0, %v2813
    %v2815 = vpop.f32.mrb[0].mxu0
    %2816 = vmatprep.mubr.bf16.mxu0 0
    %2817 = vmatmul.mubr.bf16.gmra.mrb[0].mxu0 %v2771
    %v2818 = vpop.f32.mrb[0].mxu0
    %v2819 = vadd.f32 0.0, %v2818
    %v2820 = vpop.f32.mrb[0].mxu0
    %v2821 = vpop.f32.mrb[0].mxu0
    %v2822 = vadd.f32 0.0, %v2821
    %v2823 = vpop.f32.mrb[0].mxu0
    %2824 = vmatprep.mubr.bf16.mxu0 0
    %2825 = vmatmul.mubr.bf16.gmra.mrb[0].mxu0 %v2774
    %v2826 = vpop.f32.mrb[0].mxu0
    %v2827 = vadd.f32 0.0, %v2826
    %v2828 = vpop.f32.mrb[0].mxu0
    %v2829 = vpop.f32.mrb[0].mxu0
    %v2830 = vadd.f32 0.0, %v2829
    %v2831 = vpop.f32.mrb[0].mxu0
    %2832 = vdwg.mxu0
    %v2833 = vmul.f32 %v2811, %v2749
    %v2834 = vmul.f32 %v2814, %v2750
    %v2835 = vmul.f32 %v2819, %v2751
    %v2836 = vmul.f32 %v2822, %v2752
    %v2837 = vmul.f32 %v2827, %v2753
    %v2838 = vmul.f32 %v2830, %v2754
    %s2839 = scalar_lea.vmem %s8, 40
    %v2840 = vld [vmem:[%s2839] sm:$0xff]
    %v2842 = vsel %vm401, %v2833, 0
    %v2845 = vsel %vm401, %v2834, 0
    %v2848 = vsel %vm401, %v2835, 0
    %v2851 = vsel %vm401, %v2836, 0
    %v2854 = vsel %vm401, %v2837, 0
    %v2857 = vsel %vm401, %v2838, 0
    %2859 = vmatprep.subr.mxu0 0.0
    %2860 = vmatpush1.msra.mxu0 %v2840
    %2861 = vmatprep.subr.mxu0 0.0
    %2862 = vmatpush1.msra.mxu0 0.0
    %2863 = vmatprep.subr.mxu0 0.0
    %2864 = vmatpush1.msra.mxu0 0.0
    %2865 = vmatprep.subr.mxu0 0.0
    %2866 = vmatpush1.msra.mxu0 0.0
    %2867 = vmatprep.subr.mxu0 0.0
    %2868 = vmatpush1.msra.mxu0 0.0
    %2869 = vmatprep.subr.mxu0 0.0
    %2870 = vmatpush1.msra.mxu0 0.0
    %2871 = vmatprep.subr.mxu0 0.0
    %2872 = vmatpush1.msra.mxu0 0.0
    %2873 = vmatprep.subr.mxu0 0.0
    %2874 = vmatpush1.msra.mxu0 0.0
    %2875 = vmatprep.subr.mxu0 0.0
    %2876 = vmatpush1.msra.mxu0 0.0
    %2877 = vmatprep.subr.mxu0 0.0
    %2878 = vmatpush1.msra.mxu0 0.0
    %2879 = vmatprep.subr.mxu0 0.0
    %2880 = vmatpush1.msra.mxu0 0.0
    %2881 = vmatprep.subr.mxu0 0.0
    %2882 = vmatpush1.msra.mxu0 0.0
    %2883 = vmatprep.subr.mxu0 0.0
    %2884 = vmatpush1.msra.mxu0 0.0
    %2885 = vmatprep.subr.mxu0 0.0
    %2886 = vmatpush1.msra.mxu0 0.0
    %2887 = vmatprep.subr.mxu0 0.0
    %2888 = vmatpush1.msra.mxu0 0.0
    %2889 = vmatprep.subr.mxu0 0.0
    %2890 = vmatpush1.msra.mxu0 0.0
    %2891 = vmatprep.subr.mxu0 0.0
    %2892 = vmatpush1.msra.mxu0 0.0
    %2893 = vmatprep.subr.mxu0 0.0
    %2894 = vmatpush1.msra.mxu0 0.0
    %2895 = vmatprep.subr.mxu0 0.0
    %2896 = vmatpush1.msra.mxu0 0.0
    %2897 = vmatprep.subr.mxu0 0.0
    %2898 = vmatpush1.msra.mxu0 0.0
    %2899 = vmatprep.subr.mxu0 0.0
    %2900 = vmatpush1.msra.mxu0 0.0
    %2901 = vmatprep.subr.mxu0 0.0
    %2902 = vmatpush1.msra.mxu0 0.0
    %2903 = vmatprep.subr.mxu0 0.0
    %2904 = vmatpush1.msra.mxu0 0.0
    %2905 = vmatprep.subr.mxu0 0.0
    %2906 = vmatpush1.msra.mxu0 0.0
    %2907 = vmatprep.subr.mxu0 0.0
    %2908 = vmatpush1.msra.mxu0 0.0
    %2909 = vmatprep.subr.mxu0 0.0
    %2910 = vmatpush1.msra.mxu0 0.0
    %2911 = vmatprep.subr.mxu0 0.0
    %2912 = vmatpush1.msra.mxu0 0.0
    %2913 = vmatprep.subr.mxu0 0.0
    %2914 = vmatpush1.msra.mxu0 0.0
    %2915 = vmatprep.subr.mxu0 0.0
    %2916 = vmatpush1.msra.mxu0 0.0
    %2917 = vmatprep.subr.mxu0 0.0
    %2918 = vmatpush1.msra.mxu0 0.0
    %2919 = vmatprep.subr.mxu0 0.0
    %2920 = vmatpush1.msra.mxu0 0.0
    %2921 = vmatprep.subr.mxu0 0.0
    %2922 = vmatpush1.msra.mxu0 0.0
    %2923 = vmatprep.mubr.f32.mxu0 0.0
    %2924 = vmatmul.mubr.f32.gmra.mrb[0].mxu0 %v2842
    %v2925 = vpop.f32.mrb[0].mxu0
    %v2926 = vadd.f32 0.0, %v2925
    %v2927 = vpop.f32.mrb[0].mxu0
    %2928 = vmatprep.mubr.f32.mxu0 0.0
    %2929 = vmatmul.mubr.f32.gmra.mrb[0].mxu0 %v2845
    %v2930 = vpop.f32.mrb[0].mxu0
    %v2931 = vadd.f32 0.0, %v2930
    %v2932 = vpop.f32.mrb[0].mxu0
    %2933 = vmatprep.mubr.f32.mxu0 0.0
    %2934 = vmatmul.mubr.f32.gmra.mrb[0].mxu0 %v2848
    %v2935 = vpop.f32.mrb[0].mxu0
    %v2936 = vadd.f32 0.0, %v2935
    %v2937 = vpop.f32.mrb[0].mxu0
    %2938 = vmatprep.mubr.f32.mxu0 0.0
    %2939 = vmatmul.mubr.f32.gmra.mrb[0].mxu0 %v2851
    %v2940 = vpop.f32.mrb[0].mxu0
    %v2941 = vadd.f32 0.0, %v2940
    %v2942 = vpop.f32.mrb[0].mxu0
    %2943 = vmatprep.mubr.f32.mxu0 0.0
    %2944 = vmatmul.mubr.f32.gmra.mrb[0].mxu0 %v2854
    %v2945 = vpop.f32.mrb[0].mxu0
    %v2946 = vadd.f32 0.0, %v2945
    %v2947 = vpop.f32.mrb[0].mxu0
    %2948 = vmatprep.mubr.f32.mxu0 0.0
    %2949 = vmatmul.mubr.f32.gmra.mrb[0].mxu0 %v2857
    %v2950 = vpop.f32.mrb[0].mxu0
    %v2951 = vadd.f32 0.0, %v2950
    %v2952 = vpop.f32.mrb[0].mxu0
    %2953 = vdwg.mxu0
    %v2955 = vsel %vm401, %v2600, 0
    %v2958 = vsel %vm401, %v2601, 0
    %v2961 = vsel %vm401, %v2602, 0
    %v2964 = vsel %vm401, %v2603, 0
    %v2967 = vsel %vm401, %v2604, 0
    %v2970 = vsel %vm401, %v2605, 0
    %2972 = vmatprep.subr.mxu0 0.0
    %2973 = vmatpush1.msra.mxu0 %v2607
    %2974 = vmatprep.subr.mxu0 0.0
    %2975 = vmatpush1.msra.mxu0 0.0
    %2976 = vmatprep.subr.mxu0 0.0
    %2977 = vmatpush1.msra.mxu0 0.0
    %2978 = vmatprep.subr.mxu0 0.0
    %2979 = vmatpush1.msra.mxu0 0.0
    %2980 = vmatprep.subr.mxu0 0.0
    %2981 = vmatpush1.msra.mxu0 0.0
    %2982 = vmatprep.subr.mxu0 0.0
    %2983 = vmatpush1.msra.mxu0 0.0
    %2984 = vmatprep.subr.mxu0 0.0
    %2985 = vmatpush1.msra.mxu0 0.0
    %2986 = vmatprep.subr.mxu0 0.0
    %2987 = vmatpush1.msra.mxu0 0.0
    %2988 = vmatprep.subr.mxu0 0.0
    %2989 = vmatpush1.msra.mxu0 0.0
    %2990 = vmatprep.subr.mxu0 0.0
    %2991 = vmatpush1.msra.mxu0 0.0
    %2992 = vmatprep.subr.mxu0 0.0
    %2993 = vmatpush1.msra.mxu0 0.0
    %2994 = vmatprep.subr.mxu0 0.0
    %2995 = vmatpush1.msra.mxu0 0.0
    %2996 = vmatprep.subr.mxu0 0.0
    %2997 = vmatpush1.msra.mxu0 0.0
    %2998 = vmatprep.subr.mxu0 0.0
    %2999 = vmatpush1.msra.mxu0 0.0
    %3000 = vmatprep.subr.mxu0 0.0
    %3001 = vmatpush1.msra.mxu0 0.0
    %3002 = vmatprep.subr.mxu0 0.0
    %3003 = vmatpush1.msra.mxu0 0.0
    %3004 = vmatprep.subr.mxu0 0.0
    %3005 = vmatpush1.msra.mxu0 0.0
    %3006 = vmatprep.subr.mxu0 0.0
    %3007 = vmatpush1.msra.mxu0 0.0
    %3008 = vmatprep.subr.mxu0 0.0
    %3009 = vmatpush1.msra.mxu0 0.0
    %3010 = vmatprep.subr.mxu0 0.0
    %3011 = vmatpush1.msra.mxu0 0.0
    %3012 = vmatprep.subr.mxu0 0.0
    %3013 = vmatpush1.msra.mxu0 0.0
    %3014 = vmatprep.subr.mxu0 0.0
    %3015 = vmatpush1.msra.mxu0 0.0
    %3016 = vmatprep.subr.mxu0 0.0
    %3017 = vmatpush1.msra.mxu0 0.0
    %3018 = vmatprep.subr.mxu0 0.0
    %3019 = vmatpush1.msra.mxu0 0.0
    %3020 = vmatprep.subr.mxu0 0.0
    %3021 = vmatpush1.msra.mxu0 0.0
    %3022 = vmatprep.subr.mxu0 0.0
    %3023 = vmatpush1.msra.mxu0 0.0
    %3024 = vmatprep.subr.mxu0 0.0
    %3025 = vmatpush1.msra.mxu0 0.0
    %3026 = vmatprep.subr.mxu0 0.0
    %3027 = vmatpush1.msra.mxu0 0.0
    %3028 = vmatprep.subr.mxu0 0.0
    %3029 = vmatpush1.msra.mxu0 0.0
    %3030 = vmatprep.subr.mxu0 0.0
    %3031 = vmatpush1.msra.mxu0 0.0
    %3032 = vmatprep.subr.mxu0 0.0
    %3033 = vmatpush1.msra.mxu0 0.0
    %3034 = vmatprep.subr.mxu0 0.0
    %3035 = vmatpush1.msra.mxu0 0.0
    %3036 = vmatprep.mubr.f32.mxu0 0.0
    %3037 = vmatmul.mubr.f32.gmra.mrb[0].mxu0 %v2955
    %v3038 = vpop.f32.mrb[0].mxu0
    %v3039 = vadd.f32 %v2926, %v3038
    %v3040 = vpop.f32.mrb[0].mxu0
    %3041 = vmatprep.mubr.f32.mxu0 0.0
    %3042 = vmatmul.mubr.f32.gmra.mrb[0].mxu0 %v2958
    %v3043 = vpop.f32.mrb[0].mxu0
    %v3044 = vadd.f32 %v2931, %v3043
    %v3045 = vpop.f32.mrb[0].mxu0
    %3046 = vmatprep.mubr.f32.mxu0 0.0
    %3047 = vmatmul.mubr.f32.gmra.mrb[0].mxu0 %v2961
    %v3048 = vpop.f32.mrb[0].mxu0
    %v3049 = vadd.f32 %v2936, %v3048
    %v3050 = vpop.f32.mrb[0].mxu0
    %3051 = vmatprep.mubr.f32.mxu0 0.0
    %3052 = vmatmul.mubr.f32.gmra.mrb[0].mxu0 %v2964
    %v3053 = vpop.f32.mrb[0].mxu0
    %v3054 = vadd.f32 %v2941, %v3053
    %v3055 = vpop.f32.mrb[0].mxu0
    %3056 = vmatprep.mubr.f32.mxu0 0.0
    %3057 = vmatmul.mubr.f32.gmra.mrb[0].mxu0 %v2967
    %v3058 = vpop.f32.mrb[0].mxu0
    %v3059 = vadd.f32 %v2946, %v3058
    %v3060 = vpop.f32.mrb[0].mxu0
    %3061 = vmatprep.mubr.f32.mxu0 0.0
    %3062 = vmatmul.mubr.f32.gmra.mrb[0].mxu0 %v2970
    %v3063 = vpop.f32.mrb[0].mxu0
    %v3064 = vadd.f32 %v2951, %v3063
    %v3065 = vpop.f32.mrb[0].mxu0
    %3066 = vdwg.mxu0
    %3067 = vrot.lane.b32.xlu0 %v2375, 112
    %v3068 = vpop.permute.xlu0 %3067
    %3069 = vrot.lane.b32.xlu0 %v2376, 112
    %v3070 = vpop.permute.xlu0 %3069
    %3071 = vrot.lane.b32.xlu0 %v2377, 112
    %v3072 = vpop.permute.xlu0 %3071
    %3073 = vrot.lane.b32.xlu0 %v2375, 80
    %v3074 = vpop.permute.xlu0 %3073
    %3075 = vrot.lane.b32.xlu0 %v2376, 80
    %v3076 = vpop.permute.xlu0 %3075
    %3077 = vrot.lane.b32.xlu0 %v2377, 80
    %v3078 = vpop.permute.xlu0 %3077
    %v3080 = vsel %vm401, %v3068, 0
    %v3083 = vsel %vm401, %v3070, 0
    %v3086 = vsel %vm401, %v3072, 0
    %v3089 = vsel %vm401, %v3074, 0
    %v3092 = vsel %vm401, %v3076, 0
    %v3095 = vsel %vm401, %v3078, 0
    %3097 = vmatprep.subr.bf16.mxu0 0
    %3098 = vmatpush1.bf16.xpose.msra.mxu0 %v3089
    %3099 = vmatprep.subr.bf16.mxu0 0
    %3100 = vmatpush1.bf16.xpose.msra.mxu0 %v3092
    %3101 = vmatprep.subr.bf16.mxu0 0
    %3102 = vmatpush1.bf16.xpose.msra.mxu0 %v3095
    %3103 = vmatprep.subr.bf16.mxu0 0
    %3104 = vmatpush1.bf16.xpose.msra.mxu0 0
    %3105 = vmatprep.subr.bf16.mxu0 0
    %3106 = vmatpush1.bf16.xpose.msra.mxu0 0
    %3107 = vmatprep.subr.bf16.mxu0 0
    %3108 = vmatpush1.bf16.xpose.msra.mxu0 0
    %3109 = vmatprep.subr.bf16.mxu0 0
    %3110 = vmatpush1.bf16.xpose.msra.mxu0 0
    %3111 = vmatprep.subr.bf16.mxu0 0
    %3112 = vmatpush1.bf16.xpose.msra.mxu0 0
    %3113 = vmatprep.subr.bf16.mxu0 0
    %3114 = vmatpush1.bf16.xpose.msra.mxu0 0
    %3115 = vmatprep.subr.bf16.mxu0 0
    %3116 = vmatpush1.bf16.xpose.msra.mxu0 0
    %3117 = vmatprep.subr.bf16.mxu0 0
    %3118 = vmatpush1.bf16.xpose.msra.mxu0 0
    %3119 = vmatprep.subr.bf16.mxu0 0
    %3120 = vmatpush1.bf16.xpose.msra.mxu0 0
    %3121 = vmatprep.subr.bf16.mxu0 0
    %3122 = vmatpush1.bf16.xpose.msra.mxu0 0
    %3123 = vmatprep.subr.bf16.mxu0 0
    %3124 = vmatpush1.bf16.xpose.msra.mxu0 0
    %3125 = vmatprep.subr.bf16.mxu0 0
    %3126 = vmatpush1.bf16.xpose.msra.mxu0 0
    %3127 = vmatprep.subr.bf16.mxu0 0
    %3128 = vmatpush1.bf16.xpose.msra.mxu0 0
    %3129 = vmatprep.mubr.bf16.mxu0 0
    %3130 = vmatmul.mubr.bf16.gmra.mrb[0].mxu0 %v3080
    %v3131 = vpop.f32.mrb[0].mxu0
    %v3132 = vadd.f32 %v67, %v3131
    %v3133 = vpop.f32.mrb[0].mxu0
    %v3134 = vpop.f32.mrb[0].mxu0
    %v3135 = vadd.f32 %v68, %v3134
    %v3136 = vpop.f32.mrb[0].mxu0
    %3137 = vmatprep.mubr.bf16.mxu0 0
    %3138 = vmatmul.mubr.bf16.gmra.mrb[0].mxu0 %v3083
    %v3139 = vpop.f32.mrb[0].mxu0
    %v3140 = vadd.f32 %v69, %v3139
    %v3141 = vpop.f32.mrb[0].mxu0
    %v3142 = vpop.f32.mrb[0].mxu0
    %v3143 = vadd.f32 %v70, %v3142
    %v3144 = vpop.f32.mrb[0].mxu0
    %3145 = vmatprep.mubr.bf16.mxu0 0
    %3146 = vmatmul.mubr.bf16.gmra.mrb[0].mxu0 %v3086
    %v3147 = vpop.f32.mrb[0].mxu0
    %v3148 = vadd.f32 %v71, %v3147
    %v3149 = vpop.f32.mrb[0].mxu0
    %v3150 = vpop.f32.mrb[0].mxu0
    %v3151 = vadd.f32 %v72, %v3150
    %v3152 = vpop.f32.mrb[0].mxu0
    %3153 = vdwg.mxu0
    %v3154 = vsel %vm124, %v3132, -inf
    %3155 = vmax.xlane.f32.xlu0 %v3154
    %v3156 = vpop.xlane.xlu0 %3155
    %v3157 = vsel %vm124, %v3135, -inf
    %3158 = vmax.xlane.f32.xlu0 %v3157
    %v3159 = vpop.xlane.xlu0 %3158
    %v3160 = vsel %vm124, %v3140, -inf
    %3161 = vmax.xlane.f32.xlu0 %v3160
    %v3162 = vpop.xlane.xlu0 %3161
    %v3163 = vsel %vm124, %v3143, -inf
    %3164 = vmax.xlane.f32.xlu0 %v3163
    %v3165 = vpop.xlane.xlu0 %3164
    %v3166 = vsel %vm124, %v3148, -inf
    %3167 = vmax.xlane.f32.xlu0 %v3166
    %v3168 = vpop.xlane.xlu0 %3167
    %v3169 = vsel %vm124, %v3151, -inf
    %3170 = vmax.xlane.f32.xlu0 %v3169
    %v3171 = vpop.xlane.xlu0 %3170
    %v3172 = vsub.f32 %v3132, %v3156
    %v3173 = vsub.f32 %v3135, %v3159
    %v3174 = vsub.f32 %v3140, %v3162
    %v3175 = vsub.f32 %v3143, %v3165
    %v3176 = vsub.f32 %v3148, %v3168
    %v3177 = vsub.f32 %v3151, %v3171
    %v3178 = vmul.f32 %v3172, 1.442695
    %v3179 = vpow.pop %v3178
    %v3180 = vmul.f32 %v3173, 1.442695
    %v3181 = vpow.pop %v3180
    %v3182 = vmul.f32 %v3174, 1.442695
    %v3183 = vpow.pop %v3182
    %v3184 = vmul.f32 %v3175, 1.442695
    %v3185 = vpow.pop %v3184
    %v3186 = vmul.f32 %v3176, 1.442695
    %v3187 = vpow.pop %v3186
    %v3188 = vmul.f32 %v3177, 1.442695
    %v3189 = vpow.pop %v3188
    %v3190 = vsel %vm124, %v3179, 0.0
    %3191 = vadd.xlane.f32.xlu0 %v3190
    %v3192 = vpop.xlane.xlu0 %3191
    %v3193 = vsel %vm124, %v3181, 0.0
    %3194 = vadd.xlane.f32.xlu0 %v3193
    %v3195 = vpop.xlane.xlu0 %3194
    %v3196 = vsel %vm124, %v3183, 0.0
    %3197 = vadd.xlane.f32.xlu0 %v3196
    %v3198 = vpop.xlane.xlu0 %3197
    %v3199 = vsel %vm124, %v3185, 0.0
    %3200 = vadd.xlane.f32.xlu0 %v3199
    %v3201 = vpop.xlane.xlu0 %3200
    %v3202 = vsel %vm124, %v3187, 0.0
    %3203 = vadd.xlane.f32.xlu0 %v3202
    %v3204 = vpop.xlane.xlu0 %3203
    %v3205 = vsel %vm124, %v3189, 0.0
    %3206 = vadd.xlane.f32.xlu0 %v3205
    %v3207 = vpop.xlane.xlu0 %3206
    %v3208 = vrcp.pop %v3192
    %v3209 = vrcp.pop %v3195
    %v3210 = vrcp.pop %v3198
    %v3211 = vrcp.pop %v3201
    %v3212 = vrcp.pop %v3204
    %v3213 = vrcp.pop %v3207
    %v3214 = vpack.c.bf16 %v3181, %v3179
    %v3215 = vpack.c.bf16 %v3185, %v3183
    %v3216 = vpack.c.bf16 %v3189, %v3187
    %3217 = vrot.lane.b32.xlu0 %v2375, 48
    %v3218 = vpop.permute.xlu0 %3217
    %3219 = vrot.lane.b32.xlu0 %v2376, 48
    %v3220 = vpop.permute.xlu0 %3219
    %3221 = vrot.lane.b32.xlu0 %v2377, 48
    %v3222 = vpop.permute.xlu0 %3221
    %v3227 = vsel %vm124, %v3214, 0
    %v3230 = vsel %vm124, %v3215, 0
    %v3233 = vsel %vm124, %v3216, 0
    %3235 = vmatprep.subr.bf16.mxu0 0
    %3236 = vmatpush1.bf16.msra.mxu0 %v3218
    %3237 = vmatprep.subr.bf16.mxu0 0
    %3238 = vmatpush1.bf16.msra.mxu0 %v3220
    %3239 = vmatprep.subr.bf16.mxu0 0
    %3240 = vmatpush1.bf16.msra.mxu0 %v3222
    %3241 = vmatprep.subr.bf16.mxu0 0
    %3242 = vmatpush1.bf16.msra.mxu0 0
    %3243 = vmatprep.subr.bf16.mxu0 0
    %3244 = vmatpush1.bf16.msra.mxu0 0
    %3245 = vmatprep.subr.bf16.mxu0 0
    %3246 = vmatpush1.bf16.msra.mxu0 0
    %3247 = vmatprep.subr.bf16.mxu0 0
    %3248 = vmatpush1.bf16.msra.mxu0 0
    %3249 = vmatprep.subr.bf16.mxu0 0
    %3250 = vmatpush1.bf16.msra.mxu0 0
    %3251 = vmatprep.subr.bf16.mxu0 0
    %3252 = vmatpush1.bf16.msra.mxu0 0
    %3253 = vmatprep.subr.bf16.mxu0 0
    %3254 = vmatpush1.bf16.msra.mxu0 0
    %3255 = vmatprep.subr.bf16.mxu0 0
    %3256 = vmatpush1.bf16.msra.mxu0 0
    %3257 = vmatprep.subr.bf16.mxu0 0
    %3258 = vmatpush1.bf16.msra.mxu0 0
    %3259 = vmatprep.subr.bf16.mxu0 0
    %3260 = vmatpush1.bf16.msra.mxu0 0
    %3261 = vmatprep.subr.bf16.mxu0 0
    %3262 = vmatpush1.bf16.msra.mxu0 0
    %3263 = vmatprep.subr.bf16.mxu0 0
    %3264 = vmatpush1.bf16.msra.mxu0 0
    %3265 = vmatprep.subr.bf16.mxu0 0
    %3266 = vmatpush1.bf16.msra.mxu0 0
    %3267 = vmatprep.mubr.bf16.mxu0 0
    %3268 = vmatmul.mubr.bf16.gmra.mrb[0].mxu0 %v3227
    %v3269 = vpop.f32.mrb[0].mxu0
    %v3270 = vadd.f32 0.0, %v3269
    %v3271 = vpop.f32.mrb[0].mxu0
    %v3272 = vpop.f32.mrb[0].mxu0
    %v3273 = vadd.f32 0.0, %v3272
    %v3274 = vpop.f32.mrb[0].mxu0
    %3275 = vmatprep.mubr.bf16.mxu0 0
    %3276 = vmatmul.mubr.bf16.gmra.mrb[0].mxu0 %v3230
    %v3277 = vpop.f32.mrb[0].mxu0
    %v3278 = vadd.f32 0.0, %v3277
    %v3279 = vpop.f32.mrb[0].mxu0
    %v3280 = vpop.f32.mrb[0].mxu0
    %v3281 = vadd.f32 0.0, %v3280
    %v3282 = vpop.f32.mrb[0].mxu0
    %3283 = vmatprep.mubr.bf16.mxu0 0
    %3284 = vmatmul.mubr.bf16.gmra.mrb[0].mxu0 %v3233
    %v3285 = vpop.f32.mrb[0].mxu0
    %v3286 = vadd.f32 0.0, %v3285
    %v3287 = vpop.f32.mrb[0].mxu0
    %v3288 = vpop.f32.mrb[0].mxu0
    %v3289 = vadd.f32 0.0, %v3288
    %v3290 = vpop.f32.mrb[0].mxu0
    %3291 = vdwg.mxu0
    %v3292 = vmul.f32 %v3270, %v3208
    %v3293 = vmul.f32 %v3273, %v3209
    %v3294 = vmul.f32 %v3278, %v3210
    %v3295 = vmul.f32 %v3281, %v3211
    %v3296 = vmul.f32 %v3286, %v3212
    %v3297 = vmul.f32 %v3289, %v3213
    %s3298 = scalar_lea.vmem %s8, 48
    %v3299 = vld [vmem:[%s3298] sm:$0xff]
    %v3301 = vsel %vm401, %v3292, 0
    %v3304 = vsel %vm401, %v3293, 0
    %v3307 = vsel %vm401, %v3294, 0
    %v3310 = vsel %vm401, %v3295, 0
    %v3313 = vsel %vm401, %v3296, 0
    %v3316 = vsel %vm401, %v3297, 0
    %3318 = vmatprep.subr.mxu0 0.0
    %3319 = vmatpush1.msra.mxu0 %v3299
    %3320 = vmatprep.subr.mxu0 0.0
    %3321 = vmatpush1.msra.mxu0 0.0
    %3322 = vmatprep.subr.mxu0 0.0
    %3323 = vmatpush1.msra.mxu0 0.0
    %3324 = vmatprep.subr.mxu0 0.0
    %3325 = vmatpush1.msra.mxu0 0.0
    %3326 = vmatprep.subr.mxu0 0.0
    %3327 = vmatpush1.msra.mxu0 0.0
    %3328 = vmatprep.subr.mxu0 0.0
    %3329 = vmatpush1.msra.mxu0 0.0
    %3330 = vmatprep.subr.mxu0 0.0
    %3331 = vmatpush1.msra.mxu0 0.0
    %3332 = vmatprep.subr.mxu0 0.0
    %3333 = vmatpush1.msra.mxu0 0.0
    %3334 = vmatprep.subr.mxu0 0.0
    %3335 = vmatpush1.msra.mxu0 0.0
    %3336 = vmatprep.subr.mxu0 0.0
    %3337 = vmatpush1.msra.mxu0 0.0
    %3338 = vmatprep.subr.mxu0 0.0
    %3339 = vmatpush1.msra.mxu0 0.0
    %3340 = vmatprep.subr.mxu0 0.0
    %3341 = vmatpush1.msra.mxu0 0.0
    %3342 = vmatprep.subr.mxu0 0.0
    %3343 = vmatpush1.msra.mxu0 0.0
    %3344 = vmatprep.subr.mxu0 0.0
    %3345 = vmatpush1.msra.mxu0 0.0
    %3346 = vmatprep.subr.mxu0 0.0
    %3347 = vmatpush1.msra.mxu0 0.0
    %3348 = vmatprep.subr.mxu0 0.0
    %3349 = vmatpush1.msra.mxu0 0.0
    %3350 = vmatprep.subr.mxu0 0.0
    %3351 = vmatpush1.msra.mxu0 0.0
    %3352 = vmatprep.subr.mxu0 0.0
    %3353 = vmatpush1.msra.mxu0 0.0
    %3354 = vmatprep.subr.mxu0 0.0
    %3355 = vmatpush1.msra.mxu0 0.0
    %3356 = vmatprep.subr.mxu0 0.0
    %3357 = vmatpush1.msra.mxu0 0.0
    %3358 = vmatprep.subr.mxu0 0.0
    %3359 = vmatpush1.msra.mxu0 0.0
    %3360 = vmatprep.subr.mxu0 0.0
    %3361 = vmatpush1.msra.mxu0 0.0
    %3362 = vmatprep.subr.mxu0 0.0
    %3363 = vmatpush1.msra.mxu0 0.0
    %3364 = vmatprep.subr.mxu0 0.0
    %3365 = vmatpush1.msra.mxu0 0.0
    %3366 = vmatprep.subr.mxu0 0.0
    %3367 = vmatpush1.msra.mxu0 0.0
    %3368 = vmatprep.subr.mxu0 0.0
    %3369 = vmatpush1.msra.mxu0 0.0
    %3370 = vmatprep.subr.mxu0 0.0
    %3371 = vmatpush1.msra.mxu0 0.0
    %3372 = vmatprep.subr.mxu0 0.0
    %3373 = vmatpush1.msra.mxu0 0.0
    %3374 = vmatprep.subr.mxu0 0.0
    %3375 = vmatpush1.msra.mxu0 0.0
    %3376 = vmatprep.subr.mxu0 0.0
    %3377 = vmatpush1.msra.mxu0 0.0
    %3378 = vmatprep.subr.mxu0 0.0
    %3379 = vmatpush1.msra.mxu0 0.0
    %3380 = vmatprep.subr.mxu0 0.0
    %3381 = vmatpush1.msra.mxu0 0.0
    %3382 = vmatprep.mubr.f32.mxu0 0.0
    %3383 = vmatmul.mubr.f32.gmra.mrb[0].mxu0 %v3301
    %v3384 = vpop.f32.mrb[0].mxu0
    %v3385 = vadd.f32 0.0, %v3384
    %v3386 = vpop.f32.mrb[0].mxu0
    %3387 = vmatprep.mubr.f32.mxu0 0.0
    %3388 = vmatmul.mubr.f32.gmra.mrb[0].mxu0 %v3304
    %v3389 = vpop.f32.mrb[0].mxu0
    %v3390 = vadd.f32 0.0, %v3389
    %v3391 = vpop.f32.mrb[0].mxu0
    %3392 = vmatprep.mubr.f32.mxu0 0.0
    %3393 = vmatmul.mubr.f32.gmra.mrb[0].mxu0 %v3307
    %v3394 = vpop.f32.mrb[0].mxu0
    %v3395 = vadd.f32 0.0, %v3394
    %v3396 = vpop.f32.mrb[0].mxu0
    %3397 = vmatprep.mubr.f32.mxu0 0.0
    %3398 = vmatmul.mubr.f32.gmra.mrb[0].mxu0 %v3310
    %v3399 = vpop.f32.mrb[0].mxu0
    %v3400 = vadd.f32 0.0, %v3399
    %v3401 = vpop.f32.mrb[0].mxu0
    %3402 = vmatprep.mubr.f32.mxu0 0.0
    %3403 = vmatmul.mubr.f32.gmra.mrb[0].mxu0 %v3313
    %v3404 = vpop.f32.mrb[0].mxu0
    %v3405 = vadd.f32 0.0, %v3404
    %v3406 = vpop.f32.mrb[0].mxu0
    %3407 = vmatprep.mubr.f32.mxu0 0.0
    %3408 = vmatmul.mubr.f32.gmra.mrb[0].mxu0 %v3316
    %v3409 = vpop.f32.mrb[0].mxu0
    %v3410 = vadd.f32 0.0, %v3409
    %v3411 = vpop.f32.mrb[0].mxu0
    %3412 = vdwg.mxu0
    %v3413 = vadd.f32 %v3039, %v3385
    %v3414 = vadd.f32 %v3044, %v3390
    %v3415 = vadd.f32 %v3049, %v3395
    %v3416 = vadd.f32 %v3054, %v3400
    %v3417 = vadd.f32 %v3059, %v3405
    %v3418 = vadd.f32 %v3064, %v3410
    %3419 = vrot.lane.b32.xlu0 %v2375, 104
    %v3420 = vpop.permute.xlu0 %3419
    %3421 = vrot.lane.b32.xlu0 %v2376, 104
    %v3422 = vpop.permute.xlu0 %3421
    %3423 = vrot.lane.b32.xlu0 %v2377, 104
    %v3424 = vpop.permute.xlu0 %3423
    %3425 = vrot.lane.b32.xlu0 %v2375, 72
    %v3426 = vpop.permute.xlu0 %3425
    %3427 = vrot.lane.b32.xlu0 %v2376, 72
    %v3428 = vpop.permute.xlu0 %3427
    %3429 = vrot.lane.b32.xlu0 %v2377, 72
    %v3430 = vpop.permute.xlu0 %3429
    %v3432 = vsel %vm401, %v3420, 0
    %v3435 = vsel %vm401, %v3422, 0
    %v3438 = vsel %vm401, %v3424, 0
    %v3441 = vsel %vm401, %v3426, 0
    %v3444 = vsel %vm401, %v3428, 0
    %v3447 = vsel %vm401, %v3430, 0
    %3449 = vmatprep.subr.bf16.mxu0 0
    %3450 = vmatpush1.bf16.xpose.msra.mxu0 %v3441
    %3451 = vmatprep.subr.bf16.mxu0 0
    %3452 = vmatpush1.bf16.xpose.msra.mxu0 %v3444
    %3453 = vmatprep.subr.bf16.mxu0 0
    %3454 = vmatpush1.bf16.xpose.msra.mxu0 %v3447
    %3455 = vmatprep.subr.bf16.mxu0 0
    %3456 = vmatpush1.bf16.xpose.msra.mxu0 0
    %3457 = vmatprep.subr.bf16.mxu0 0
    %3458 = vmatpush1.bf16.xpose.msra.mxu0 0
    %3459 = vmatprep.subr.bf16.mxu0 0
    %3460 = vmatpush1.bf16.xpose.msra.mxu0 0
    %3461 = vmatprep.subr.bf16.mxu0 0
    %3462 = vmatpush1.bf16.xpose.msra.mxu0 0
    %3463 = vmatprep.subr.bf16.mxu0 0
    %3464 = vmatpush1.bf16.xpose.msra.mxu0 0
    %3465 = vmatprep.subr.bf16.mxu0 0
    %3466 = vmatpush1.bf16.xpose.msra.mxu0 0
    %3467 = vmatprep.subr.bf16.mxu0 0
    %3468 = vmatpush1.bf16.xpose.msra.mxu0 0
    %3469 = vmatprep.subr.bf16.mxu0 0
    %3470 = vmatpush1.bf16.xpose.msra.mxu0 0
    %3471 = vmatprep.subr.bf16.mxu0 0
    %3472 = vmatpush1.bf16.xpose.msra.mxu0 0
    %3473 = vmatprep.subr.bf16.mxu0 0
    %3474 = vmatpush1.bf16.xpose.msra.mxu0 0
    %3475 = vmatprep.subr.bf16.mxu0 0
    %3476 = vmatpush1.bf16.xpose.msra.mxu0 0
    %3477 = vmatprep.subr.bf16.mxu0 0
    %3478 = vmatpush1.bf16.xpose.msra.mxu0 0
    %3479 = vmatprep.subr.bf16.mxu0 0
    %3480 = vmatpush1.bf16.xpose.msra.mxu0 0
    %3481 = vmatprep.mubr.bf16.mxu0 0
    %3482 = vmatmul.mubr.bf16.gmra.mrb[0].mxu0 %v3432
    %v3483 = vpop.f32.mrb[0].mxu0
    %v3484 = vadd.f32 %v67, %v3483
    %v3485 = vpop.f32.mrb[0].mxu0
    %v3486 = vpop.f32.mrb[0].mxu0
    %v3487 = vadd.f32 %v68, %v3486
    %v3488 = vpop.f32.mrb[0].mxu0
    %3489 = vmatprep.mubr.bf16.mxu0 0
    %3490 = vmatmul.mubr.bf16.gmra.mrb[0].mxu0 %v3435
    %v3491 = vpop.f32.mrb[0].mxu0
    %v3492 = vadd.f32 %v69, %v3491
    %v3493 = vpop.f32.mrb[0].mxu0
    %v3494 = vpop.f32.mrb[0].mxu0
    %v3495 = vadd.f32 %v70, %v3494
    %v3496 = vpop.f32.mrb[0].mxu0
    %3497 = vmatprep.mubr.bf16.mxu0 0
    %3498 = vmatmul.mubr.bf16.gmra.mrb[0].mxu0 %v3438
    %v3499 = vpop.f32.mrb[0].mxu0
    %v3500 = vadd.f32 %v71, %v3499
    %v3501 = vpop.f32.mrb[0].mxu0
    %v3502 = vpop.f32.mrb[0].mxu0
    %v3503 = vadd.f32 %v72, %v3502
    %v3504 = vpop.f32.mrb[0].mxu0
    %3505 = vdwg.mxu0
    %v3506 = vsel %vm124, %v3484, -inf
    %3507 = vmax.xlane.f32.xlu0 %v3506
    %v3508 = vpop.xlane.xlu0 %3507
    %v3509 = vsel %vm124, %v3487, -inf
    %3510 = vmax.xlane.f32.xlu0 %v3509
    %v3511 = vpop.xlane.xlu0 %3510
    %v3512 = vsel %vm124, %v3492, -inf
    %3513 = vmax.xlane.f32.xlu0 %v3512
    %v3514 = vpop.xlane.xlu0 %3513
    %v3515 = vsel %vm124, %v3495, -inf
    %3516 = vmax.xlane.f32.xlu0 %v3515
    %v3517 = vpop.xlane.xlu0 %3516
    %v3518 = vsel %vm124, %v3500, -inf
    %3519 = vmax.xlane.f32.xlu0 %v3518
    %v3520 = vpop.xlane.xlu0 %3519
    %v3521 = vsel %vm124, %v3503, -inf
    %3522 = vmax.xlane.f32.xlu0 %v3521
    %v3523 = vpop.xlane.xlu0 %3522
    %v3524 = vsub.f32 %v3484, %v3508
    %v3525 = vsub.f32 %v3487, %v3511
    %v3526 = vsub.f32 %v3492, %v3514
    %v3527 = vsub.f32 %v3495, %v3517
    %v3528 = vsub.f32 %v3500, %v3520
    %v3529 = vsub.f32 %v3503, %v3523
    %v3530 = vmul.f32 %v3524, 1.442695
    %v3531 = vpow.pop %v3530
    %v3532 = vmul.f32 %v3525, 1.442695
    %v3533 = vpow.pop %v3532
    %v3534 = vmul.f32 %v3526, 1.442695
    %v3535 = vpow.pop %v3534
    %v3536 = vmul.f32 %v3527, 1.442695
    %v3537 = vpow.pop %v3536
    %v3538 = vmul.f32 %v3528, 1.442695
    %v3539 = vpow.pop %v3538
    %v3540 = vmul.f32 %v3529, 1.442695
    %v3541 = vpow.pop %v3540
    %v3542 = vsel %vm124, %v3531, 0.0
    %3543 = vadd.xlane.f32.xlu0 %v3542
    %v3544 = vpop.xlane.xlu0 %3543
    %v3545 = vsel %vm124, %v3533, 0.0
    %3546 = vadd.xlane.f32.xlu0 %v3545
    %v3547 = vpop.xlane.xlu0 %3546
    %v3548 = vsel %vm124, %v3535, 0.0
    %3549 = vadd.xlane.f32.xlu0 %v3548
    %v3550 = vpop.xlane.xlu0 %3549
    %v3551 = vsel %vm124, %v3537, 0.0
    %3552 = vadd.xlane.f32.xlu0 %v3551
    %v3553 = vpop.xlane.xlu0 %3552
    %v3554 = vsel %vm124, %v3539, 0.0
    %3555 = vadd.xlane.f32.xlu0 %v3554
    %v3556 = vpop.xlane.xlu0 %3555
    %v3557 = vsel %vm124, %v3541, 0.0
    %3558 = vadd.xlane.f32.xlu0 %v3557
    %v3559 = vpop.xlane.xlu0 %3558
    %v3560 = vrcp.pop %v3544
    %v3561 = vrcp.pop %v3547
    %v3562 = vrcp.pop %v3550
    %v3563 = vrcp.pop %v3553
    %v3564 = vrcp.pop %v3556
    %v3565 = vrcp.pop %v3559
    %v3566 = vpack.c.bf16 %v3533, %v3531
    %v3567 = vpack.c.bf16 %v3537, %v3535
    %v3568 = vpack.c.bf16 %v3541, %v3539
    %3569 = vrot.lane.b32.xlu0 %v2375, 40
    %v3570 = vpop.permute.xlu0 %3569
    %3571 = vrot.lane.b32.xlu0 %v2376, 40
    %v3572 = vpop.permute.xlu0 %3571
    %3573 = vrot.lane.b32.xlu0 %v2377, 40
    %v3574 = vpop.permute.xlu0 %3573
    %v3579 = vsel %vm124, %v3566, 0
    %v3582 = vsel %vm124, %v3567, 0
    %v3585 = vsel %vm124, %v3568, 0
    %3587 = vmatprep.subr.bf16.mxu0 0
    %3588 = vmatpush1.bf16.msra.mxu0 %v3570
    %3589 = vmatprep.subr.bf16.mxu0 0
    %3590 = vmatpush1.bf16.msra.mxu0 %v3572
    %3591 = vmatprep.subr.bf16.mxu0 0
    %3592 = vmatpush1.bf16.msra.mxu0 %v3574
    %3593 = vmatprep.subr.bf16.mxu0 0
    %3594 = vmatpush1.bf16.msra.mxu0 0
    %3595 = vmatprep.subr.bf16.mxu0 0
    %3596 = vmatpush1.bf16.msra.mxu0 0
    %3597 = vmatprep.subr.bf16.mxu0 0
    %3598 = vmatpush1.bf16.msra.mxu0 0
    %3599 = vmatprep.subr.bf16.mxu0 0
    %3600 = vmatpush1.bf16.msra.mxu0 0
    %3601 = vmatprep.subr.bf16.mxu0 0
    %3602 = vmatpush1.bf16.msra.mxu0 0
    %3603 = vmatprep.subr.bf16.mxu0 0
    %3604 = vmatpush1.bf16.msra.mxu0 0
    %3605 = vmatprep.subr.bf16.mxu0 0
    %3606 = vmatpush1.bf16.msra.mxu0 0
    %3607 = vmatprep.subr.bf16.mxu0 0
    %3608 = vmatpush1.bf16.msra.mxu0 0
    %3609 = vmatprep.subr.bf16.mxu0 0
    %3610 = vmatpush1.bf16.msra.mxu0 0
    %3611 = vmatprep.subr.bf16.mxu0 0
    %3612 = vmatpush1.bf16.msra.mxu0 0
    %3613 = vmatprep.subr.bf16.mxu0 0
    %3614 = vmatpush1.bf16.msra.mxu0 0
    %3615 = vmatprep.subr.bf16.mxu0 0
    %3616 = vmatpush1.bf16.msra.mxu0 0
    %3617 = vmatprep.subr.bf16.mxu0 0
    %3618 = vmatpush1.bf16.msra.mxu0 0
    %3619 = vmatprep.mubr.bf16.mxu0 0
    %3620 = vmatmul.mubr.bf16.gmra.mrb[0].mxu0 %v3579
    %v3621 = vpop.f32.mrb[0].mxu0
    %v3622 = vadd.f32 0.0, %v3621
    %v3623 = vpop.f32.mrb[0].mxu0
    %v3624 = vpop.f32.mrb[0].mxu0
    %v3625 = vadd.f32 0.0, %v3624
    %v3626 = vpop.f32.mrb[0].mxu0
    %3627 = vmatprep.mubr.bf16.mxu0 0
    %3628 = vmatmul.mubr.bf16.gmra.mrb[0].mxu0 %v3582
    %v3629 = vpop.f32.mrb[0].mxu0
    %v3630 = vadd.f32 0.0, %v3629
    %v3631 = vpop.f32.mrb[0].mxu0
    %v3632 = vpop.f32.mrb[0].mxu0
    %v3633 = vadd.f32 0.0, %v3632
    %v3634 = vpop.f32.mrb[0].mxu0
    %3635 = vmatprep.mubr.bf16.mxu0 0
    %3636 = vmatmul.mubr.bf16.gmra.mrb[0].mxu0 %v3585
    %v3637 = vpop.f32.mrb[0].mxu0
    %v3638 = vadd.f32 0.0, %v3637
    %v3639 = vpop.f32.mrb[0].mxu0
    %v3640 = vpop.f32.mrb[0].mxu0
    %v3641 = vadd.f32 0.0, %v3640
    %v3642 = vpop.f32.mrb[0].mxu0
    %3643 = vdwg.mxu0
    %v3644 = vmul.f32 %v3622, %v3560
    %v3645 = vmul.f32 %v3625, %v3561
    %v3646 = vmul.f32 %v3630, %v3562
    %v3647 = vmul.f32 %v3633, %v3563
    %v3648 = vmul.f32 %v3638, %v3564
    %v3649 = vmul.f32 %v3641, %v3565
    %s3650 = scalar_lea.vmem %s8, 56
    %v3651 = vld [vmem:[%s3650] sm:$0xff]
    %v3653 = vsel %vm401, %v3644, 0
    %v3656 = vsel %vm401, %v3645, 0
    %v3659 = vsel %vm401, %v3646, 0
    %v3662 = vsel %vm401, %v3647, 0
    %v3665 = vsel %vm401, %v3648, 0
    %v3668 = vsel %vm401, %v3649, 0
    %3670 = vmatprep.subr.mxu0 0.0
    %3671 = vmatpush1.msra.mxu0 %v3651
    %3672 = vmatprep.subr.mxu0 0.0
    %3673 = vmatpush1.msra.mxu0 0.0
    %3674 = vmatprep.subr.mxu0 0.0
    %3675 = vmatpush1.msra.mxu0 0.0
    %3676 = vmatprep.subr.mxu0 0.0
    %3677 = vmatpush1.msra.mxu0 0.0
    %3678 = vmatprep.subr.mxu0 0.0
    %3679 = vmatpush1.msra.mxu0 0.0
    %3680 = vmatprep.subr.mxu0 0.0
    %3681 = vmatpush1.msra.mxu0 0.0
    %3682 = vmatprep.subr.mxu0 0.0
    %3683 = vmatpush1.msra.mxu0 0.0
    %3684 = vmatprep.subr.mxu0 0.0
    %3685 = vmatpush1.msra.mxu0 0.0
    %3686 = vmatprep.subr.mxu0 0.0
    %3687 = vmatpush1.msra.mxu0 0.0
    %3688 = vmatprep.subr.mxu0 0.0
    %3689 = vmatpush1.msra.mxu0 0.0
    %3690 = vmatprep.subr.mxu0 0.0
    %3691 = vmatpush1.msra.mxu0 0.0
    %3692 = vmatprep.subr.mxu0 0.0
    %3693 = vmatpush1.msra.mxu0 0.0
    %3694 = vmatprep.subr.mxu0 0.0
    %3695 = vmatpush1.msra.mxu0 0.0
    %3696 = vmatprep.subr.mxu0 0.0
    %3697 = vmatpush1.msra.mxu0 0.0
    %3698 = vmatprep.subr.mxu0 0.0
    %3699 = vmatpush1.msra.mxu0 0.0
    %3700 = vmatprep.subr.mxu0 0.0
    %3701 = vmatpush1.msra.mxu0 0.0
    %3702 = vmatprep.subr.mxu0 0.0
    %3703 = vmatpush1.msra.mxu0 0.0
    %3704 = vmatprep.subr.mxu0 0.0
    %3705 = vmatpush1.msra.mxu0 0.0
    %3706 = vmatprep.subr.mxu0 0.0
    %3707 = vmatpush1.msra.mxu0 0.0
    %3708 = vmatprep.subr.mxu0 0.0
    %3709 = vmatpush1.msra.mxu0 0.0
    %3710 = vmatprep.subr.mxu0 0.0
    %3711 = vmatpush1.msra.mxu0 0.0
    %3712 = vmatprep.subr.mxu0 0.0
    %3713 = vmatpush1.msra.mxu0 0.0
    %3714 = vmatprep.subr.mxu0 0.0
    %3715 = vmatpush1.msra.mxu0 0.0
    %3716 = vmatprep.subr.mxu0 0.0
    %3717 = vmatpush1.msra.mxu0 0.0
    %3718 = vmatprep.subr.mxu0 0.0
    %3719 = vmatpush1.msra.mxu0 0.0
    %3720 = vmatprep.subr.mxu0 0.0
    %3721 = vmatpush1.msra.mxu0 0.0
    %3722 = vmatprep.subr.mxu0 0.0
    %3723 = vmatpush1.msra.mxu0 0.0
    %3724 = vmatprep.subr.mxu0 0.0
    %3725 = vmatpush1.msra.mxu0 0.0
    %3726 = vmatprep.subr.mxu0 0.0
    %3727 = vmatpush1.msra.mxu0 0.0
    %3728 = vmatprep.subr.mxu0 0.0
    %3729 = vmatpush1.msra.mxu0 0.0
    %3730 = vmatprep.subr.mxu0 0.0
    %3731 = vmatpush1.msra.mxu0 0.0
    %3732 = vmatprep.subr.mxu0 0.0
    %3733 = vmatpush1.msra.mxu0 0.0
    %3734 = vmatprep.mubr.f32.mxu0 0.0
    %3735 = vmatmul.mubr.f32.gmra.mrb[0].mxu0 %v3653
    %v3736 = vpop.f32.mrb[0].mxu0
    %v3737 = vadd.f32 0.0, %v3736
    %v3738 = vpop.f32.mrb[0].mxu0
    %3739 = vmatprep.mubr.f32.mxu0 0.0
    %3740 = vmatmul.mubr.f32.gmra.mrb[0].mxu0 %v3656
    %v3741 = vpop.f32.mrb[0].mxu0
    %v3742 = vadd.f32 0.0, %v3741
    %v3743 = vpop.f32.mrb[0].mxu0
    %3744 = vmatprep.mubr.f32.mxu0 0.0
    %3745 = vmatmul.mubr.f32.gmra.mrb[0].mxu0 %v3659
    %v3746 = vpop.f32.mrb[0].mxu0
    %v3747 = vadd.f32 0.0, %v3746
    %v3748 = vpop.f32.mrb[0].mxu0
    %3749 = vmatprep.mubr.f32.mxu0 0.0
    %3750 = vmatmul.mubr.f32.gmra.mrb[0].mxu0 %v3662
    %v3751 = vpop.f32.mrb[0].mxu0
    %v3752 = vadd.f32 0.0, %v3751
    %v3753 = vpop.f32.mrb[0].mxu0
    %3754 = vmatprep.mubr.f32.mxu0 0.0
    %3755 = vmatmul.mubr.f32.gmra.mrb[0].mxu0 %v3665
    %v3756 = vpop.f32.mrb[0].mxu0
    %v3757 = vadd.f32 0.0, %v3756
    %v3758 = vpop.f32.mrb[0].mxu0
    %3759 = vmatprep.mubr.f32.mxu0 0.0
    %3760 = vmatmul.mubr.f32.gmra.mrb[0].mxu0 %v3668
    %v3761 = vpop.f32.mrb[0].mxu0
    %v3762 = vadd.f32 0.0, %v3761
    %v3763 = vpop.f32.mrb[0].mxu0
    %3764 = vdwg.mxu0
    %v3765 = vadd.f32 %v3413, %v3737
    %v3766 = vadd.f32 %v3414, %v3742
    %v3767 = vadd.f32 %v3415, %v3747
    %v3768 = vadd.f32 %v3416, %v3752
    %v3769 = vadd.f32 %v3417, %v3757
    %v3770 = vadd.f32 %v3418, %v3762
    %v3771 = vadd.f32 %v2169, %v3765
    %v3772 = vadd.f32 %v2170, %v3766
    %v3773 = vadd.f32 %v2171, %v3767
    %v3774 = vadd.f32 %v2172, %v3768
    %v3775 = vadd.f32 %v2173, %v3769
    %v3776 = vadd.f32 %v2174, %v3770
    %s3777 = scalar_lea.vmem %s9, 1
    %v3778 = vld [vmem:[%s3777] sm:$0x1]
    %v3780 = vlaneseq
    %v3781 = vshrl.u32 %v3780, 7
    %v3782 = vsub.s32 0, %v3781
    %v3783 = vrot.slane %v3778, %v3782
    %v3785 = vadd.f32 %v3771, %v3783
    %v3786 = vadd.f32 %v3772, %v3783
    %v3787 = vadd.f32 %v3773, %v3783
    %v3788 = vadd.f32 %v3774, %v3783
    %v3789 = vadd.f32 %v3775, %v3783
    %v3790 = vadd.f32 %v3776, %v3783
    %s3791 = scalar_lea.vmem %s10, 1
    %v3792 = vld [vmem:[%s3791] sm:$0x1]
    %s3793 = scalar_lea.vmem %s11, 1
    %v3794 = vld [vmem:[%s3793] sm:$0x1]
    %v3795 = vsel %vm193, %v3785, 0.0
    %3796 = vadd.xlane.f32.xlu0 %v3795
    %v3797 = vpop.xlane.xlu0 %3796
    %v3798 = vsel %vm193, %v3786, 0.0
    %3799 = vadd.xlane.f32.xlu0 %v3798
    %v3800 = vpop.xlane.xlu0 %3799
    %v3801 = vsel %vm193, %v3787, 0.0
    %3802 = vadd.xlane.f32.xlu0 %v3801
    %v3803 = vpop.xlane.xlu0 %3802
    %v3804 = vsel %vm193, %v3788, 0.0
    %3805 = vadd.xlane.f32.xlu0 %v3804
    %v3806 = vpop.xlane.xlu0 %3805
    %v3807 = vsel %vm193, %v3789, 0.0
    %3808 = vadd.xlane.f32.xlu0 %v3807
    %v3809 = vpop.xlane.xlu0 %3808
    %v3810 = vsel %vm193, %v3790, 0.0
    %3811 = vadd.xlane.f32.xlu0 %v3810
    %v3812 = vpop.xlane.xlu0 %3811
    %v3813 = vmul.f32 %v3797, %v212
    %v3814 = vmul.f32 %v3800, %v212
    %v3815 = vmul.f32 %v3803, %v212
    %v3816 = vmul.f32 %v3806, %v212
    %v3817 = vmul.f32 %v3809, %v212
    %v3818 = vmul.f32 %v3812, %v212
    %v3819 = vsub.f32 %v3785, %v3813
    %v3820 = vsub.f32 %v3786, %v3814
    %v3821 = vsub.f32 %v3787, %v3815
    %v3822 = vsub.f32 %v3788, %v3816
    %v3823 = vsub.f32 %v3789, %v3817
    %v3824 = vsub.f32 %v3790, %v3818
    %v3825 = vmul.f32 %v3819, %v3819
    %v3826 = vmul.f32 %v3820, %v3820
    %v3827 = vmul.f32 %v3821, %v3821
    %v3828 = vmul.f32 %v3822, %v3822
    %v3829 = vmul.f32 %v3823, %v3823
    %v3830 = vmul.f32 %v3824, %v3824
    %v3831 = vsel %vm193, %v3825, 0.0
    %3832 = vadd.xlane.f32.xlu0 %v3831
    %v3833 = vpop.xlane.xlu0 %3832
    %v3834 = vsel %vm193, %v3826, 0.0
    %3835 = vadd.xlane.f32.xlu0 %v3834
    %v3836 = vpop.xlane.xlu0 %3835
    %v3837 = vsel %vm193, %v3827, 0.0
    %3838 = vadd.xlane.f32.xlu0 %v3837
    %v3839 = vpop.xlane.xlu0 %3838
    %v3840 = vsel %vm193, %v3828, 0.0
    %3841 = vadd.xlane.f32.xlu0 %v3840
    %v3842 = vpop.xlane.xlu0 %3841
    %v3843 = vsel %vm193, %v3829, 0.0
    %3844 = vadd.xlane.f32.xlu0 %v3843
    %v3845 = vpop.xlane.xlu0 %3844
    %v3846 = vsel %vm193, %v3830, 0.0
    %3847 = vadd.xlane.f32.xlu0 %v3846
    %v3848 = vpop.xlane.xlu0 %3847
    %v3849 = vmul.f32 %v3833, %v212
    %v3850 = vmul.f32 %v3836, %v212
    %v3851 = vmul.f32 %v3839, %v212
    %v3852 = vmul.f32 %v3842, %v212
    %v3853 = vmul.f32 %v3845, %v212
    %v3854 = vmul.f32 %v3848, %v212
    %v3855 = vadd.f32 %v3849, 1e-06
    %v3856 = vadd.f32 %v3850, 1e-06
    %v3857 = vadd.f32 %v3851, 1e-06
    %v3858 = vadd.f32 %v3852, 1e-06
    %v3859 = vadd.f32 %v3853, 1e-06
    %v3860 = vadd.f32 %v3854, 1e-06
    %v3861 = vrsqrt.pop %v3855
    %v3862 = vrsqrt.pop %v3856
    %v3863 = vrsqrt.pop %v3857
    %v3864 = vrsqrt.pop %v3858
    %v3865 = vrsqrt.pop %v3859
    %v3866 = vrsqrt.pop %v3860
    %v3867 = vmul.f32 %v3819, %v3861
    %v3868 = vmul.f32 %v3820, %v3862
    %v3869 = vmul.f32 %v3821, %v3863
    %v3870 = vmul.f32 %v3822, %v3864
    %v3871 = vmul.f32 %v3823, %v3865
    %v3872 = vmul.f32 %v3824, %v3866
    %v3874 = vlaneseq
    %v3875 = vshrl.u32 %v3874, 7
    %v3876 = vsub.s32 0, %v3875
    %v3877 = vrot.slane %v3792, %v3876
    %v3879 = vmul.f32 %v3867, %v3877
    %v3880 = vmul.f32 %v3868, %v3877
    %v3881 = vmul.f32 %v3869, %v3877
    %v3882 = vmul.f32 %v3870, %v3877
    %v3883 = vmul.f32 %v3871, %v3877
    %v3884 = vmul.f32 %v3872, %v3877
    %v3886 = vlaneseq
    %v3887 = vshrl.u32 %v3886, 7
    %v3888 = vsub.s32 0, %v3887
    %v3889 = vrot.slane %v3794, %v3888
    %v3891 = vadd.f32 %v3879, %v3889
    %v3892 = vadd.f32 %v3880, %v3889
    %v3893 = vadd.f32 %v3881, %v3889
    %v3894 = vadd.f32 %v3882, %v3889
    %v3895 = vadd.f32 %v3883, %v3889
    %v3896 = vadd.f32 %v3884, %v3889
    %v3897 = vpack.c.bf16 %v3892, %v3891
    %v3898 = vpack.c.bf16 %v3894, %v3893
    %v3899 = vpack.c.bf16 %v3896, %v3895
    %s3900 = scalar_lea.vmem %s12, 16
    %v3901 = vld [vmem:[%s3900] sm:$0xf]
    %v3902 = vld [vmem:[%s3900 + $0x4] sm:$0xf]
    %v3903 = vld [vmem:[%s3900 + $0x8] sm:$0xf]
    %v3904 = vld [vmem:[%s3900 + $0xc] sm:$0xf]
    %s3905 = scalar_lea.vmem %s13, 1
    %v3906 = vld [vmem:[%s3905] sm:$0x1]
    %v3908 = vlaneseq
    %v3909 = vshrl.u32 %v3908, 7
    %v3910 = vsub.s32 0, %v3909
    %v3911 = vrot.slane %v3906, %v3910
    %v3917 = vunpack.c.l.b16 %v3901
    %v3918 = vunpack.c.l.b16 %v3902
    %v3919 = vunpack.c.l.b16 %v3903
    %v3920 = vunpack.c.l.b16 %v3904
    %v3921 = vpack.c.b16 %v3918, %v3917
    %v3922 = vpack.c.b16 %v3920, %v3919
    %v3926 = vsel %vm193, %v3897, 0
    %v3929 = vsel %vm193, %v3898, 0
    %v3932 = vsel %vm193, %v3899, 0
    %3934 = vmatprep.subr.bf16.mxu0 0
    %3935 = vmatpush1.bf16.msra.mxu0 %v3921
    %3936 = vmatprep.subr.bf16.mxu0 0
    %3937 = vmatpush1.bf16.msra.mxu0 %v3922
    %3938 = vmatprep.subr.bf16.mxu0 0
    %3939 = vmatpush1.bf16.msra.mxu0 0
    %3940 = vmatprep.subr.bf16.mxu0 0
    %3941 = vmatpush1.bf16.msra.mxu0 0
    %3942 = vmatprep.subr.bf16.mxu0 0
    %3943 = vmatpush1.bf16.msra.mxu0 0
    %3944 = vmatprep.subr.bf16.mxu0 0
    %3945 = vmatpush1.bf16.msra.mxu0 0
    %3946 = vmatprep.subr.bf16.mxu0 0
    %3947 = vmatpush1.bf16.msra.mxu0 0
    %3948 = vmatprep.subr.bf16.mxu0 0
    %3949 = vmatpush1.bf16.msra.mxu0 0
    %3950 = vmatprep.subr.bf16.mxu0 0
    %3951 = vmatpush1.bf16.msra.mxu0 0
    %3952 = vmatprep.subr.bf16.mxu0 0
    %3953 = vmatpush1.bf16.msra.mxu0 0
    %3954 = vmatprep.subr.bf16.mxu0 0
    %3955 = vmatpush1.bf16.msra.mxu0 0
    %3956 = vmatprep.subr.bf16.mxu0 0
    %3957 = vmatpush1.bf16.msra.mxu0 0
    %3958 = vmatprep.subr.bf16.mxu0 0
    %3959 = vmatpush1.bf16.msra.mxu0 0
    %3960 = vmatprep.subr.bf16.mxu0 0
    %3961 = vmatpush1.bf16.msra.mxu0 0
    %3962 = vmatprep.subr.bf16.mxu0 0
    %3963 = vmatpush1.bf16.msra.mxu0 0
    %3964 = vmatprep.subr.bf16.mxu0 0
    %3965 = vmatpush1.bf16.msra.mxu0 0
    %3966 = vmatprep.mubr.bf16.mxu0 0
    %3967 = vmatmul.mubr.bf16.gmra.mrb[0].mxu0 %v3926
    %v3968 = vpop.f32.mrb[0].mxu0
    %v3969 = vadd.f32 %v3911, %v3968
    %v3970 = vpop.f32.mrb[0].mxu0
    %v3971 = vpop.f32.mrb[0].mxu0
    %v3972 = vadd.f32 %v3911, %v3971
    %v3973 = vpop.f32.mrb[0].mxu0
    %3974 = vmatprep.mubr.bf16.mxu0 0
    %3975 = vmatmul.mubr.bf16.gmra.mrb[0].mxu0 %v3929
    %v3976 = vpop.f32.mrb[0].mxu0
    %v3977 = vadd.f32 %v3911, %v3976
    %v3978 = vpop.f32.mrb[0].mxu0
    %v3979 = vpop.f32.mrb[0].mxu0
    %v3980 = vadd.f32 %v3911, %v3979
    %v3981 = vpop.f32.mrb[0].mxu0
    %3982 = vmatprep.mubr.bf16.mxu0 0
    %3983 = vmatmul.mubr.bf16.gmra.mrb[0].mxu0 %v3932
    %v3984 = vpop.f32.mrb[0].mxu0
    %v3985 = vadd.f32 %v3911, %v3984
    %v3986 = vpop.f32.mrb[0].mxu0
    %v3987 = vpop.f32.mrb[0].mxu0
    %v3988 = vadd.f32 %v3911, %v3987
    %v3989 = vpop.f32.mrb[0].mxu0
    %3990 = vdwg.mxu0
    %v3991 = vmul.f32 %v3969, %v3969
    %v3992 = vmul.f32 %v3972, %v3972
    %v3993 = vmul.f32 %v3977, %v3977
    %v3994 = vmul.f32 %v3980, %v3980
    %v3995 = vmul.f32 %v3985, %v3985
    %v3996 = vmul.f32 %v3988, %v3988
    %v3997 = vmul.f32 %v3969, %v3991
    %v3998 = vmul.f32 %v3972, %v3992
    %v3999 = vmul.f32 %v3977, %v3993
    %v4000 = vmul.f32 %v3980, %v3994
    %v4001 = vmul.f32 %v3985, %v3995
    %v4002 = vmul.f32 %v3988, %v3996
    %v4003 = vmul.f32 %v3997, 0.044715
    %v4004 = vmul.f32 %v3998, 0.044715
    %v4005 = vmul.f32 %v3999, 0.044715
    %v4006 = vmul.f32 %v4000, 0.044715
    %v4007 = vmul.f32 %v4001, 0.044715
    %v4008 = vmul.f32 %v4002, 0.044715
    %v4009 = vadd.f32 %v3969, %v4003
    %v4010 = vadd.f32 %v3972, %v4004
    %v4011 = vadd.f32 %v3977, %v4005
    %v4012 = vadd.f32 %v3980, %v4006
    %v4013 = vadd.f32 %v3985, %v4007
    %v4014 = vadd.f32 %v3988, %v4008
    %v4015 = vmul.f32 %v4009, 0.7978846
    %v4016 = vmul.f32 %v4010, 0.7978846
    %v4017 = vmul.f32 %v4011, 0.7978846
    %v4018 = vmul.f32 %v4012, 0.7978846
    %v4019 = vmul.f32 %v4013, 0.7978846
    %v4020 = vmul.f32 %v4014, 0.7978846
    %v4021 = vtanh.pop %v4015
    %v4022 = vtanh.pop %v4016
    %v4023 = vtanh.pop %v4017
    %v4024 = vtanh.pop %v4018
    %v4025 = vtanh.pop %v4019
    %v4026 = vtanh.pop %v4020
    %v4027 = vadd.f32 %v4021, 1.0
    %v4028 = vadd.f32 %v4022, 1.0
    %v4029 = vadd.f32 %v4023, 1.0
    %v4030 = vadd.f32 %v4024, 1.0
    %v4031 = vadd.f32 %v4025, 1.0
    %v4032 = vadd.f32 %v4026, 1.0
    %v4033 = vmul.f32 %v4027, 0.5
    %v4034 = vmul.f32 %v4028, 0.5
    %v4035 = vmul.f32 %v4029, 0.5
    %v4036 = vmul.f32 %v4030, 0.5
    %v4037 = vmul.f32 %v4031, 0.5
    %v4038 = vmul.f32 %v4032, 0.5
    %v4039 = vmul.f32 %v3969, %v4033
    %v4040 = vmul.f32 %v3972, %v4034
    %v4041 = vmul.f32 %v3977, %v4035
    %v4042 = vmul.f32 %v3980, %v4036
    %v4043 = vmul.f32 %v3985, %v4037
    %v4044 = vmul.f32 %v3988, %v4038
    %v4045 = vpack.c.bf16 %v4040, %v4039
    %v4046 = vpack.c.bf16 %v4042, %v4041
    %v4047 = vpack.c.bf16 %v4044, %v4043
    %s4048 = scalar_lea.vmem %s14, 32
    %v4049 = vld [vmem:[%s4048] sm:$0xf]
    %v4050 = vld [vmem:[%s4048 + $0x4] sm:$0xf]
    %v4051 = vld [vmem:[%s4048 + $0x8] sm:$0xf]
    %v4052 = vld [vmem:[%s4048 + $0xc] sm:$0xf]
    %v4053 = vld [vmem:[%s4048 + $0x10] sm:$0xf]
    %v4054 = vld [vmem:[%s4048 + $0x14] sm:$0xf]
    %v4055 = vld [vmem:[%s4048 + $0x18] sm:$0xf]
    %v4056 = vld [vmem:[%s4048 + $0x1c] sm:$0xf]
    %v4065 = vunpack.c.l.b16 %v4049
    %v4066 = vunpack.c.l.b16 %v4050
    %v4067 = vunpack.c.l.b16 %v4051
    %v4068 = vunpack.c.l.b16 %v4052
    %v4069 = vunpack.c.l.b16 %v4053
    %v4070 = vunpack.c.l.b16 %v4054
    %v4071 = vunpack.c.l.b16 %v4055
    %v4072 = vunpack.c.l.b16 %v4056
    %v4073 = vpack.c.b16 %v4066, %v4065
    %v4074 = vpack.c.b16 %v4068, %v4067
    %v4075 = vpack.c.b16 %v4070, %v4069
    %v4076 = vpack.c.b16 %v4072, %v4071
    %v4082 = vsel %vm2089, %v4045, 0
    %v4085 = vsel %vm2089, %v4046, 0
    %v4088 = vsel %vm2089, %v4047, 0
    %4090 = vmatprep.subr.bf16.mxu0 0
    %4091 = vmatpush1.bf16.msra.mxu0 %v4073
    %4092 = vmatprep.subr.bf16.mxu0 0
    %4093 = vmatpush1.bf16.msra.mxu0 %v4074
    %4094 = vmatprep.subr.bf16.mxu0 0
    %4095 = vmatpush1.bf16.msra.mxu0 %v4075
    %4096 = vmatprep.subr.bf16.mxu0 0
    %4097 = vmatpush1.bf16.msra.mxu0 %v4076
    %4098 = vmatprep.subr.bf16.mxu0 0
    %4099 = vmatpush1.bf16.msra.mxu0 0
    %4100 = vmatprep.subr.bf16.mxu0 0
    %4101 = vmatpush1.bf16.msra.mxu0 0
    %4102 = vmatprep.subr.bf16.mxu0 0
    %4103 = vmatpush1.bf16.msra.mxu0 0
    %4104 = vmatprep.subr.bf16.mxu0 0
    %4105 = vmatpush1.bf16.msra.mxu0 0
    %4106 = vmatprep.subr.bf16.mxu0 0
    %4107 = vmatpush1.bf16.msra.mxu0 0
    %4108 = vmatprep.subr.bf16.mxu0 0
    %4109 = vmatpush1.bf16.msra.mxu0 0
    %4110 = vmatprep.subr.bf16.mxu0 0
    %4111 = vmatpush1.bf16.msra.mxu0 0
    %4112 = vmatprep.subr.bf16.mxu0 0
    %4113 = vmatpush1.bf16.msra.mxu0 0
    %4114 = vmatprep.subr.bf16.mxu0 0
    %4115 = vmatpush1.bf16.msra.mxu0 0
    %4116 = vmatprep.subr.bf16.mxu0 0
    %4117 = vmatpush1.bf16.msra.mxu0 0
    %4118 = vmatprep.subr.bf16.mxu0 0
    %4119 = vmatpush1.bf16.msra.mxu0 0
    %4120 = vmatprep.subr.bf16.mxu0 0
    %4121 = vmatpush1.bf16.msra.mxu0 0
    %4122 = vmatprep.mubr.bf16.mxu0 0
    %4123 = vmatmul.mubr.bf16.gmra.mrb[0].mxu0 %v4082
    %v4124 = vpop.f32.mrb[0].mxu0
    %v4125 = vadd.f32 0.0, %v4124
    %v4126 = vpop.f32.mrb[0].mxu0
    %v4127 = vpop.f32.mrb[0].mxu0
    %v4128 = vadd.f32 0.0, %v4127
    %v4129 = vpop.f32.mrb[0].mxu0
    %4130 = vmatprep.mubr.bf16.mxu0 0
    %4131 = vmatmul.mubr.bf16.gmra.mrb[0].mxu0 %v4085
    %v4132 = vpop.f32.mrb[0].mxu0
    %v4133 = vadd.f32 0.0, %v4132
    %v4134 = vpop.f32.mrb[0].mxu0
    %v4135 = vpop.f32.mrb[0].mxu0
    %v4136 = vadd.f32 0.0, %v4135
    %v4137 = vpop.f32.mrb[0].mxu0
    %4138 = vmatprep.mubr.bf16.mxu0 0
    %4139 = vmatmul.mubr.bf16.gmra.mrb[0].mxu0 %v4088
    %v4140 = vpop.f32.mrb[0].mxu0
    %v4141 = vadd.f32 0.0, %v4140
    %v4142 = vpop.f32.mrb[0].mxu0
    %v4143 = vpop.f32.mrb[0].mxu0
    %v4144 = vadd.f32 0.0, %v4143
    %v4145 = vpop.f32.mrb[0].mxu0
    %4146 = vdwg.mxu0
    %v4147 = vadd.f32 %v3785, %v4125
    %v4148 = vadd.f32 %v3786, %v4128
    %v4149 = vadd.f32 %v3787, %v4133
    %v4150 = vadd.f32 %v3788, %v4136
    %v4151 = vadd.f32 %v3789, %v4141
    %v4152 = vadd.f32 %v3790, %v4144
    %s4153 = scalar_lea.vmem %s15, 1
    %v4154 = vld [vmem:[%s4153] sm:$0x1]
    %v4156 = vlaneseq
    %v4157 = vshrl.u32 %v4156, 7
    %v4158 = vsub.s32 0, %v4157
    %v4159 = vrot.slane %v4154, %v4158
    %v4161 = vadd.f32 %v4147, %v4159
    %v4162 = vadd.f32 %v4148, %v4159
    %v4163 = vadd.f32 %v4149, %v4159
    %v4164 = vadd.f32 %v4150, %v4159
    %v4165 = vadd.f32 %v4151, %v4159
    %v4166 = vadd.f32 %v4152, %v4159
    %v4167 = vlaneseq
    %v4168 = vshrl.u32 %v4167, 7
    %v4169 = vlaneseq
    %v4170 = vand.u32 %v4169, 127
    %v4171 = vmul.u32 %v4168, 24
    %v4172 = vadd.s32 %v4171, 16
    %vm4173 = vcmp.eq.s32.totalorder %v4170, %v4172
    %v4174 = vsel %vm4173, 1.0, 0.0
    %v4176 = vsel %vm124, %v4174, 0
    %4178 = vmatprep.subr.mxu0 0.0
    %4179 = vmatpush1.msra.mxu0 %v4161
    %4180 = vmatprep.subr.mxu0 0.0
    %4181 = vmatpush1.msra.mxu0 %v4162
    %4182 = vmatprep.subr.mxu0 0.0
    %4183 = vmatpush1.msra.mxu0 %v4163
    %4184 = vmatprep.subr.mxu0 0.0
    %4185 = vmatpush1.msra.mxu0 %v4164
    %4186 = vmatprep.subr.mxu0 0.0
    %4187 = vmatpush1.msra.mxu0 %v4165
    %4188 = vmatprep.subr.mxu0 0.0
    %4189 = vmatpush1.msra.mxu0 %v4166
    %4190 = vmatprep.subr.mxu0 0.0
    %4191 = vmatpush1.msra.mxu0 0.0
    %4192 = vmatprep.subr.mxu0 0.0
    %4193 = vmatpush1.msra.mxu0 0.0
    %4194 = vmatprep.subr.mxu0 0.0
    %4195 = vmatpush1.msra.mxu0 0.0
    %4196 = vmatprep.subr.mxu0 0.0
    %4197 = vmatpush1.msra.mxu0 0.0
    %4198 = vmatprep.subr.mxu0 0.0
    %4199 = vmatpush1.msra.mxu0 0.0
    %4200 = vmatprep.subr.mxu0 0.0
    %4201 = vmatpush1.msra.mxu0 0.0
    %4202 = vmatprep.subr.mxu0 0.0
    %4203 = vmatpush1.msra.mxu0 0.0
    %4204 = vmatprep.subr.mxu0 0.0
    %4205 = vmatpush1.msra.mxu0 0.0
    %4206 = vmatprep.subr.mxu0 0.0
    %4207 = vmatpush1.msra.mxu0 0.0
    %4208 = vmatprep.subr.mxu0 0.0
    %4209 = vmatpush1.msra.mxu0 0.0
    %4210 = vmatprep.subr.mxu0 0.0
    %4211 = vmatpush1.msra.mxu0 0.0
    %4212 = vmatprep.subr.mxu0 0.0
    %4213 = vmatpush1.msra.mxu0 0.0
    %4214 = vmatprep.subr.mxu0 0.0
    %4215 = vmatpush1.msra.mxu0 0.0
    %4216 = vmatprep.subr.mxu0 0.0
    %4217 = vmatpush1.msra.mxu0 0.0
    %4218 = vmatprep.subr.mxu0 0.0
    %4219 = vmatpush1.msra.mxu0 0.0
    %4220 = vmatprep.subr.mxu0 0.0
    %4221 = vmatpush1.msra.mxu0 0.0
    %4222 = vmatprep.subr.mxu0 0.0
    %4223 = vmatpush1.msra.mxu0 0.0
    %4224 = vmatprep.subr.mxu0 0.0
    %4225 = vmatpush1.msra.mxu0 0.0
    %4226 = vmatprep.subr.mxu0 0.0
    %4227 = vmatpush1.msra.mxu0 0.0
    %4228 = vmatprep.subr.mxu0 0.0
    %4229 = vmatpush1.msra.mxu0 0.0
    %4230 = vmatprep.subr.mxu0 0.0
    %4231 = vmatpush1.msra.mxu0 0.0
    %4232 = vmatprep.subr.mxu0 0.0
    %4233 = vmatpush1.msra.mxu0 0.0
    %4234 = vmatprep.subr.mxu0 0.0
    %4235 = vmatpush1.msra.mxu0 0.0
    %4236 = vmatprep.subr.mxu0 0.0
    %4237 = vmatpush1.msra.mxu0 0.0
    %4238 = vmatprep.subr.mxu0 0.0
    %4239 = vmatpush1.msra.mxu0 0.0
    %4240 = vmatprep.subr.mxu0 0.0
    %4241 = vmatpush1.msra.mxu0 0.0
    %4242 = vmatprep.mubr.f32.mxu0 0.0
    %4243 = vmatmul.mubr.f32.gmra.mrb[0].mxu0 %v4176
    %v4244 = vpop.f32.mrb[0].mxu0
    %v4245 = vadd.f32 0.0, %v4244
    %v4246 = vpop.f32.mrb[0].mxu0
    %4247 = vdwg.mxu0
    %v4248 = vld [vmem:[%s16] sm:$0x1]
    %v4249 = vld [vmem:[%s17] sm:$0x1]
    %vm4250 = vcmask 254976
    %v4251 = vsel %vm4250, %v4245, 0.0
    %4252 = vadd.xlane.f32.xlu0 %v4251
    %v4253 = vpop.xlane.xlu0 %4252
    %v4254 = vmul.f32 %v4253, %v212
    %v4255 = vsub.f32 %v4245, %v4254
    %v4256 = vmul.f32 %v4255, %v4255
    %v4257 = vsel %vm4250, %v4256, 0.0
    %4258 = vadd.xlane.f32.xlu0 %v4257
    %v4259 = vpop.xlane.xlu0 %4258
    %v4260 = vmul.f32 %v4259, %v212
    %v4261 = vadd.f32 %v4260, 1e-06
    %v4262 = vrsqrt.pop %v4261
    %v4263 = vmul.f32 %v4255, %v4262
    %v4265 = vlaneseq
    %v4266 = vshrl.u32 %v4265, 7
    %v4267 = vsub.s32 0, %v4266
    %v4268 = vrot.slane %v4248, %v4267
    %v4270 = vmul.f32 %v4263, %v4268
    %v4272 = vlaneseq
    %v4273 = vshrl.u32 %v4272, 7
    %v4274 = vsub.s32 0, %v4273
    %v4275 = vrot.slane %v4249, %v4274
    %v4277 = vadd.f32 %v4270, %v4275
    %v4278 = vld [vmem:[%s18] sm:$0xff]
    %v4279 = vld [vmem:[%s18 + $0x8] sm:$0xff]
    %v4280 = vld [vmem:[%s18 + $0x10] sm:$0xff]
    %v4281 = vld [vmem:[%s18 + $0x18] sm:$0xff]
    %v4282 = vld [vmem:[%s19] sm:$0x1]
    %v4284 = vlaneseq
    %v4285 = vshrl.u32 %v4284, 7
    %v4286 = vsub.s32 0, %v4285
    %v4287 = vrot.slane %v4282, %v4286
    %v4290 = vsel %vm193, %v4277, 0
    %4292 = vmatprep.subr.mxu0 0.0
    %4293 = vmatpush1.msra.mxu0 %v4278
    %4294 = vmatprep.subr.mxu0 0.0
    %4295 = vmatpush1.msra.mxu0 %v4279
    %4296 = vmatprep.subr.mxu0 0.0
    %4297 = vmatpush1.msra.mxu0 %v4280
    %4298 = vmatprep.subr.mxu0 0.0
    %4299 = vmatpush1.msra.mxu0 %v4281
    %4300 = vmatprep.subr.mxu0 0.0
    %4301 = vmatpush1.msra.mxu0 0.0
    %4302 = vmatprep.subr.mxu0 0.0
    %4303 = vmatpush1.msra.mxu0 0.0
    %4304 = vmatprep.subr.mxu0 0.0
    %4305 = vmatpush1.msra.mxu0 0.0
    %4306 = vmatprep.subr.mxu0 0.0
    %4307 = vmatpush1.msra.mxu0 0.0
    %4308 = vmatprep.subr.mxu0 0.0
    %4309 = vmatpush1.msra.mxu0 0.0
    %4310 = vmatprep.subr.mxu0 0.0
    %4311 = vmatpush1.msra.mxu0 0.0
    %4312 = vmatprep.subr.mxu0 0.0
    %4313 = vmatpush1.msra.mxu0 0.0
    %4314 = vmatprep.subr.mxu0 0.0
    %4315 = vmatpush1.msra.mxu0 0.0
    %4316 = vmatprep.subr.mxu0 0.0
    %4317 = vmatpush1.msra.mxu0 0.0
    %4318 = vmatprep.subr.mxu0 0.0
    %4319 = vmatpush1.msra.mxu0 0.0
    %4320 = vmatprep.subr.mxu0 0.0
    %4321 = vmatpush1.msra.mxu0 0.0
    %4322 = vmatprep.subr.mxu0 0.0
    %4323 = vmatpush1.msra.mxu0 0.0
    %4324 = vmatprep.subr.mxu0 0.0
    %4325 = vmatpush1.msra.mxu0 0.0
    %4326 = vmatprep.subr.mxu0 0.0
    %4327 = vmatpush1.msra.mxu0 0.0
    %4328 = vmatprep.subr.mxu0 0.0
    %4329 = vmatpush1.msra.mxu0 0.0
    %4330 = vmatprep.subr.mxu0 0.0
    %4331 = vmatpush1.msra.mxu0 0.0
    %4332 = vmatprep.subr.mxu0 0.0
    %4333 = vmatpush1.msra.mxu0 0.0
    %4334 = vmatprep.subr.mxu0 0.0
    %4335 = vmatpush1.msra.mxu0 0.0
    %4336 = vmatprep.subr.mxu0 0.0
    %4337 = vmatpush1.msra.mxu0 0.0
    %4338 = vmatprep.subr.mxu0 0.0
    %4339 = vmatpush1.msra.mxu0 0.0
    %4340 = vmatprep.subr.mxu0 0.0
    %4341 = vmatpush1.msra.mxu0 0.0
    %4342 = vmatprep.subr.mxu0 0.0
    %4343 = vmatpush1.msra.mxu0 0.0
    %4344 = vmatprep.subr.mxu0 0.0
    %4345 = vmatpush1.msra.mxu0 0.0
    %4346 = vmatprep.subr.mxu0 0.0
    %4347 = vmatpush1.msra.mxu0 0.0
    %4348 = vmatprep.subr.mxu0 0.0
    %4349 = vmatpush1.msra.mxu0 0.0
    %4350 = vmatprep.subr.mxu0 0.0
    %4351 = vmatpush1.msra.mxu0 0.0
    %4352 = vmatprep.subr.mxu0 0.0
    %4353 = vmatpush1.msra.mxu0 0.0
    %4354 = vmatprep.subr.mxu0 0.0
    %4355 = vmatpush1.msra.mxu0 0.0
    %4356 = vmatprep.mubr.f32.mxu0 0.0
    %4357 = vmatmul.mubr.f32.gmra.mrb[0].mxu0 %v4290
    %v4358 = vpop.f32.mrb[0].mxu0
    %v4359 = vadd.f32 %v4287, %v4358
    %v4360 = vpop.f32.mrb[0].mxu0
    %4361 = vdwg.mxu0
    %vm4362 = vcmask 74752
    %4363 = vst.msk [vmem:[#allocation2] sm:$0x3] %vm4362, %v4359
    // Predicated region
    $region82: #{vit_with_extra_layer_forward.1} parent=1 // pred_check
      _
    $region83: #{vit_with_extra_layer_forward.1} parent=1 // pred_check_branch
      %4365 = sbr.rel (0) target = $region85
    $region84: #{vit_with_extra_layer_forward.1} parent=1 // pred_region
      %s4367 = ssub.s32 32, 32
      %4368 = vsyncadd [#allocation3], %s4367
      %s4370 = sshll.u32 [#allocation2], 4
      %s4371 = int_to_ptr.vmem [resolvable:$true] %s4370
      %4373 = dma.vmem_to_hbm [thread:$0]  %s4371, 32, %s20, [#allocation3]
    $region85: #{vit_with_extra_layer_forward.1} parent=1 // pred_fallthru
      _
    // Predicated region
    $region86: #{vit_with_extra_layer_forward.1} parent=1 // pred_check
      _
    $region87: #{vit_with_extra_layer_forward.1} parent=1 // pred_check_branch
      %4375 = sbr.rel (0) target = $region89
    $region88: #{vit_with_extra_layer_forward.1} parent=1 // pred_region
      %4376 = dma.done [#allocation3], 32
    $region89: #{vit_with_extra_layer_forward.1} parent=1 // pred_fallthru
      _
    %4377 = vsyncpa [#allocation3], 1

</llo_original>
